<compile_context>
chip_gen: v6e
topology: v6e:2x2x1
jax: 0.10.0
libtpu: 0.0.40
codegen_flags: <defaults>
</compile_context>

<pallas_src>
import functools

import jax
import jax.numpy as jnp
from jax.experimental import pallas as pl
from jax.experimental.pallas import tpu as pltpu


def _round_up(x, m):
    return ((x + m - 1) // m) * m


# ----------------------------------------------------------------------------
# Pallas kernel: one transposed GEMM tile + bias + activation epilogue.
#   out(Cout, TM) = w(Cout, K) @ patches(K, TM), then + bias, PReLU / sigmoid.
# ----------------------------------------------------------------------------
def _gemm_bias_act_kernel(w_ref, p_ref, b_ref, *rest, act):
    if act == "prelu":
        a_ref, o_ref = rest
    else:
        (o_ref,) = rest
    y = jnp.dot(w_ref[...], p_ref[...], preferred_element_type=jnp.float32)
    y = y + b_ref[...]                                  # (Cout,1) bcast over lanes
    if act == "prelu":
        y = jnp.where(y >= 0.0, y, a_ref[...] * y)
    else:  # sigmoid: exp + approximate reciprocal both go to the EUP slot
        y = pl.reciprocal(1.0 + jnp.exp(-y), approx=True)
    o_ref[...] = y.astype(o_ref.dtype)


def gemm_bias_act(w, patches, b, alpha, act, tm=1024):
    """w: (Cout, K); patches: (K, M); returns (Cout, M) float32."""
    Cout, K = w.shape
    K2, M = patches.shape
    assert K == K2
    TM = min(tm, _round_up(M, 128))          # lane-dense M tile (multiple of 128)
    M_pad = _round_up(M, TM)
    if M_pad != M:
        patches = jnp.pad(patches, ((0, 0), (0, M_pad - M)))

    # NOTE: on v6e/v7x the operands could be cast to bf16 here (keep the f32
    # accumulation via preferred_element_type) for ~2x MXU rate; kept f32 to
    # stay numerically faithful to the PyTorch module.
    in_specs = [
        pl.BlockSpec((Cout, K), lambda i: (0, 0)),   # weights (resident)
        pl.BlockSpec((K, TM), lambda i: (0, i)),     # patch tile (lane-dense)
        pl.BlockSpec((Cout, 1), lambda i: (0, 0)),   # bias
    ]
    args = [w.astype(jnp.float32), patches.astype(jnp.float32),
            b.reshape(Cout, 1).astype(jnp.float32)]
    if act == "prelu":
        in_specs.append(pl.BlockSpec((Cout, 1), lambda i: (0, 0)))
        args.append(alpha.reshape(Cout, 1).astype(jnp.float32))

    out = pl.pallas_call(
        functools.partial(_gemm_bias_act_kernel, act=act),
        out_shape=jax.ShapeDtypeStruct((Cout, M_pad), jnp.float32),
        grid_spec=pltpu.PrefetchScalarGridSpec(
            num_scalar_prefetch=0,
            grid=(M_pad // TM,),
            in_specs=in_specs,
            out_specs=pl.BlockSpec((Cout, TM), lambda i: (0, i)),
        ),
        compiler_params=pltpu.CompilerParams(
            dimension_semantics=("parallel",),
            vmem_limit_bytes=32 * 1024 * 1024),
    )(*args)
    return out[:, :M]


# ----------------------------------------------------------------------------
# Conv layers (im2col / layout conversion is plain-JAX glue).
# ----------------------------------------------------------------------------
def conv_layer(x, w_g, b, alpha, KH, KW, pad_h, pad_w, act, tm=1024):
    """x: (Cin, N, H, W); w_g: (Cout, KH*KW*Cin) -> (Cout, N, H_out, W_out)."""
    Cin, N, H, W = x.shape
    Cout = w_g.shape[0]
    if KH == 1 and KW == 1:
        H_out, W_out = H, W
        patches = x.reshape(Cin, N * H * W)            # no im2col for 1x1
    else:
        # TODO(synk): the im2col stack still materializes KH*KW copies of the
        # activation in HBM; a halo'd row BlockSpec would avoid that traffic.
        x_pad = jnp.pad(x, ((0, 0), (0, 0), pad_h, pad_w))
        H_out = H + sum(pad_h) - KH + 1
        W_out = W + sum(pad_w) - KW + 1
        M = N * H_out * W_out
        slices = [
            x_pad[:, :, kh:kh + H_out, kw:kw + W_out].reshape(Cin, M)
            for kh in range(KH) for kw in range(KW)
        ]
        patches = jnp.concatenate(slices, axis=0)      # (KH*KW*Cin, M)
    out2d = gemm_bias_act(w_g, patches, b, alpha, act, tm)
    return out2d.reshape(Cout, N, H_out, W_out)


def conv2d_layer(x, w_pt, b, alpha, pad, act="prelu", tm=1024):
    """w_pt: PyTorch Conv2d weight (Cout, Cin, KH, KW)."""
    Cout, Cin, KH, KW = w_pt.shape
    w_g = jnp.transpose(w_pt, (0, 2, 3, 1)).reshape(Cout, KH * KW * Cin)
    return conv_layer(x, w_g, b, alpha, KH, KW, (pad, pad), (pad, pad), act, tm)


def _subpixel_deconv_weight(w_pt, stride, pad):
    """ConvTranspose2d weight (Cin, Cout, K, K) -> unified sub-pixel stride-1
    conv weight (stride^2*Cout, T*T*Cin), window size T and (left,right) pad."""
    Cin, Cout, K, _ = w_pt.shape
    s = stride
    d_all = [(r + pad - ky) // s
             for r in range(s) for ky in range(K) if (r + pad - ky) % s == 0]
    d_lo, d_hi = min(d_all), max(d_all)
    T = d_hi - d_lo + 1
    # axes: (phase_r, phase_c, Cout, tap_h, tap_w, Cin)
    w_u = jnp.zeros((s, s, Cout, T, T, Cin), w_pt.dtype)
    for r in range(s):
        for dh in range(T):
            kh = r + pad - s * (dh + d_lo)
            if not 0 <= kh < K:
                continue
            for c in range(s):
                for dw in range(T):
                    kw = c + pad - s * (dw + d_lo)
                    if not 0 <= kw < K:
                        continue
                    w_u = w_u.at[r, c, :, dh, dw, :].set(w_pt[:, :, kh, kw].T)
    w_g = w_u.reshape(s * s * Cout, T * T * Cin)
    return w_g, T, (-d_lo, d_hi)


def deconv_layer(x, w_pt, b, stride, pad, out_pad, tm=1024):
    """Sub-pixel ConvTranspose2d(+Sigmoid). x: (Cin,N,H,W) -> (N,Cout,sH,sW)."""
    Cin, Cout, K, _ = w_pt.shape
    s = stride
    # sub-pixel decomposition covers exactly the PyTorch output grid when:
    assert K + out_pad - 2 * pad == s, "unsupported ConvTranspose2d geometry"
    w_g, T, (p_lo, p_hi) = _subpixel_deconv_weight(w_pt, s, pad)
    b_all = jnp.tile(b, s * s)
    y = conv_layer(x, w_g, b_all, None, T, T, (p_lo, p_hi), (p_lo, p_hi),
                   act="sigmoid", tm=tm)                # (s*s*Cout, N, H, W)
    _, N, H, W = y.shape
    y = y.reshape(s, s, Cout, N, H, W)
    y = jnp.transpose(y, (3, 2, 4, 0, 5, 1))            # (N, Cout, H, s, W, s)
    return y.reshape(N, Cout, s * H, s * W)             # depth-to-space, NCHW


# ----------------------------------------------------------------------------
# FSRCNN forward (matches the PyTorch module semantics).
# ----------------------------------------------------------------------------
def fsrcnn_forward(x_nchw, p, upscale=2):
    x = jnp.transpose(x_nchw, (1, 0, 2, 3)).astype(jnp.float32)  # (C, N, H, W)
    x = conv2d_layer(x, p["extract_w"], p["extract_b"], p["extract_a"], pad=2)
    x = conv2d_layer(x, p["shrink_w"], p["shrink_b"], p["shrink_a"], pad=0)
    for i in range(4):
        x = conv2d_layer(x, p[f"map{i}_w"], p[f"map{i}_b"], p[f"map{i}_a"], pad=1)
    x = conv2d_layer(x, p["expand_w"], p["expand_b"], p["expand_a"], pad=0)
    return deconv_layer(x, p["deconv_w"], p["deconv_b"],
                        stride=upscale, pad=4, out_pad=upscale - 1)


# ----------------------------------------------------------------------------
# Pure-JAX reference (XLA convs) for numerical validation.
# ----------------------------------------------------------------------------
def ref_forward(x, p, upscale=2):
    def conv(x, w, b, pad):
        y = jax.lax.conv_general_dilated(
            x, w, window_strides=(1, 1), padding=[(pad, pad), (pad, pad)],
            dimension_numbers=("NCHW", "OIHW", "NCHW"))
        return y + b.reshape(1, -1, 1, 1)

    def prelu(y, a):
        return jnp.where(y >= 0, y, a.reshape(1, -1, 1, 1) * y)

    x = prelu(conv(x, p["extract_w"], p["extract_b"], 2), p["extract_a"])
    x = prelu(conv(x, p["shrink_w"], p["shrink_b"], 0), p["shrink_a"])
    for i in range(4):
        x = prelu(conv(x, p[f"map{i}_w"], p[f"map{i}_b"], 1), p[f"map{i}_a"])
    x = prelu(conv(x, p["expand_w"], p["expand_b"], 0), p["expand_a"])
    s, k, pad = upscale, 9, 4
    wf = jnp.transpose(p["deconv_w"][:, :, ::-1, ::-1], (1, 0, 2, 3))
    y = jax.lax.conv_general_dilated(
        x, wf, window_strides=(1, 1),
        padding=[(k - 1 - pad, k - 1 - pad + (s - 1))] * 2,
        lhs_dilation=(s, s), dimension_numbers=("NCHW", "OIHW", "NCHW"))
    y = y + p["deconv_b"].reshape(1, -1, 1, 1)
    return jax.nn.sigmoid(y)


# ----------------------------------------------------------------------------
# Deterministic parameter init (shapes from FSRCNN.__init__, PyTorch layouts).
# ----------------------------------------------------------------------------
def init_params(key, num_channels=3):
    p = {}

    def nxt():
        nonlocal key
        key, sub = jax.random.split(key)
        return sub

    def conv(cout, cin, k):
        fan_in = cin * k * k
        w = jax.random.normal(nxt(), (cout, cin, k, k), jnp.float32) / jnp.sqrt(
            jnp.float32(fan_in))
        b = jax.random.normal(nxt(), (cout,), jnp.float32) * 0.01
        return w, b

    p["extract_w"], p["extract_b"] = conv(56, num_channels, 5)
    p["extract_a"] = jnp.full((56,), 0.25, jnp.float32)           # PReLU default
    p["shrink_w"], p["shrink_b"] = conv(12, 56, 1)
    p["shrink_a"] = jnp.full((12,), 0.25, jnp.float32)
    for i in range(4):
        p[f"map{i}_w"], p[f"map{i}_b"] = conv(12, 12, 3)
        p[f"map{i}_a"] = jnp.full((12,), 0.25, jnp.float32)
    p["expand_w"], p["expand_b"] = conv(56, 12, 1)
    p["expand_a"] = jnp.full((56,), 0.25, jnp.float32)
    # ConvTranspose2d weight layout is (Cin, Cout, KH, KW).
    p["deconv_w"] = jax.random.normal(
        nxt(), (56, num_channels, 9, 9), jnp.float32) / jnp.sqrt(
            jnp.float32(56 * 9 * 9))
    p["deconv_b"] = jax.random.normal(nxt(), (num_channels,), jnp.float32) * 0.01
    return p


if __name__ == "__main__":
    key = jax.random.PRNGKey(0)
    key, xkey = jax.random.split(key)
    x = jax.random.normal(xkey, (2, 3, 16, 16), jnp.float32)      # NCHW input
    params = init_params(key, num_channels=3)

    fwd = jax.jit(functools.partial(fsrcnn_forward, upscale=2))
    out = jax.block_until_ready(fwd(x, params))

    assert out.shape == (2, 3, 32, 32), out.shape
    assert out.dtype == jnp.float32
    assert bool(jnp.all(jnp.isfinite(out)))
    # sigmoid range (small slack for the EUP approximate reciprocal)
    assert bool(jnp.all((out >= -1e-3) & (out <= 1.0 + 1e-3)))

    ref = jax.block_until_ready(
        jax.jit(functools.partial(ref_forward, upscale=2))(x, params))
    max_err = float(jnp.max(jnp.abs(out - ref)))
    # tolerance covers MXU default-precision rounding in both implementations
    assert max_err < 2e-2, f"mismatch vs reference: {max_err}"

    print("KERNEL_OK")
</pallas_src>

<mosaic_0001>
module attributes {stable_mosaic.version = 11 : i64} {
  func.func @_gemm_bias_act_kernel(%arg0: i32, %arg1: memref<56x75xf32, #tpu.memory_space<vmem>>, %arg2: memref<75x512xf32, #tpu.memory_space<vmem>>, %arg3: memref<56x1xf32, #tpu.memory_space<vmem>>, %arg4: memref<56x1xf32, #tpu.memory_space<vmem>>, %arg5: memref<56x512xf32, #tpu.memory_space<vmem>>) attributes {dimension_semantics = [#tpu.dimension_semantics<parallel>], iteration_bounds = array<i64: 1>, scalar_prefetch = 0 : i64, scratch_operands = 0 : i64, tpu.core_type = #tpu.core_type<tc>, window_params = [{pipeline_mode = #tpu.pipeline_mode<synchronous>, transform_indices = @transform_0, window_bounds = array<i64: 56, 75>}, {transform_indices = @transform_1, window_bounds = array<i64: 75, 512>}, {pipeline_mode = #tpu.pipeline_mode<synchronous>, transform_indices = @transform_2, window_bounds = array<i64: 56, 1>}, {pipeline_mode = #tpu.pipeline_mode<synchronous>, transform_indices = @transform_3, window_bounds = array<i64: 56, 1>}, {transform_indices = @transform_4, window_bounds = array<i64: 56, 512>}]} {
    %c0 = arith.constant 0 : index
    %c0_0 = arith.constant 0 : index
    %0 = vector.load %arg1[%c0, %c0_0] : memref<56x75xf32, #tpu.memory_space<vmem>>, vector<56x75xf32>
    %c0_1 = arith.constant 0 : index
    %c0_2 = arith.constant 0 : index
    %1 = vector.load %arg2[%c0_1, %c0_2] : memref<75x512xf32, #tpu.memory_space<vmem>>, vector<75x512xf32>
    %cst = arith.constant dense<0.000000e+00> : vector<56x512xf32>
    %2 = tpu.matmul %0, %1, %cst {dimension_numbers = #tpu.dot_dimension_numbers<[1], [0], [0], [1], [0, 0, 1, 1], [], []>} : vector<56x75xf32>, vector<75x512xf32>, vector<56x512xf32> -> vector<56x512xf32>
    %c0_3 = arith.constant 0 : index
    %c0_4 = arith.constant 0 : index
    %3 = vector.load %arg3[%c0_3, %c0_4] : memref<56x1xf32, #tpu.memory_space<vmem>>, vector<56x1xf32>
    %4 = vector.broadcast %3 : vector<56x1xf32> to vector<56x512xf32>
    %5 = arith.addf %2, %4 : vector<56x512xf32>
    %cst_5 = arith.constant 0.000000e+00 : f32
    %6 = vector.broadcast %cst_5 : f32 to vector<56x512xf32>
    %7 = arith.cmpf oge, %5, %6 : vector<56x512xf32>
    %c0_6 = arith.constant 0 : index
    %c0_7 = arith.constant 0 : index
    %8 = vector.load %arg4[%c0_6, %c0_7] : memref<56x1xf32, #tpu.memory_space<vmem>>, vector<56x1xf32>
    %9 = vector.broadcast %8 : vector<56x1xf32> to vector<56x512xf32>
    %10 = arith.mulf %9, %5 : vector<56x512xf32>
    %11 = arith.select %7, %5, %10 : vector<56x512xi1>, vector<56x512xf32>
    %c0_8 = arith.constant 0 : index
    %c0_9 = arith.constant 0 : index
    %12 = vector.load %arg5[%c0_8, %c0_9] : memref<56x512xf32, #tpu.memory_space<vmem>>, vector<56x512xf32>
    tpu.vector_store %arg5[%c0_8, %c0_9], %11 {strides = array<i32>} : memref<56x512xf32, #tpu.memory_space<vmem>>, vector<56x512xf32>,
    return
  }
  func.func @transform_0(%arg0: i32) -> (i32, i32) {
    %c0_i32 = arith.constant 0 : i32
    %c0_i32_0 = arith.constant 0 : i32
    %c0_i32_1 = arith.constant 0 : i32
    return %c0_i32, %c0_i32_0 : i32, i32
  }
  func.func @transform_1(%arg0: i32) -> (i32, i32) {
    %c0_i32 = arith.constant 0 : i32
    %c0_i32_0 = arith.constant 0 : i32
    return %c0_i32, %arg0 : i32, i32
  }
  func.func @transform_2(%arg0: i32) -> (i32, i32) {
    %c0_i32 = arith.constant 0 : i32
    %c0_i32_0 = arith.constant 0 : i32
    %c0_i32_1 = arith.constant 0 : i32
    return %c0_i32, %c0_i32_0 : i32, i32
  }
  func.func @transform_3(%arg0: i32) -> (i32, i32) {
    %c0_i32 = arith.constant 0 : i32
    %c0_i32_0 = arith.constant 0 : i32
    %c0_i32_1 = arith.constant 0 : i32
    return %c0_i32, %c0_i32_0 : i32, i32
  }
  func.func @transform_4(%arg0: i32) -> (i32, i32) {
    %c0_i32 = arith.constant 0 : i32
    %c0_i32_0 = arith.constant 0 : i32
    return %c0_i32, %arg0 : i32, i32
  }
}

module attributes {stable_mosaic.version = 11 : i64} {
  func.func @_gemm_bias_act_kernel(%arg0: i32, %arg1: memref<12x56xf32, #tpu.memory_space<vmem>>, %arg2: memref<56x512xf32, #tpu.memory_space<vmem>>, %arg3: memref<12x1xf32, #tpu.memory_space<vmem>>, %arg4: memref<12x1xf32, #tpu.memory_space<vmem>>, %arg5: memref<12x512xf32, #tpu.memory_space<vmem>>) attributes {dimension_semantics = [#tpu.dimension_semantics<parallel>], iteration_bounds = array<i64: 1>, scalar_prefetch = 0 : i64, scratch_operands = 0 : i64, tpu.core_type = #tpu.core_type<tc>, window_params = [{pipeline_mode = #tpu.pipeline_mode<synchronous>, transform_indices = @transform_0, window_bounds = array<i64: 12, 56>}, {transform_indices = @transform_1, window_bounds = array<i64: 56, 512>}, {pipeline_mode = #tpu.pipeline_mode<synchronous>, transform_indices = @transform_2, window_bounds = array<i64: 12, 1>}, {pipeline_mode = #tpu.pipeline_mode<synchronous>, transform_indices = @transform_3, window_bounds = array<i64: 12, 1>}, {transform_indices = @transform_4, window_bounds = array<i64: 12, 512>}]} {
    %c0 = arith.constant 0 : index
    %c0_0 = arith.constant 0 : index
    %0 = vector.load %arg1[%c0, %c0_0] : memref<12x56xf32, #tpu.memory_space<vmem>>, vector<12x56xf32>
    %c0_1 = arith.constant 0 : index
    %c0_2 = arith.constant 0 : index
    %1 = vector.load %arg2[%c0_1, %c0_2] : memref<56x512xf32, #tpu.memory_space<vmem>>, vector<56x512xf32>
    %cst = arith.constant dense<0.000000e+00> : vector<12x512xf32>
    %2 = tpu.matmul %0, %1, %cst {dimension_numbers = #tpu.dot_dimension_numbers<[1], [0], [0], [1], [0, 0, 1, 1], [], []>} : vector<12x56xf32>, vector<56x512xf32>, vector<12x512xf32> -> vector<12x512xf32>
    %c0_3 = arith.constant 0 : index
    %c0_4 = arith.constant 0 : index
    %3 = vector.load %arg3[%c0_3, %c0_4] : memref<12x1xf32, #tpu.memory_space<vmem>>, vector<12x1xf32>
    %4 = vector.broadcast %3 : vector<12x1xf32> to vector<12x512xf32>
    %5 = arith.addf %2, %4 : vector<12x512xf32>
    %cst_5 = arith.constant 0.000000e+00 : f32
    %6 = vector.broadcast %cst_5 : f32 to vector<12x512xf32>
    %7 = arith.cmpf oge, %5, %6 : vector<12x512xf32>
    %c0_6 = arith.constant 0 : index
    %c0_7 = arith.constant 0 : index
    %8 = vector.load %arg4[%c0_6, %c0_7] : memref<12x1xf32, #tpu.memory_space<vmem>>, vector<12x1xf32>
    %9 = vector.broadcast %8 : vector<12x1xf32> to vector<12x512xf32>
    %10 = arith.mulf %9, %5 : vector<12x512xf32>
    %11 = arith.select %7, %5, %10 : vector<12x512xi1>, vector<12x512xf32>
    %c0_8 = arith.constant 0 : index
    %c0_9 = arith.constant 0 : index
    %12 = vector.load %arg5[%c0_8, %c0_9] : memref<12x512xf32, #tpu.memory_space<vmem>>, vector<12x512xf32>
    tpu.vector_store %arg5[%c0_8, %c0_9], %11 {strides = array<i32>} : memref<12x512xf32, #tpu.memory_space<vmem>>, vector<12x512xf32>,
    return
  }
  func.func @transform_0(%arg0: i32) -> (i32, i32) {
    %c0_i32 = arith.constant 0 : i32
    %c0_i32_0 = arith.constant 0 : i32
    %c0_i32_1 = arith.constant 0 : i32
    return %c0_i32, %c0_i32_0 : i32, i32
  }
  func.func @transform_1(%arg0: i32) -> (i32, i32) {
    %c0_i32 = arith.constant 0 : i32
    %c0_i32_0 = arith.constant 0 : i32
    return %c0_i32, %arg0 : i32, i32
  }
  func.func @transform_2(%arg0: i32) -> (i32, i32) {
    %c0_i32 = arith.constant 0 : i32
    %c0_i32_0 = arith.constant 0 : i32
    %c0_i32_1 = arith.constant 0 : i32
    return %c0_i32, %c0_i32_0 : i32, i32
  }
  func.func @transform_3(%arg0: i32) -> (i32, i32) {
    %c0_i32 = arith.constant 0 : i32
    %c0_i32_0 = arith.constant 0 : i32
    %c0_i32_1 = arith.constant 0 : i32
    return %c0_i32, %c0_i32_0 : i32, i32
  }
  func.func @transform_4(%arg0: i32) -> (i32, i32) {
    %c0_i32 = arith.constant 0 : i32
    %c0_i32_0 = arith.constant 0 : i32
    return %c0_i32, %arg0 : i32, i32
  }
}

module attributes {stable_mosaic.version = 11 : i64} {
  func.func @_gemm_bias_act_kernel(%arg0: i32, %arg1: memref<12x108xf32, #tpu.memory_space<vmem>>, %arg2: memref<108x512xf32, #tpu.memory_space<vmem>>, %arg3: memref<12x1xf32, #tpu.memory_space<vmem>>, %arg4: memref<12x1xf32, #tpu.memory_space<vmem>>, %arg5: memref<12x512xf32, #tpu.memory_space<vmem>>) attributes {dimension_semantics = [#tpu.dimension_semantics<parallel>], iteration_bounds = array<i64: 1>, scalar_prefetch = 0 : i64, scratch_operands = 0 : i64, tpu.core_type = #tpu.core_type<tc>, window_params = [{pipeline_mode = #tpu.pipeline_mode<synchronous>, transform_indices = @transform_0, window_bounds = array<i64: 12, 108>}, {transform_indices = @transform_1, window_bounds = array<i64: 108, 512>}, {pipeline_mode = #tpu.pipeline_mode<synchronous>, transform_indices = @transform_2, window_bounds = array<i64: 12, 1>}, {pipeline_mode = #tpu.pipeline_mode<synchronous>, transform_indices = @transform_3, window_bounds = array<i64: 12, 1>}, {transform_indices = @transform_4, window_bounds = array<i64: 12, 512>}]} {
    %c0 = arith.constant 0 : index
    %c0_0 = arith.constant 0 : index
    %0 = vector.load %arg1[%c0, %c0_0] : memref<12x108xf32, #tpu.memory_space<vmem>>, vector<12x108xf32>
    %c0_1 = arith.constant 0 : index
    %c0_2 = arith.constant 0 : index
    %1 = vector.load %arg2[%c0_1, %c0_2] : memref<108x512xf32, #tpu.memory_space<vmem>>, vector<108x512xf32>
    %cst = arith.constant dense<0.000000e+00> : vector<12x512xf32>
    %2 = tpu.matmul %0, %1, %cst {dimension_numbers = #tpu.dot_dimension_numbers<[1], [0], [0], [1], [0, 0, 1, 1], [], []>} : vector<12x108xf32>, vector<108x512xf32>, vector<12x512xf32> -> vector<12x512xf32>
    %c0_3 = arith.constant 0 : index
    %c0_4 = arith.constant 0 : index
    %3 = vector.load %arg3[%c0_3, %c0_4] : memref<12x1xf32, #tpu.memory_space<vmem>>, vector<12x1xf32>
    %4 = vector.broadcast %3 : vector<12x1xf32> to vector<12x512xf32>
    %5 = arith.addf %2, %4 : vector<12x512xf32>
    %cst_5 = arith.constant 0.000000e+00 : f32
    %6 = vector.broadcast %cst_5 : f32 to vector<12x512xf32>
    %7 = arith.cmpf oge, %5, %6 : vector<12x512xf32>
    %c0_6 = arith.constant 0 : index
    %c0_7 = arith.constant 0 : index
    %8 = vector.load %arg4[%c0_6, %c0_7] : memref<12x1xf32, #tpu.memory_space<vmem>>, vector<12x1xf32>
    %9 = vector.broadcast %8 : vector<12x1xf32> to vector<12x512xf32>
    %10 = arith.mulf %9, %5 : vector<12x512xf32>
    %11 = arith.select %7, %5, %10 : vector<12x512xi1>, vector<12x512xf32>
    %c0_8 = arith.constant 0 : index
    %c0_9 = arith.constant 0 : index
    %12 = vector.load %arg5[%c0_8, %c0_9] : memref<12x512xf32, #tpu.memory_space<vmem>>, vector<12x512xf32>
    tpu.vector_store %arg5[%c0_8, %c0_9], %11 {strides = array<i32>} : memref<12x512xf32, #tpu.memory_space<vmem>>, vector<12x512xf32>,
    return
  }
  func.func @transform_0(%arg0: i32) -> (i32, i32) {
    %c0_i32 = arith.constant 0 : i32
    %c0_i32_0 = arith.constant 0 : i32
    %c0_i32_1 = arith.constant 0 : i32
    return %c0_i32, %c0_i32_0 : i32, i32
  }
  func.func @transform_1(%arg0: i32) -> (i32, i32) {
    %c0_i32 = arith.constant 0 : i32
    %c0_i32_0 = arith.constant 0 : i32
    return %c0_i32, %arg0 : i32, i32
  }
  func.func @transform_2(%arg0: i32) -> (i32, i32) {
    %c0_i32 = arith.constant 0 : i32
    %c0_i32_0 = arith.constant 0 : i32
    %c0_i32_1 = arith.constant 0 : i32
    return %c0_i32, %c0_i32_0 : i32, i32
  }
  func.func @transform_3(%arg0: i32) -> (i32, i32) {
    %c0_i32 = arith.constant 0 : i32
    %c0_i32_0 = arith.constant 0 : i32
    %c0_i32_1 = arith.constant 0 : i32
    return %c0_i32, %c0_i32_0 : i32, i32
  }
  func.func @transform_4(%arg0: i32) -> (i32, i32) {
    %c0_i32 = arith.constant 0 : i32
    %c0_i32_0 = arith.constant 0 : i32
    return %c0_i32, %arg0 : i32, i32
  }
}

module attributes {stable_mosaic.version = 11 : i64} {
  func.func @_gemm_bias_act_kernel(%arg0: i32, %arg1: memref<56x12xf32, #tpu.memory_space<vmem>>, %arg2: memref<12x512xf32, #tpu.memory_space<vmem>>, %arg3: memref<56x1xf32, #tpu.memory_space<vmem>>, %arg4: memref<56x1xf32, #tpu.memory_space<vmem>>, %arg5: memref<56x512xf32, #tpu.memory_space<vmem>>) attributes {dimension_semantics = [#tpu.dimension_semantics<parallel>], iteration_bounds = array<i64: 1>, scalar_prefetch = 0 : i64, scratch_operands = 0 : i64, tpu.core_type = #tpu.core_type<tc>, window_params = [{pipeline_mode = #tpu.pipeline_mode<synchronous>, transform_indices = @transform_0, window_bounds = array<i64: 56, 12>}, {transform_indices = @transform_1, window_bounds = array<i64: 12, 512>}, {pipeline_mode = #tpu.pipeline_mode<synchronous>, transform_indices = @transform_2, window_bounds = array<i64: 56, 1>}, {pipeline_mode = #tpu.pipeline_mode<synchronous>, transform_indices = @transform_3, window_bounds = array<i64: 56, 1>}, {transform_indices = @transform_4, window_bounds = array<i64: 56, 512>}]} {
    %c0 = arith.constant 0 : index
    %c0_0 = arith.constant 0 : index
    %0 = vector.load %arg1[%c0, %c0_0] : memref<56x12xf32, #tpu.memory_space<vmem>>, vector<56x12xf32>
    %c0_1 = arith.constant 0 : index
    %c0_2 = arith.constant 0 : index
    %1 = vector.load %arg2[%c0_1, %c0_2] : memref<12x512xf32, #tpu.memory_space<vmem>>, vector<12x512xf32>
    %cst = arith.constant dense<0.000000e+00> : vector<56x512xf32>
    %2 = tpu.matmul %0, %1, %cst {dimension_numbers = #tpu.dot_dimension_numbers<[1], [0], [0], [1], [0, 0, 1, 1], [], []>} : vector<56x12xf32>, vector<12x512xf32>, vector<56x512xf32> -> vector<56x512xf32>
    %c0_3 = arith.constant 0 : index
    %c0_4 = arith.constant 0 : index
    %3 = vector.load %arg3[%c0_3, %c0_4] : memref<56x1xf32, #tpu.memory_space<vmem>>, vector<56x1xf32>
    %4 = vector.broadcast %3 : vector<56x1xf32> to vector<56x512xf32>
    %5 = arith.addf %2, %4 : vector<56x512xf32>
    %cst_5 = arith.constant 0.000000e+00 : f32
    %6 = vector.broadcast %cst_5 : f32 to vector<56x512xf32>
    %7 = arith.cmpf oge, %5, %6 : vector<56x512xf32>
    %c0_6 = arith.constant 0 : index
    %c0_7 = arith.constant 0 : index
    %8 = vector.load %arg4[%c0_6, %c0_7] : memref<56x1xf32, #tpu.memory_space<vmem>>, vector<56x1xf32>
    %9 = vector.broadcast %8 : vector<56x1xf32> to vector<56x512xf32>
    %10 = arith.mulf %9, %5 : vector<56x512xf32>
    %11 = arith.select %7, %5, %10 : vector<56x512xi1>, vector<56x512xf32>
    %c0_8 = arith.constant 0 : index
    %c0_9 = arith.constant 0 : index
    %12 = vector.load %arg5[%c0_8, %c0_9] : memref<56x512xf32, #tpu.memory_space<vmem>>, vector<56x512xf32>
    tpu.vector_store %arg5[%c0_8, %c0_9], %11 {strides = array<i32>} : memref<56x512xf32, #tpu.memory_space<vmem>>, vector<56x512xf32>,
    return
  }
  func.func @transform_0(%arg0: i32) -> (i32, i32) {
    %c0_i32 = arith.constant 0 : i32
    %c0_i32_0 = arith.constant 0 : i32
    %c0_i32_1 = arith.constant 0 : i32
    return %c0_i32, %c0_i32_0 : i32, i32
  }
  func.func @transform_1(%arg0: i32) -> (i32, i32) {
    %c0_i32 = arith.constant 0 : i32
    %c0_i32_0 = arith.constant 0 : i32
    return %c0_i32, %arg0 : i32, i32
  }
  func.func @transform_2(%arg0: i32) -> (i32, i32) {
    %c0_i32 = arith.constant 0 : i32
    %c0_i32_0 = arith.constant 0 : i32
    %c0_i32_1 = arith.constant 0 : i32
    return %c0_i32, %c0_i32_0 : i32, i32
  }
  func.func @transform_3(%arg0: i32) -> (i32, i32) {
    %c0_i32 = arith.constant 0 : i32
    %c0_i32_0 = arith.constant 0 : i32
    %c0_i32_1 = arith.constant 0 : i32
    return %c0_i32, %c0_i32_0 : i32, i32
  }
  func.func @transform_4(%arg0: i32) -> (i32, i32) {
    %c0_i32 = arith.constant 0 : i32
    %c0_i32_0 = arith.constant 0 : i32
    return %c0_i32, %arg0 : i32, i32
  }
}

module attributes {stable_mosaic.version = 11 : i64} {
  func.func @_gemm_bias_act_kernel(%arg0: i32, %arg1: memref<12x1400xf32, #tpu.memory_space<vmem>>, %arg2: memref<1400x512xf32, #tpu.memory_space<vmem>>, %arg3: memref<12x1xf32, #tpu.memory_space<vmem>>, %arg4: memref<12x512xf32, #tpu.memory_space<vmem>>) attributes {dimension_semantics = [#tpu.dimension_semantics<parallel>], iteration_bounds = array<i64: 1>, scalar_prefetch = 0 : i64, scratch_operands = 0 : i64, tpu.core_type = #tpu.core_type<tc>, window_params = [{pipeline_mode = #tpu.pipeline_mode<synchronous>, transform_indices = @transform_0, window_bounds = array<i64: 12, 1400>}, {transform_indices = @transform_1, window_bounds = array<i64: 1400, 512>}, {pipeline_mode = #tpu.pipeline_mode<synchronous>, transform_indices = @transform_2, window_bounds = array<i64: 12, 1>}, {transform_indices = @transform_3, window_bounds = array<i64: 12, 512>}]} {
    %c0 = arith.constant 0 : index
    %c0_0 = arith.constant 0 : index
    %0 = vector.load %arg1[%c0, %c0_0] : memref<12x1400xf32, #tpu.memory_space<vmem>>, vector<12x1400xf32>
    %c0_1 = arith.constant 0 : index
    %c0_2 = arith.constant 0 : index
    %1 = vector.load %arg2[%c0_1, %c0_2] : memref<1400x512xf32, #tpu.memory_space<vmem>>, vector<1400x512xf32>
    %cst = arith.constant dense<0.000000e+00> : vector<12x512xf32>
    %2 = tpu.matmul %0, %1, %cst {dimension_numbers = #tpu.dot_dimension_numbers<[1], [0], [0], [1], [0, 0, 1, 1], [], []>} : vector<12x1400xf32>, vector<1400x512xf32>, vector<12x512xf32> -> vector<12x512xf32>
    %c0_3 = arith.constant 0 : index
    %c0_4 = arith.constant 0 : index
    %3 = vector.load %arg3[%c0_3, %c0_4] : memref<12x1xf32, #tpu.memory_space<vmem>>, vector<12x1xf32>
    %4 = vector.broadcast %3 : vector<12x1xf32> to vector<12x512xf32>
    %5 = arith.addf %2, %4 : vector<12x512xf32>
    %cst_5 = arith.constant 0.000000e+00 : f32
    %6 = vector.broadcast %cst_5 : f32 to vector<12x512xf32>
    %7 = arith.subf %6, %5 : vector<12x512xf32>
    %8 = math.exp %7 : vector<12x512xf32>
    %cst_6 = arith.constant 1.000000e+00 : f32
    %9 = vector.broadcast %cst_6 : f32 to vector<12x512xf32>
    %10 = arith.addf %9, %8 : vector<12x512xf32>
    %11 = tpu.reciprocal %10 {approx = true} : vector<12x512xf32> -> vector<12x512xf32>
    %c0_7 = arith.constant 0 : index
    %c0_8 = arith.constant 0 : index
    %12 = vector.load %arg4[%c0_7, %c0_8] : memref<12x512xf32, #tpu.memory_space<vmem>>, vector<12x512xf32>
    tpu.vector_store %arg4[%c0_7, %c0_8], %11 {strides = array<i32>} : memref<12x512xf32, #tpu.memory_space<vmem>>, vector<12x512xf32>,
    return
  }
  func.func @transform_0(%arg0: i32) -> (i32, i32) {
    %c0_i32 = arith.constant 0 : i32
    %c0_i32_0 = arith.constant 0 : i32
    %c0_i32_1 = arith.constant 0 : i32
    return %c0_i32, %c0_i32_0 : i32, i32
  }
  func.func @transform_1(%arg0: i32) -> (i32, i32) {
    %c0_i32 = arith.constant 0 : i32
    %c0_i32_0 = arith.constant 0 : i32
    return %c0_i32, %arg0 : i32, i32
  }
  func.func @transform_2(%arg0: i32) -> (i32, i32) {
    %c0_i32 = arith.constant 0 : i32
    %c0_i32_0 = arith.constant 0 : i32
    %c0_i32_1 = arith.constant 0 : i32
    return %c0_i32, %c0_i32_0 : i32, i32
  }
  func.func @transform_3(%arg0: i32) -> (i32, i32) {
    %c0_i32 = arith.constant 0 : i32
    %c0_i32_0 = arith.constant 0 : i32
    return %c0_i32, %arg0 : i32, i32
  }
}

</mosaic_0001>

<llo_original>
// kernel: tile.8
$region0: #{tile.8}
  #allocation2 [shape = 's32[1]{0}', space=sflag, size = 0x4, scoped, tag = 'scoped memory for tile.8']
  %s0 = inlined_call_operand.hbm [shape: f32[3], index: 0, kind: input, shape index: {}]
  %s1 = inlined_call_operand.vmem [shape: f32[4,3], index: 1, kind: output, shape index: {}]
  $region1: #{tile.8} parent=0
    #allocation0 [shape = 'u8[512]{0}', space=vmem, size = 0x400, scoped, tag = 'operand span for operand 0']
    #allocation1 [shape = 's32[1]{0}', space=sflag, size = 0x4, scoped, tag = 'scoped memory for tile.8']
    %2 = vsyncpa [#allocation1], 0
    // Predicated region
    $region2: #{tile.8} parent=1 // pred_check
      _
    $region3: #{tile.8} parent=1 // pred_check_branch
      %4 = sbr.rel (0) target = $region5
    $region4: #{tile.8} parent=1 // pred_region
      %s6 = ssub.s32 16, 16
      %7 = vsyncadd [#allocation1], %s6
      %s9 = sshll.u32 [#allocation0], 4
      %s10 = int_to_ptr.vmem [resolvable:$true] %s9
      %12 = dma.hbm_to_vmem [thread:$0]  %s0, 16, %s10, [#allocation1]
    $region5: #{tile.8} parent=1 // pred_fallthru
      _
    // Predicated region
    $region6: #{tile.8} parent=1 // pred_check
      _
    $region7: #{tile.8} parent=1 // pred_check_branch
      %14 = sbr.rel (0) target = $region9
    $region8: #{tile.8} parent=1 // pred_region
      %15 = dma.done [#allocation1], 16
    $region9: #{tile.8} parent=1 // pred_fallthru
      _
    %v16 = vld [vmem:[#allocation0] ss:$0 sm:$0xff]
    %17 = vst [vmem:[%s1] sm:$0xf] %v16
    %18 = vsyncpa [#allocation1], 1

// kernel: tile.0
$region0: #{tile.0}
  %s0 = inlined_call_operand.vmem [shape: f32[4,3], index: 0, kind: input, shape index: {}]
  %s1 = inlined_call_operand.vmem [shape: f32[12,1], index: 1, kind: output, shape index: {}]
  $region1: #{tile.0} parent=0
    #allocation0 [shape = 'u8[4096]{0}', space=vmem, size = 0x1000, scoped, tag = 'scoped mem for input reshape']
    %s3 = sshll.u32 1, 4
    %s4 = ssub.s32 %s3, 1
    %v5 = vld [vmem:[%s0] sm:%s4]
    %6 = vst [vmem:[#allocation0] sm:%s4] %v5
    %v7 = vld [vmem:[#allocation0] sm:$0xf]
    %vm8 = vcmask 7168
    %9 = vst.msk [vmem:[%s1] ss:$3 sm:$0xf] %vm8, %v7
    %v10 = vld [vmem:[#allocation0] sm:$0xf]
    %11 = vrot.lane.b32.xlu0 %v10, 127
    %v12 = vpop.permute.xlu0 %11
    %vm13 = vcmask 7168
    %s14 = scalar_lea.vmem %s1, 1
    %15 = vst.msk [vmem:[%s14] ss:$3 sm:$0xf] %vm13, %v12
    %v16 = vld [vmem:[#allocation0] sm:$0xf]
    %17 = vrot.lane.b32.xlu0 %v16, 126
    %v18 = vpop.permute.xlu0 %17
    %vm19 = vcmask 7168
    %s20 = scalar_lea.vmem %s1, 2
    %21 = vst.msk [vmem:[%s20] ss:$3 sm:$0xf] %vm19, %v18

// kernel: fsrcnn_forward.9
$region0: #{fsrcnn_forward.9}
  #allocation0 [shape = 'u32[]', space=smem, size = 0x4, offset = 0x4, fixed_abs, tag = 'smem constant byte address 0x4 - core index']
  #allocation1 [shape = 'u32[144,128]{1,0:T(1,128)}', space=vmem, size = 0x12000, scoped, tag = 'internal scratch']
  %s0 = inlined_call_operand.vmem [shape: f32[12,56], index: 0, kind: input, shape index: {}]
  %s1 = inlined_call_operand.vmem [shape: f32[56,512], index: 1, kind: input, shape index: {}]
  %s2 = inlined_call_operand.vmem [shape: f32[12,1], index: 2, kind: input, shape index: {}]
  %s3 = inlined_call_operand.vmem [shape: f32[12,1], index: 3, kind: input, shape index: {}]
  %s4 = inlined_call_operand.vmem [shape: f32[12,512], index: 4, kind: output, shape index: {}]
  %s5 = sld [smem:[#allocation0]]
  $region26: #{fsrcnn_forward.9} parent=0
    _
  %s7 = ssub.s32 1, %s5
  %s8 = scalar_select 0, %s7, %s5
  // Predicated region
  $region2: #{fsrcnn_forward.9} parent=0 // pred_check
    _
  $region3: #{fsrcnn_forward.9} parent=0 // pred_check_branch
    %10 = sbr.rel (0) target = $region5
  $region4: #{fsrcnn_forward.9} parent=0 // pred_region
    _
  $region5: #{fsrcnn_forward.9} parent=0 // pred_fallthru
    _
  // Predicated region
  $region6: #{fsrcnn_forward.9} parent=0 // pred_check
    _
  $region7: #{fsrcnn_forward.9} parent=0 // pred_check_branch
    %12 = sbr.rel (0) target = $region9
  $region8: #{fsrcnn_forward.9} parent=0 // pred_region
    _
  $region9: #{fsrcnn_forward.9} parent=0 // pred_fallthru
    _
  // Predicated region
  $region10: #{fsrcnn_forward.9} parent=0 // pred_check
    _
  $region11: #{fsrcnn_forward.9} parent=0 // pred_check_branch
    %14 = sbr.rel (0) target = $region13
  $region12: #{fsrcnn_forward.9} parent=0 // pred_region
    _
  $region13: #{fsrcnn_forward.9} parent=0 // pred_fallthru
    _
  // Predicated region
  $region14: #{fsrcnn_forward.9} parent=0 // pred_check
    _
  $region15: #{fsrcnn_forward.9} parent=0 // pred_check_branch
    %16 = sbr.rel (0) target = $region17
  $region16: #{fsrcnn_forward.9} parent=0 // pred_region
    _
  $region17: #{fsrcnn_forward.9} parent=0 // pred_fallthru
    _
  %v17 = vld [vmem:[%s0] sm:$0xff]
  %v18 = vld [vmem:[%s0 + $0x8] sm:$0xf]
  %v19 = vld [vmem:[%s1] sm:$0xff]
  %v20 = vld [vmem:[%s1 + $0x8] sm:$0xff]
  %v21 = vld [vmem:[%s1 + $0x10] sm:$0xff]
  %v22 = vld [vmem:[%s1 + $0x18] sm:$0xff]
  %v23 = vld [vmem:[%s1 + $0x20] sm:$0xff]
  %v24 = vld [vmem:[%s1 + $0x28] sm:$0xff]
  %v25 = vld [vmem:[%s1 + $0x30] sm:$0xff]
  %v26 = vld [vmem:[%s1 + $0x38] sm:$0xff]
  %v27 = vld [vmem:[%s1 + $0x40] sm:$0xff]
  %v28 = vld [vmem:[%s1 + $0x48] sm:$0xff]
  %v29 = vld [vmem:[%s1 + $0x50] sm:$0xff]
  %v30 = vld [vmem:[%s1 + $0x58] sm:$0xff]
  %v31 = vld [vmem:[%s1 + $0x60] sm:$0xff]
  %v32 = vld [vmem:[%s1 + $0x68] sm:$0xff]
  %v33 = vld [vmem:[%s1 + $0x70] sm:$0xff]
  %v34 = vld [vmem:[%s1 + $0x78] sm:$0xff]
  %v35 = vld [vmem:[%s1 + $0x80] sm:$0xff]
  %v36 = vld [vmem:[%s1 + $0x88] sm:$0xff]
  %v37 = vld [vmem:[%s1 + $0x90] sm:$0xff]
  %v38 = vld [vmem:[%s1 + $0x98] sm:$0xff]
  %v39 = vld [vmem:[%s1 + $0xa0] sm:$0xff]
  %v40 = vld [vmem:[%s1 + $0xa8] sm:$0xff]
  %v41 = vld [vmem:[%s1 + $0xb0] sm:$0xff]
  %v42 = vld [vmem:[%s1 + $0xb8] sm:$0xff]
  %v43 = vld [vmem:[%s1 + $0xc0] sm:$0xff]
  %v44 = vld [vmem:[%s1 + $0xc8] sm:$0xff]
  %v45 = vld [vmem:[%s1 + $0xd0] sm:$0xff]
  %v46 = vld [vmem:[%s1 + $0xd8] sm:$0xff]
  %v47 = vld [vmem:[%s2] sm:$0xff]
  %v48 = vld [vmem:[%s2 + $0x8] sm:$0xf]
  %50 = vset.pattern.permute.xlu0 0
  %51 = vperm.xlu0 %50, %v47
  %v52 = vpop.permute.xlu0 %51
  %55 = vset.pattern.permute.xlu0 0
  %56 = vperm.xlu0 %55, %v48
  %v57 = vpop.permute.xlu0 %56
  %vm59 = vcmask 457728
  %v61 = vsel %vm59, %v17, 0
  %v64 = vsel %vm59, %v18, 0
  %66 = vmatprep.subr.mxu0 0.0
  %67 = vmatpush1.msra.mxu0 0.0
  %68 = vmatprep.subr.mxu0 0.0
  %69 = vmatpush1.msra.mxu0 0.0
  %70 = vmatprep.subr.mxu0 0.0
  %71 = vmatpush1.msra.mxu0 0.0
  %72 = vmatprep.subr.mxu0 0.0
  %73 = vmatpush1.msra.mxu0 0.0
  %74 = vmatprep.subr.mxu0 0.0
  %75 = vmatpush1.msra.mxu0 0.0
  %76 = vmatprep.subr.mxu0 0.0
  %77 = vmatpush1.msra.mxu0 0.0
  %78 = vmatprep.subr.mxu0 0.0
  %79 = vmatpush1.msra.mxu0 0.0
  %80 = vmatprep.subr.mxu0 0.0
  %81 = vmatpush1.msra.mxu0 0.0
  %82 = vmatprep.subr.mxu0 0.0
  %83 = vmatpush1.msra.mxu0 0.0
  %84 = vmatprep.subr.mxu0 %v44
  %85 = vmatpush1.msra.mxu0 %v43
  %86 = vmatprep.subr.mxu0 %v40
  %87 = vmatpush1.msra.mxu0 %v39
  %88 = vmatprep.subr.mxu0 %v36
  %89 = vmatpush1.msra.mxu0 %v35
  %90 = vmatprep.subr.mxu0 %v32
  %91 = vmatpush1.msra.mxu0 %v31
  %92 = vmatprep.subr.mxu0 %v28
  %93 = vmatpush1.msra.mxu0 %v27
  %94 = vmatprep.subr.mxu0 %v24
  %95 = vmatpush1.msra.mxu0 %v23
  %96 = vmatprep.subr.mxu0 %v20
  %97 = vmatpush1.msra.mxu0 %v19
  %98 = vmatprep.subr.mxu0 0.0
  %99 = vmatpush2.msra.mxu0 0.0
  %100 = vmatprep.subr.mxu0 0.0
  %101 = vmatpush2.msra.mxu0 0.0
  %102 = vmatprep.subr.mxu0 0.0
  %103 = vmatpush2.msra.mxu0 0.0
  %104 = vmatprep.subr.mxu0 0.0
  %105 = vmatpush2.msra.mxu0 0.0
  %106 = vmatprep.subr.mxu0 0.0
  %107 = vmatpush2.msra.mxu0 0.0
  %108 = vmatprep.subr.mxu0 0.0
  %109 = vmatpush2.msra.mxu0 0.0
  %110 = vmatprep.subr.mxu0 0.0
  %111 = vmatpush2.msra.mxu0 0.0
  %112 = vmatprep.subr.mxu0 0.0
  %113 = vmatpush2.msra.mxu0 0.0
  %114 = vmatprep.subr.mxu0 0.0
  %115 = vmatpush2.msra.mxu0 0.0
  %116 = vmatprep.subr.mxu0 0.0
  %117 = vmatpush2.msra.mxu0 0.0
  %118 = vmatprep.subr.mxu0 0.0
  %119 = vmatpush2.msra.mxu0 0.0
  %120 = vmatprep.subr.mxu0 0.0
  %121 = vmatpush2.msra.mxu0 0.0
  %122 = vmatprep.subr.mxu0 0.0
  %123 = vmatpush2.msra.mxu0 0.0
  %124 = vmatprep.subr.mxu0 0.0
  %125 = vmatpush2.msra.mxu0 0.0
  %126 = vmatprep.subr.mxu0 0.0
  %127 = vmatpush2.msra.mxu0 0.0
  %128 = vmatprep.subr.mxu0 0.0
  %129 = vmatpush2.msra.mxu0 0.0
  %130 = vmatprep.mubr.f32.mxu0 0.0
  %131 = vmatmul.mubr.f32.gmra.mxu0 %v61
  %v132 = vpop.f32.mrf.mxu0
  %v133 = vadd.f32 %v52, %v132
  %v134 = vpop.f32.mrf.mxu0
  %v135 = vadd.f32 %v52, %v134
  %136 = vmatprep.mubr.f32.mxu0 0.0
  %137 = vmatmul.mubr.f32.gmra.mxu0 %v64
  %v138 = vpop.f32.mrf.mxu0
  %v139 = vadd.f32 %v57, %v138
  %v140 = vpop.f32.mrf.mxu0
  %v141 = vadd.f32 %v57, %v140
  %142 = vdwg.mxu0
  %143 = vmatprep.subr.mxu0 0.0
  %144 = vmatpush1.msra.mxu0 0.0
  %145 = vmatprep.subr.mxu0 0.0
  %146 = vmatpush1.msra.mxu0 0.0
  %147 = vmatprep.subr.mxu0 0.0
  %148 = vmatpush1.msra.mxu0 0.0
  %149 = vmatprep.subr.mxu0 0.0
  %150 = vmatpush1.msra.mxu0 0.0
  %151 = vmatprep.subr.mxu0 0.0
  %152 = vmatpush1.msra.mxu0 0.0
  %153 = vmatprep.subr.mxu0 0.0
  %154 = vmatpush1.msra.mxu0 0.0
  %155 = vmatprep.subr.mxu0 0.0
  %156 = vmatpush1.msra.mxu0 0.0
  %157 = vmatprep.subr.mxu0 0.0
  %158 = vmatpush1.msra.mxu0 0.0
  %159 = vmatprep.subr.mxu0 0.0
  %160 = vmatpush1.msra.mxu0 0.0
  %161 = vmatprep.subr.mxu0 %v46
  %162 = vmatpush1.msra.mxu0 %v45
  %163 = vmatprep.subr.mxu0 %v42
  %164 = vmatpush1.msra.mxu0 %v41
  %165 = vmatprep.subr.mxu0 %v38
  %166 = vmatpush1.msra.mxu0 %v37
  %167 = vmatprep.subr.mxu0 %v34
  %168 = vmatpush1.msra.mxu0 %v33
  %169 = vmatprep.subr.mxu0 %v30
  %170 = vmatpush1.msra.mxu0 %v29
  %171 = vmatprep.subr.mxu0 %v26
  %172 = vmatpush1.msra.mxu0 %v25
  %173 = vmatprep.subr.mxu0 %v22
  %174 = vmatpush1.msra.mxu0 %v21
  %175 = vmatprep.subr.mxu0 0.0
  %176 = vmatpush2.msra.mxu0 0.0
  %177 = vmatprep.subr.mxu0 0.0
  %178 = vmatpush2.msra.mxu0 0.0
  %179 = vmatprep.subr.mxu0 0.0
  %180 = vmatpush2.msra.mxu0 0.0
  %181 = vmatprep.subr.mxu0 0.0
  %182 = vmatpush2.msra.mxu0 0.0
  %183 = vmatprep.subr.mxu0 0.0
  %184 = vmatpush2.msra.mxu0 0.0
  %185 = vmatprep.subr.mxu0 0.0
  %186 = vmatpush2.msra.mxu0 0.0
  %187 = vmatprep.subr.mxu0 0.0
  %188 = vmatpush2.msra.mxu0 0.0
  %189 = vmatprep.subr.mxu0 0.0
  %190 = vmatpush2.msra.mxu0 0.0
  %191 = vmatprep.subr.mxu0 0.0
  %192 = vmatpush2.msra.mxu0 0.0
  %193 = vmatprep.subr.mxu0 0.0
  %194 = vmatpush2.msra.mxu0 0.0
  %195 = vmatprep.subr.mxu0 0.0
  %196 = vmatpush2.msra.mxu0 0.0
  %197 = vmatprep.subr.mxu0 0.0
  %198 = vmatpush2.msra.mxu0 0.0
  %199 = vmatprep.subr.mxu0 0.0
  %200 = vmatpush2.msra.mxu0 0.0
  %201 = vmatprep.subr.mxu0 0.0
  %202 = vmatpush2.msra.mxu0 0.0
  %203 = vmatprep.subr.mxu0 0.0
  %204 = vmatpush2.msra.mxu0 0.0
  %205 = vmatprep.subr.mxu0 0.0
  %206 = vmatpush2.msra.mxu0 0.0
  %207 = vmatprep.mubr.f32.mxu0 0.0
  %208 = vmatmul.mubr.f32.gmra.mxu0 %v61
  %v209 = vpop.f32.mrf.mxu0
  %v210 = vadd.f32 %v52, %v209
  %v211 = vpop.f32.mrf.mxu0
  %v212 = vadd.f32 %v52, %v211
  %213 = vmatprep.mubr.f32.mxu0 0.0
  %214 = vmatmul.mubr.f32.gmra.mxu0 %v64
  %v215 = vpop.f32.mrf.mxu0
  %v216 = vadd.f32 %v57, %v215
  %v217 = vpop.f32.mrf.mxu0
  %v218 = vadd.f32 %v57, %v217
  %219 = vdwg.mxu0
  %vm220 = vcmp.ge.f32.partialorder %v133, 0.0
  %vm221 = vcmp.ge.f32.partialorder %v135, 0.0
  %vm222 = vcmp.ge.f32.partialorder %v210, 0.0
  %vm223 = vcmp.ge.f32.partialorder %v212, 0.0
  %vm224 = vcmp.ge.f32.partialorder %v139, 0.0
  %vm225 = vcmp.ge.f32.partialorder %v141, 0.0
  %vm226 = vcmp.ge.f32.partialorder %v216, 0.0
  %vm227 = vcmp.ge.f32.partialorder %v218, 0.0
  %v228 = vld [vmem:[%s3] sm:$0xff]
  %v229 = vld [vmem:[%s3 + $0x8] sm:$0xf]
  %231 = vset.pattern.permute.xlu0 0
  %232 = vperm.xlu0 %231, %v228
  %v233 = vpop.permute.xlu0 %232
  %236 = vset.pattern.permute.xlu0 0
  %237 = vperm.xlu0 %236, %v229
  %v238 = vpop.permute.xlu0 %237
  %v240 = vmul.f32 %v233, %v133
  %v241 = vmul.f32 %v233, %v135
  %v242 = vmul.f32 %v233, %v210
  %v243 = vmul.f32 %v233, %v212
  %v244 = vmul.f32 %v238, %v139
  %v245 = vmul.f32 %v238, %v141
  %v246 = vmul.f32 %v238, %v216
  %v247 = vmul.f32 %v238, %v218
  %v248 = vsel %vm220, %v133, %v240
  %v249 = vsel %vm221, %v135, %v241
  %v250 = vsel %vm222, %v210, %v242
  %v251 = vsel %vm223, %v212, %v243
  %v252 = vsel %vm224, %v139, %v244
  %v253 = vsel %vm225, %v141, %v245
  %v254 = vsel %vm226, %v216, %v246
  %v255 = vsel %vm227, %v218, %v247
  %256 = vst [vmem:[%s4] sm:$0xff] %v248
  %257 = vst [vmem:[%s4 + $0x8] sm:$0xff] %v249
  %258 = vst [vmem:[%s4 + $0x10] sm:$0xff] %v250
  %259 = vst [vmem:[%s4 + $0x18] sm:$0xff] %v251
  %260 = vst [vmem:[%s4 + $0x20] sm:$0xf] %v252
  %261 = vst [vmem:[%s4 + $0x28] sm:$0xf] %v253
  %262 = vst [vmem:[%s4 + $0x30] sm:$0xf] %v254
  %263 = vst [vmem:[%s4 + $0x38] sm:$0xf] %v255
  // Predicated region
  $region18: #{fsrcnn_forward.9} parent=0 // pred_check
    _
  $region19: #{fsrcnn_forward.9} parent=0 // pred_check_branch
    %265 = sbr.rel (0) target = $region21
  $region20: #{fsrcnn_forward.9} parent=0 // pred_region
    _
  $region21: #{fsrcnn_forward.9} parent=0 // pred_fallthru
    _
  // Predicated region
  $region22: #{fsrcnn_forward.9} parent=0 // pred_check
    _
  $region23: #{fsrcnn_forward.9} parent=0 // pred_check_branch
    %267 = sbr.rel (0) target = $region25
  $region24: #{fsrcnn_forward.9} parent=0 // pred_region
    _
  $region25: #{fsrcnn_forward.9} parent=0 // pred_fallthru
    _

// kernel: fsrcnn_forward.8
$region0: #{fsrcnn_forward.8}
  #allocation0 [shape = 'u32[]', space=smem, size = 0x4, offset = 0x4, fixed_abs, tag = 'smem constant byte address 0x4 - core index']
  #allocation1 [shape = 'u32[144,128]{1,0:T(1,128)}', space=vmem, size = 0x12000, scoped, tag = 'internal scratch']
  %s0 = inlined_call_operand.vmem [shape: f32[56,75], index: 0, kind: input, shape index: {}]
  %s1 = inlined_call_operand.vmem [shape: f32[75,512], index: 1, kind: input, shape index: {}]
  %s2 = inlined_call_operand.vmem [shape: f32[56,1], index: 2, kind: input, shape index: {}]
  %s3 = inlined_call_operand.vmem [shape: f32[56,1], index: 3, kind: input, shape index: {}]
  %s4 = inlined_call_operand.vmem [shape: f32[56,512], index: 4, kind: output, shape index: {}]
  %s5 = sld [smem:[#allocation0]]
  $region26: #{fsrcnn_forward.8} parent=0
    _
  %s7 = ssub.s32 1, %s5
  %s8 = scalar_select 0, %s7, %s5
  // Predicated region
  $region2: #{fsrcnn_forward.8} parent=0 // pred_check
    _
  $region3: #{fsrcnn_forward.8} parent=0 // pred_check_branch
    %10 = sbr.rel (0) target = $region5
  $region4: #{fsrcnn_forward.8} parent=0 // pred_region
    _
  $region5: #{fsrcnn_forward.8} parent=0 // pred_fallthru
    _
  // Predicated region
  $region6: #{fsrcnn_forward.8} parent=0 // pred_check
    _
  $region7: #{fsrcnn_forward.8} parent=0 // pred_check_branch
    %12 = sbr.rel (0) target = $region9
  $region8: #{fsrcnn_forward.8} parent=0 // pred_region
    _
  $region9: #{fsrcnn_forward.8} parent=0 // pred_fallthru
    _
  // Predicated region
  $region10: #{fsrcnn_forward.8} parent=0 // pred_check
    _
  $region11: #{fsrcnn_forward.8} parent=0 // pred_check_branch
    %14 = sbr.rel (0) target = $region13
  $region12: #{fsrcnn_forward.8} parent=0 // pred_region
    _
  $region13: #{fsrcnn_forward.8} parent=0 // pred_fallthru
    _
  // Predicated region
  $region14: #{fsrcnn_forward.8} parent=0 // pred_check
    _
  $region15: #{fsrcnn_forward.8} parent=0 // pred_check_branch
    %16 = sbr.rel (0) target = $region17
  $region16: #{fsrcnn_forward.8} parent=0 // pred_region
    _
  $region17: #{fsrcnn_forward.8} parent=0 // pred_fallthru
    _
  %v17 = vld [vmem:[%s0] sm:$0xff]
  %v18 = vld [vmem:[%s0 + $0x8] sm:$0xff]
  %v19 = vld [vmem:[%s0 + $0x10] sm:$0xff]
  %v20 = vld [vmem:[%s0 + $0x18] sm:$0xff]
  %v21 = vld [vmem:[%s0 + $0x20] sm:$0xff]
  %v22 = vld [vmem:[%s0 + $0x28] sm:$0xff]
  %v23 = vld [vmem:[%s0 + $0x30] sm:$0xff]
  %v24 = vld [vmem:[%s1] sm:$0xff]
  %v25 = vld [vmem:[%s1 + $0x8] sm:$0xff]
  %v26 = vld [vmem:[%s1 + $0x10] sm:$0xff]
  %v27 = vld [vmem:[%s1 + $0x18] sm:$0xff]
  %v28 = vld [vmem:[%s1 + $0x20] sm:$0xff]
  %v29 = vld [vmem:[%s1 + $0x28] sm:$0xff]
  %v30 = vld [vmem:[%s1 + $0x30] sm:$0xff]
  %v31 = vld [vmem:[%s1 + $0x38] sm:$0xff]
  %v32 = vld [vmem:[%s1 + $0x40] sm:$0xff]
  %v33 = vld [vmem:[%s1 + $0x48] sm:$0xff]
  %v34 = vld [vmem:[%s1 + $0x50] sm:$0xff]
  %v35 = vld [vmem:[%s1 + $0x58] sm:$0xff]
  %v36 = vld [vmem:[%s1 + $0x60] sm:$0xff]
  %v37 = vld [vmem:[%s1 + $0x68] sm:$0xff]
  %v38 = vld [vmem:[%s1 + $0x70] sm:$0xff]
  %v39 = vld [vmem:[%s1 + $0x78] sm:$0xff]
  %v40 = vld [vmem:[%s1 + $0x80] sm:$0xff]
  %v41 = vld [vmem:[%s1 + $0x88] sm:$0xff]
  %v42 = vld [vmem:[%s1 + $0x90] sm:$0xff]
  %v43 = vld [vmem:[%s1 + $0x98] sm:$0xff]
  %v44 = vld [vmem:[%s1 + $0xa0] sm:$0xff]
  %v45 = vld [vmem:[%s1 + $0xa8] sm:$0xff]
  %v46 = vld [vmem:[%s1 + $0xb0] sm:$0xff]
  %v47 = vld [vmem:[%s1 + $0xb8] sm:$0xff]
  %v48 = vld [vmem:[%s1 + $0xc0] sm:$0xff]
  %v49 = vld [vmem:[%s1 + $0xc8] sm:$0xff]
  %v50 = vld [vmem:[%s1 + $0xd0] sm:$0xff]
  %v51 = vld [vmem:[%s1 + $0xd8] sm:$0xff]
  %v52 = vld [vmem:[%s1 + $0xe0] sm:$0xff]
  %v53 = vld [vmem:[%s1 + $0xe8] sm:$0xff]
  %v54 = vld [vmem:[%s1 + $0xf0] sm:$0xff]
  %v55 = vld [vmem:[%s1 + $0xf8] sm:$0xff]
  %v56 = vld [vmem:[%s1 + $0x100] sm:$0xff]
  %v57 = vld [vmem:[%s1 + $0x108] sm:$0xff]
  %v58 = vld [vmem:[%s1 + $0x110] sm:$0xff]
  %v59 = vld [vmem:[%s1 + $0x118] sm:$0xff]
  %v60 = vld [vmem:[%s1 + $0x120] sm:$0x7]
  %v61 = vld [vmem:[%s1 + $0x128] sm:$0x7]
  %v62 = vld [vmem:[%s1 + $0x130] sm:$0x7]
  %v63 = vld [vmem:[%s1 + $0x138] sm:$0x7]
  %v64 = vld [vmem:[%s2] sm:$0xff]
  %v65 = vld [vmem:[%s2 + $0x8] sm:$0xff]
  %v66 = vld [vmem:[%s2 + $0x10] sm:$0xff]
  %v67 = vld [vmem:[%s2 + $0x18] sm:$0xff]
  %v68 = vld [vmem:[%s2 + $0x20] sm:$0xff]
  %v69 = vld [vmem:[%s2 + $0x28] sm:$0xff]
  %v70 = vld [vmem:[%s2 + $0x30] sm:$0xff]
  %72 = vset.pattern.permute.xlu0 0
  %73 = vperm.xlu0 %72, %v64
  %v74 = vpop.permute.xlu0 %73
  %77 = vset.pattern.permute.xlu0 0
  %78 = vperm.xlu0 %77, %v65
  %v79 = vpop.permute.xlu0 %78
  %82 = vset.pattern.permute.xlu0 0
  %83 = vperm.xlu0 %82, %v66
  %v84 = vpop.permute.xlu0 %83
  %87 = vset.pattern.permute.xlu0 0
  %88 = vperm.xlu0 %87, %v67
  %v89 = vpop.permute.xlu0 %88
  %92 = vset.pattern.permute.xlu0 0
  %93 = vperm.xlu0 %92, %v68
  %v94 = vpop.permute.xlu0 %93
  %97 = vset.pattern.permute.xlu0 0
  %98 = vperm.xlu0 %97, %v69
  %v99 = vpop.permute.xlu0 %98
  %102 = vset.pattern.permute.xlu0 0
  %103 = vperm.xlu0 %102, %v70
  %v104 = vpop.permute.xlu0 %103
  %vm106 = vcmask 613376
  %v108 = vsel %vm106, %v17, 0
  %v111 = vsel %vm106, %v18, 0
  %v114 = vsel %vm106, %v19, 0
  %v117 = vsel %vm106, %v20, 0
  %v120 = vsel %vm106, %v21, 0
  %v123 = vsel %vm106, %v22, 0
  %v126 = vsel %vm106, %v23, 0
  %vm128 = vcmask 1042432
  %v130 = vsel %vm128, %v60, 0
  %v133 = vsel %vm128, %v61, 0
  %v136 = vsel %vm128, %v62, 0
  %v139 = vsel %vm128, %v63, 0
  %141 = vmatprep.subr.mxu0 0.0
  %142 = vmatpush1.msra.mxu0 0.0
  %143 = vmatprep.subr.mxu0 0.0
  %144 = vmatpush1.msra.mxu0 0.0
  %145 = vmatprep.subr.mxu0 0.0
  %146 = vmatpush1.msra.mxu0 0.0
  %147 = vmatprep.subr.mxu0 0.0
  %148 = vmatpush1.msra.mxu0 0.0
  %149 = vmatprep.subr.mxu0 0.0
  %150 = vmatpush1.msra.mxu0 0.0
  %151 = vmatprep.subr.mxu0 0.0
  %152 = vmatpush1.msra.mxu0 0.0
  %153 = vmatprep.subr.mxu0 %v133
  %154 = vmatpush1.msra.mxu0 %v130
  %155 = vmatprep.subr.mxu0 %v57
  %156 = vmatpush1.msra.mxu0 %v56
  %157 = vmatprep.subr.mxu0 %v53
  %158 = vmatpush1.msra.mxu0 %v52
  %159 = vmatprep.subr.mxu0 %v49
  %160 = vmatpush1.msra.mxu0 %v48
  %161 = vmatprep.subr.mxu0 %v45
  %162 = vmatpush1.msra.mxu0 %v44
  %163 = vmatprep.subr.mxu0 %v41
  %164 = vmatpush1.msra.mxu0 %v40
  %165 = vmatprep.subr.mxu0 %v37
  %166 = vmatpush1.msra.mxu0 %v36
  %167 = vmatprep.subr.mxu0 %v33
  %168 = vmatpush1.msra.mxu0 %v32
  %169 = vmatprep.subr.mxu0 %v29
  %170 = vmatpush1.msra.mxu0 %v28
  %171 = vmatprep.subr.mxu0 %v25
  %172 = vmatpush1.msra.mxu0 %v24
  %173 = vmatprep.subr.mxu0 0.0
  %174 = vmatpush2.msra.mxu0 0.0
  %175 = vmatprep.subr.mxu0 0.0
  %176 = vmatpush2.msra.mxu0 0.0
  %177 = vmatprep.subr.mxu0 0.0
  %178 = vmatpush2.msra.mxu0 0.0
  %179 = vmatprep.subr.mxu0 0.0
  %180 = vmatpush2.msra.mxu0 0.0
  %181 = vmatprep.subr.mxu0 0.0
  %182 = vmatpush2.msra.mxu0 0.0
  %183 = vmatprep.subr.mxu0 0.0
  %184 = vmatpush2.msra.mxu0 0.0
  %185 = vmatprep.subr.mxu0 0.0
  %186 = vmatpush2.msra.mxu0 0.0
  %187 = vmatprep.subr.mxu0 0.0
  %188 = vmatpush2.msra.mxu0 0.0
  %189 = vmatprep.subr.mxu0 0.0
  %190 = vmatpush2.msra.mxu0 0.0
  %191 = vmatprep.subr.mxu0 0.0
  %192 = vmatpush2.msra.mxu0 0.0
  %193 = vmatprep.subr.mxu0 0.0
  %194 = vmatpush2.msra.mxu0 0.0
  %195 = vmatprep.subr.mxu0 0.0
  %196 = vmatpush2.msra.mxu0 0.0
  %197 = vmatprep.subr.mxu0 0.0
  %198 = vmatpush2.msra.mxu0 0.0
  %199 = vmatprep.subr.mxu0 0.0
  %200 = vmatpush2.msra.mxu0 0.0
  %201 = vmatprep.subr.mxu0 0.0
  %202 = vmatpush2.msra.mxu0 0.0
  %203 = vmatprep.subr.mxu0 0.0
  %204 = vmatpush2.msra.mxu0 0.0
  %205 = vmatprep.mubr.f32.mxu0 0.0
  %206 = vmatmul.mubr.f32.gmra.mxu0 %v108
  %v207 = vpop.f32.mrf.mxu0
  %v208 = vadd.f32 %v74, %v207
  %v209 = vpop.f32.mrf.mxu0
  %v210 = vadd.f32 %v74, %v209
  %211 = vmatprep.mubr.f32.mxu0 0.0
  %212 = vmatmul.mubr.f32.gmra.mxu0 %v111
  %v213 = vpop.f32.mrf.mxu0
  %v214 = vadd.f32 %v79, %v213
  %v215 = vpop.f32.mrf.mxu0
  %v216 = vadd.f32 %v79, %v215
  %217 = vmatprep.mubr.f32.mxu0 0.0
  %218 = vmatmul.mubr.f32.gmra.mxu0 %v114
  %v219 = vpop.f32.mrf.mxu0
  %v220 = vadd.f32 %v84, %v219
  %v221 = vpop.f32.mrf.mxu0
  %v222 = vadd.f32 %v84, %v221
  %223 = vmatprep.mubr.f32.mxu0 0.0
  %224 = vmatmul.mubr.f32.gmra.mxu0 %v117
  %v225 = vpop.f32.mrf.mxu0
  %v226 = vadd.f32 %v89, %v225
  %v227 = vpop.f32.mrf.mxu0
  %v228 = vadd.f32 %v89, %v227
  %229 = vmatprep.mubr.f32.mxu0 0.0
  %230 = vmatmul.mubr.f32.gmra.mxu0 %v120
  %v231 = vpop.f32.mrf.mxu0
  %v232 = vadd.f32 %v94, %v231
  %v233 = vpop.f32.mrf.mxu0
  %v234 = vadd.f32 %v94, %v233
  %235 = vmatprep.mubr.f32.mxu0 0.0
  %236 = vmatmul.mubr.f32.gmra.mxu0 %v123
  %v237 = vpop.f32.mrf.mxu0
  %v238 = vadd.f32 %v99, %v237
  %v239 = vpop.f32.mrf.mxu0
  %v240 = vadd.f32 %v99, %v239
  %241 = vmatprep.mubr.f32.mxu0 0.0
  %242 = vmatmul.mubr.f32.gmra.mxu0 %v126
  %v243 = vpop.f32.mrf.mxu0
  %v244 = vadd.f32 %v104, %v243
  %v245 = vpop.f32.mrf.mxu0
  %v246 = vadd.f32 %v104, %v245
  %247 = vdwg.mxu0
  %248 = vmatprep.subr.mxu0 0.0
  %249 = vmatpush1.msra.mxu0 0.0
  %250 = vmatprep.subr.mxu0 0.0
  %251 = vmatpush1.msra.mxu0 0.0
  %252 = vmatprep.subr.mxu0 0.0
  %253 = vmatpush1.msra.mxu0 0.0
  %254 = vmatprep.subr.mxu0 0.0
  %255 = vmatpush1.msra.mxu0 0.0
  %256 = vmatprep.subr.mxu0 0.0
  %257 = vmatpush1.msra.mxu0 0.0
  %258 = vmatprep.subr.mxu0 0.0
  %259 = vmatpush1.msra.mxu0 0.0
  %260 = vmatprep.subr.mxu0 %v139
  %261 = vmatpush1.msra.mxu0 %v136
  %262 = vmatprep.subr.mxu0 %v59
  %263 = vmatpush1.msra.mxu0 %v58
  %264 = vmatprep.subr.mxu0 %v55
  %265 = vmatpush1.msra.mxu0 %v54
  %266 = vmatprep.subr.mxu0 %v51
  %267 = vmatpush1.msra.mxu0 %v50
  %268 = vmatprep.subr.mxu0 %v47
  %269 = vmatpush1.msra.mxu0 %v46
  %270 = vmatprep.subr.mxu0 %v43
  %271 = vmatpush1.msra.mxu0 %v42
  %272 = vmatprep.subr.mxu0 %v39
  %273 = vmatpush1.msra.mxu0 %v38
  %274 = vmatprep.subr.mxu0 %v35
  %275 = vmatpush1.msra.mxu0 %v34
  %276 = vmatprep.subr.mxu0 %v31
  %277 = vmatpush1.msra.mxu0 %v30
  %278 = vmatprep.subr.mxu0 %v27
  %279 = vmatpush1.msra.mxu0 %v26
  %280 = vmatprep.subr.mxu0 0.0
  %281 = vmatpush2.msra.mxu0 0.0
  %282 = vmatprep.subr.mxu0 0.0
  %283 = vmatpush2.msra.mxu0 0.0
  %284 = vmatprep.subr.mxu0 0.0
  %285 = vmatpush2.msra.mxu0 0.0
  %286 = vmatprep.subr.mxu0 0.0
  %287 = vmatpush2.msra.mxu0 0.0
  %288 = vmatprep.subr.mxu0 0.0
  %289 = vmatpush2.msra.mxu0 0.0
  %290 = vmatprep.subr.mxu0 0.0
  %291 = vmatpush2.msra.mxu0 0.0
  %292 = vmatprep.subr.mxu0 0.0
  %293 = vmatpush2.msra.mxu0 0.0
  %294 = vmatprep.subr.mxu0 0.0
  %295 = vmatpush2.msra.mxu0 0.0
  %296 = vmatprep.subr.mxu0 0.0
  %297 = vmatpush2.msra.mxu0 0.0
  %298 = vmatprep.subr.mxu0 0.0
  %299 = vmatpush2.msra.mxu0 0.0
  %300 = vmatprep.subr.mxu0 0.0
  %301 = vmatpush2.msra.mxu0 0.0
  %302 = vmatprep.subr.mxu0 0.0
  %303 = vmatpush2.msra.mxu0 0.0
  %304 = vmatprep.subr.mxu0 0.0
  %305 = vmatpush2.msra.mxu0 0.0
  %306 = vmatprep.subr.mxu0 0.0
  %307 = vmatpush2.msra.mxu0 0.0
  %308 = vmatprep.subr.mxu0 0.0
  %309 = vmatpush2.msra.mxu0 0.0
  %310 = vmatprep.subr.mxu0 0.0
  %311 = vmatpush2.msra.mxu0 0.0
  %312 = vmatprep.mubr.f32.mxu0 0.0
  %313 = vmatmul.mubr.f32.gmra.mxu0 %v108
  %v314 = vpop.f32.mrf.mxu0
  %v315 = vadd.f32 %v74, %v314
  %v316 = vpop.f32.mrf.mxu0
  %v317 = vadd.f32 %v74, %v316
  %318 = vmatprep.mubr.f32.mxu0 0.0
  %319 = vmatmul.mubr.f32.gmra.mxu0 %v111
  %v320 = vpop.f32.mrf.mxu0
  %v321 = vadd.f32 %v79, %v320
  %v322 = vpop.f32.mrf.mxu0
  %v323 = vadd.f32 %v79, %v322
  %324 = vmatprep.mubr.f32.mxu0 0.0
  %325 = vmatmul.mubr.f32.gmra.mxu0 %v114
  %v326 = vpop.f32.mrf.mxu0
  %v327 = vadd.f32 %v84, %v326
  %v328 = vpop.f32.mrf.mxu0
  %v329 = vadd.f32 %v84, %v328
  %330 = vmatprep.mubr.f32.mxu0 0.0
  %331 = vmatmul.mubr.f32.gmra.mxu0 %v117
  %v332 = vpop.f32.mrf.mxu0
  %v333 = vadd.f32 %v89, %v332
  %v334 = vpop.f32.mrf.mxu0
  %v335 = vadd.f32 %v89, %v334
  %336 = vmatprep.mubr.f32.mxu0 0.0
  %337 = vmatmul.mubr.f32.gmra.mxu0 %v120
  %v338 = vpop.f32.mrf.mxu0
  %v339 = vadd.f32 %v94, %v338
  %v340 = vpop.f32.mrf.mxu0
  %v341 = vadd.f32 %v94, %v340
  %342 = vmatprep.mubr.f32.mxu0 0.0
  %343 = vmatmul.mubr.f32.gmra.mxu0 %v123
  %v344 = vpop.f32.mrf.mxu0
  %v345 = vadd.f32 %v99, %v344
  %v346 = vpop.f32.mrf.mxu0
  %v347 = vadd.f32 %v99, %v346
  %348 = vmatprep.mubr.f32.mxu0 0.0
  %349 = vmatmul.mubr.f32.gmra.mxu0 %v126
  %v350 = vpop.f32.mrf.mxu0
  %v351 = vadd.f32 %v104, %v350
  %v352 = vpop.f32.mrf.mxu0
  %v353 = vadd.f32 %v104, %v352
  %354 = vdwg.mxu0
  %vm355 = vcmp.ge.f32.partialorder %v208, 0.0
  %vm356 = vcmp.ge.f32.partialorder %v210, 0.0
  %vm357 = vcmp.ge.f32.partialorder %v315, 0.0
  %vm358 = vcmp.ge.f32.partialorder %v317, 0.0
  %vm359 = vcmp.ge.f32.partialorder %v214, 0.0
  %vm360 = vcmp.ge.f32.partialorder %v216, 0.0
  %vm361 = vcmp.ge.f32.partialorder %v321, 0.0
  %vm362 = vcmp.ge.f32.partialorder %v323, 0.0
  %vm363 = vcmp.ge.f32.partialorder %v220, 0.0
  %vm364 = vcmp.ge.f32.partialorder %v222, 0.0
  %vm365 = vcmp.ge.f32.partialorder %v327, 0.0
  %vm366 = vcmp.ge.f32.partialorder %v329, 0.0
  %vm367 = vcmp.ge.f32.partialorder %v226, 0.0
  %vm368 = vcmp.ge.f32.partialorder %v228, 0.0
  %vm369 = vcmp.ge.f32.partialorder %v333, 0.0
  %vm370 = vcmp.ge.f32.partialorder %v335, 0.0
  %vm371 = vcmp.ge.f32.partialorder %v232, 0.0
  %vm372 = vcmp.ge.f32.partialorder %v234, 0.0
  %vm373 = vcmp.ge.f32.partialorder %v339, 0.0
  %vm374 = vcmp.ge.f32.partialorder %v341, 0.0
  %vm375 = vcmp.ge.f32.partialorder %v238, 0.0
  %vm376 = vcmp.ge.f32.partialorder %v240, 0.0
  %vm377 = vcmp.ge.f32.partialorder %v345, 0.0
  %vm378 = vcmp.ge.f32.partialorder %v347, 0.0
  %vm379 = vcmp.ge.f32.partialorder %v244, 0.0
  %vm380 = vcmp.ge.f32.partialorder %v246, 0.0
  %vm381 = vcmp.ge.f32.partialorder %v351, 0.0
  %vm382 = vcmp.ge.f32.partialorder %v353, 0.0
  %v383 = vld [vmem:[%s3] sm:$0xff]
  %v384 = vld [vmem:[%s3 + $0x8] sm:$0xff]
  %v385 = vld [vmem:[%s3 + $0x10] sm:$0xff]
  %v386 = vld [vmem:[%s3 + $0x18] sm:$0xff]
  %v387 = vld [vmem:[%s3 + $0x20] sm:$0xff]
  %v388 = vld [vmem:[%s3 + $0x28] sm:$0xff]
  %v389 = vld [vmem:[%s3 + $0x30] sm:$0xff]
  %391 = vset.pattern.permute.xlu0 0
  %392 = vperm.xlu0 %391, %v383
  %v393 = vpop.permute.xlu0 %392
  %396 = vset.pattern.permute.xlu0 0
  %397 = vperm.xlu0 %396, %v384
  %v398 = vpop.permute.xlu0 %397
  %401 = vset.pattern.permute.xlu0 0
  %402 = vperm.xlu0 %401, %v385
  %v403 = vpop.permute.xlu0 %402
  %406 = vset.pattern.permute.xlu0 0
  %407 = vperm.xlu0 %406, %v386
  %v408 = vpop.permute.xlu0 %407
  %411 = vset.pattern.permute.xlu0 0
  %412 = vperm.xlu0 %411, %v387
  %v413 = vpop.permute.xlu0 %412
  %416 = vset.pattern.permute.xlu0 0
  %417 = vperm.xlu0 %416, %v388
  %v418 = vpop.permute.xlu0 %417
  %421 = vset.pattern.permute.xlu0 0
  %422 = vperm.xlu0 %421, %v389
  %v423 = vpop.permute.xlu0 %422
  %v425 = vmul.f32 %v393, %v208
  %v426 = vmul.f32 %v393, %v210
  %v427 = vmul.f32 %v393, %v315
  %v428 = vmul.f32 %v393, %v317
  %v429 = vmul.f32 %v398, %v214
  %v430 = vmul.f32 %v398, %v216
  %v431 = vmul.f32 %v398, %v321
  %v432 = vmul.f32 %v398, %v323
  %v433 = vmul.f32 %v403, %v220
  %v434 = vmul.f32 %v403, %v222
  %v435 = vmul.f32 %v403, %v327
  %v436 = vmul.f32 %v403, %v329
  %v437 = vmul.f32 %v408, %v226
  %v438 = vmul.f32 %v408, %v228
  %v439 = vmul.f32 %v408, %v333
  %v440 = vmul.f32 %v408, %v335
  %v441 = vmul.f32 %v413, %v232
  %v442 = vmul.f32 %v413, %v234
  %v443 = vmul.f32 %v413, %v339
  %v444 = vmul.f32 %v413, %v341
  %v445 = vmul.f32 %v418, %v238
  %v446 = vmul.f32 %v418, %v240
  %v447 = vmul.f32 %v418, %v345
  %v448 = vmul.f32 %v418, %v347
  %v449 = vmul.f32 %v423, %v244
  %v450 = vmul.f32 %v423, %v246
  %v451 = vmul.f32 %v423, %v351
  %v452 = vmul.f32 %v423, %v353
  %v453 = vsel %vm355, %v208, %v425
  %v454 = vsel %vm356, %v210, %v426
  %v455 = vsel %vm357, %v315, %v427
  %v456 = vsel %vm358, %v317, %v428
  %v457 = vsel %vm359, %v214, %v429
  %v458 = vsel %vm360, %v216, %v430
  %v459 = vsel %vm361, %v321, %v431
  %v460 = vsel %vm362, %v323, %v432
  %v461 = vsel %vm363, %v220, %v433
  %v462 = vsel %vm364, %v222, %v434
  %v463 = vsel %vm365, %v327, %v435
  %v464 = vsel %vm366, %v329, %v436
  %v465 = vsel %vm367, %v226, %v437
  %v466 = vsel %vm368, %v228, %v438
  %v467 = vsel %vm369, %v333, %v439
  %v468 = vsel %vm370, %v335, %v440
  %v469 = vsel %vm371, %v232, %v441
  %v470 = vsel %vm372, %v234, %v442
  %v471 = vsel %vm373, %v339, %v443
  %v472 = vsel %vm374, %v341, %v444
  %v473 = vsel %vm375, %v238, %v445
  %v474 = vsel %vm376, %v240, %v446
  %v475 = vsel %vm377, %v345, %v447
  %v476 = vsel %vm378, %v347, %v448
  %v477 = vsel %vm379, %v244, %v449
  %v478 = vsel %vm380, %v246, %v450
  %v479 = vsel %vm381, %v351, %v451
  %v480 = vsel %vm382, %v353, %v452
  %481 = vst [vmem:[%s4] sm:$0xff] %v453
  %482 = vst [vmem:[%s4 + $0x8] sm:$0xff] %v454
  %483 = vst [vmem:[%s4 + $0x10] sm:$0xff] %v455
  %484 = vst [vmem:[%s4 + $0x18] sm:$0xff] %v456
  %485 = vst [vmem:[%s4 + $0x20] sm:$0xff] %v457
  %486 = vst [vmem:[%s4 + $0x28] sm:$0xff] %v458
  %487 = vst [vmem:[%s4 + $0x30] sm:$0xff] %v459
  %488 = vst [vmem:[%s4 + $0x38] sm:$0xff] %v460
  %489 = vst [vmem:[%s4 + $0x40] sm:$0xff] %v461
  %490 = vst [vmem:[%s4 + $0x48] sm:$0xff] %v462
  %491 = vst [vmem:[%s4 + $0x50] sm:$0xff] %v463
  %492 = vst [vmem:[%s4 + $0x58] sm:$0xff] %v464
  %493 = vst [vmem:[%s4 + $0x60] sm:$0xff] %v465
  %494 = vst [vmem:[%s4 + $0x68] sm:$0xff] %v466
  %495 = vst [vmem:[%s4 + $0x70] sm:$0xff] %v467
  %496 = vst [vmem:[%s4 + $0x78] sm:$0xff] %v468
  %497 = vst [vmem:[%s4 + $0x80] sm:$0xff] %v469
  %498 = vst [vmem:[%s4 + $0x88] sm:$0xff] %v470
  %499 = vst [vmem:[%s4 + $0x90] sm:$0xff] %v471
  %500 = vst [vmem:[%s4 + $0x98] sm:$0xff] %v472
  %501 = vst [vmem:[%s4 + $0xa0] sm:$0xff] %v473
  %502 = vst [vmem:[%s4 + $0xa8] sm:$0xff] %v474
  %503 = vst [vmem:[%s4 + $0xb0] sm:$0xff] %v475
  %504 = vst [vmem:[%s4 + $0xb8] sm:$0xff] %v476
  %505 = vst [vmem:[%s4 + $0xc0] sm:$0xff] %v477
  %506 = vst [vmem:[%s4 + $0xc8] sm:$0xff] %v478
  %507 = vst [vmem:[%s4 + $0xd0] sm:$0xff] %v479
  %508 = vst [vmem:[%s4 + $0xd8] sm:$0xff] %v480
  // Predicated region
  $region18: #{fsrcnn_forward.8} parent=0 // pred_check
    _
  $region19: #{fsrcnn_forward.8} parent=0 // pred_check_branch
    %510 = sbr.rel (0) target = $region21
  $region20: #{fsrcnn_forward.8} parent=0 // pred_region
    _
  $region21: #{fsrcnn_forward.8} parent=0 // pred_fallthru
    _
  // Predicated region
  $region22: #{fsrcnn_forward.8} parent=0 // pred_check
    _
  $region23: #{fsrcnn_forward.8} parent=0 // pred_check_branch
    %512 = sbr.rel (0) target = $region25
  $region24: #{fsrcnn_forward.8} parent=0 // pred_region
    _
  $region25: #{fsrcnn_forward.8} parent=0 // pred_fallthru
    _

// kernel: fsrcnn_forward.10
$region0: #{fsrcnn_forward.10}
  #allocation0 [shape = 'u32[]', space=smem, size = 0x4, offset = 0x4, fixed_abs, tag = 'smem constant byte address 0x4 - core index']
  #allocation1 [shape = 'u32[144,128]{1,0:T(1,128)}', space=vmem, size = 0x12000, scoped, tag = 'internal scratch']
  %s0 = inlined_call_operand.vmem [shape: f32[12,108], index: 0, kind: input, shape index: {}]
  %s1 = inlined_call_operand.vmem [shape: f32[108,512], index: 1, kind: input, shape index: {}]
  %s2 = inlined_call_operand.vmem [shape: f32[12,1], index: 2, kind: input, shape index: {}]
  %s3 = inlined_call_operand.vmem [shape: f32[12,1], index: 3, kind: input, shape index: {}]
  %s4 = inlined_call_operand.vmem [shape: f32[12,512], index: 4, kind: output, shape index: {}]
  %s5 = sld [smem:[#allocation0]]
  $region26: #{fsrcnn_forward.10} parent=0
    _
  %s7 = ssub.s32 1, %s5
  %s8 = scalar_select 0, %s7, %s5
  // Predicated region
  $region2: #{fsrcnn_forward.10} parent=0 // pred_check
    _
  $region3: #{fsrcnn_forward.10} parent=0 // pred_check_branch
    %10 = sbr.rel (0) target = $region5
  $region4: #{fsrcnn_forward.10} parent=0 // pred_region
    _
  $region5: #{fsrcnn_forward.10} parent=0 // pred_fallthru
    _
  // Predicated region
  $region6: #{fsrcnn_forward.10} parent=0 // pred_check
    _
  $region7: #{fsrcnn_forward.10} parent=0 // pred_check_branch
    %12 = sbr.rel (0) target = $region9
  $region8: #{fsrcnn_forward.10} parent=0 // pred_region
    _
  $region9: #{fsrcnn_forward.10} parent=0 // pred_fallthru
    _
  // Predicated region
  $region10: #{fsrcnn_forward.10} parent=0 // pred_check
    _
  $region11: #{fsrcnn_forward.10} parent=0 // pred_check_branch
    %14 = sbr.rel (0) target = $region13
  $region12: #{fsrcnn_forward.10} parent=0 // pred_region
    _
  $region13: #{fsrcnn_forward.10} parent=0 // pred_fallthru
    _
  // Predicated region
  $region14: #{fsrcnn_forward.10} parent=0 // pred_check
    _
  $region15: #{fsrcnn_forward.10} parent=0 // pred_check_branch
    %16 = sbr.rel (0) target = $region17
  $region16: #{fsrcnn_forward.10} parent=0 // pred_region
    _
  $region17: #{fsrcnn_forward.10} parent=0 // pred_fallthru
    _
  %v17 = vld [vmem:[%s0] sm:$0xff]
  %v18 = vld [vmem:[%s0 + $0x8] sm:$0xf]
  %v19 = vld [vmem:[%s1] sm:$0xff]
  %v20 = vld [vmem:[%s1 + $0x8] sm:$0xff]
  %v21 = vld [vmem:[%s1 + $0x10] sm:$0xff]
  %v22 = vld [vmem:[%s1 + $0x18] sm:$0xff]
  %v23 = vld [vmem:[%s1 + $0x20] sm:$0xff]
  %v24 = vld [vmem:[%s1 + $0x28] sm:$0xff]
  %v25 = vld [vmem:[%s1 + $0x30] sm:$0xff]
  %v26 = vld [vmem:[%s1 + $0x38] sm:$0xff]
  %v27 = vld [vmem:[%s1 + $0x40] sm:$0xff]
  %v28 = vld [vmem:[%s1 + $0x48] sm:$0xff]
  %v29 = vld [vmem:[%s1 + $0x50] sm:$0xff]
  %v30 = vld [vmem:[%s1 + $0x58] sm:$0xff]
  %v31 = vld [vmem:[%s1 + $0x60] sm:$0xff]
  %v32 = vld [vmem:[%s1 + $0x68] sm:$0xff]
  %v33 = vld [vmem:[%s1 + $0x70] sm:$0xff]
  %v34 = vld [vmem:[%s1 + $0x78] sm:$0xff]
  %v35 = vld [vmem:[%s1 + $0x80] sm:$0xff]
  %v36 = vld [vmem:[%s1 + $0x88] sm:$0xff]
  %v37 = vld [vmem:[%s1 + $0x90] sm:$0xff]
  %v38 = vld [vmem:[%s1 + $0x98] sm:$0xff]
  %v39 = vld [vmem:[%s1 + $0xa0] sm:$0xff]
  %v40 = vld [vmem:[%s1 + $0xa8] sm:$0xff]
  %v41 = vld [vmem:[%s1 + $0xb0] sm:$0xff]
  %v42 = vld [vmem:[%s1 + $0xb8] sm:$0xff]
  %v43 = vld [vmem:[%s1 + $0xc0] sm:$0xff]
  %v44 = vld [vmem:[%s1 + $0xc8] sm:$0xff]
  %v45 = vld [vmem:[%s1 + $0xd0] sm:$0xff]
  %v46 = vld [vmem:[%s1 + $0xd8] sm:$0xff]
  %v47 = vld [vmem:[%s1 + $0xe0] sm:$0xff]
  %v48 = vld [vmem:[%s1 + $0xe8] sm:$0xff]
  %v49 = vld [vmem:[%s1 + $0xf0] sm:$0xff]
  %v50 = vld [vmem:[%s1 + $0xf8] sm:$0xff]
  %v51 = vld [vmem:[%s1 + $0x100] sm:$0xff]
  %v52 = vld [vmem:[%s1 + $0x108] sm:$0xff]
  %v53 = vld [vmem:[%s1 + $0x110] sm:$0xff]
  %v54 = vld [vmem:[%s1 + $0x118] sm:$0xff]
  %v55 = vld [vmem:[%s1 + $0x120] sm:$0xff]
  %v56 = vld [vmem:[%s1 + $0x128] sm:$0xff]
  %v57 = vld [vmem:[%s1 + $0x130] sm:$0xff]
  %v58 = vld [vmem:[%s1 + $0x138] sm:$0xff]
  %v59 = vld [vmem:[%s1 + $0x140] sm:$0xff]
  %v60 = vld [vmem:[%s1 + $0x148] sm:$0xff]
  %v61 = vld [vmem:[%s1 + $0x150] sm:$0xff]
  %v62 = vld [vmem:[%s1 + $0x158] sm:$0xff]
  %v63 = vld [vmem:[%s1 + $0x160] sm:$0xff]
  %v64 = vld [vmem:[%s1 + $0x168] sm:$0xff]
  %v65 = vld [vmem:[%s1 + $0x170] sm:$0xff]
  %v66 = vld [vmem:[%s1 + $0x178] sm:$0xff]
  %v67 = vld [vmem:[%s1 + $0x180] sm:$0xff]
  %v68 = vld [vmem:[%s1 + $0x188] sm:$0xff]
  %v69 = vld [vmem:[%s1 + $0x190] sm:$0xff]
  %v70 = vld [vmem:[%s1 + $0x198] sm:$0xff]
  %v71 = vld [vmem:[%s1 + $0x1a0] sm:$0xf]
  %v72 = vld [vmem:[%s1 + $0x1a8] sm:$0xf]
  %v73 = vld [vmem:[%s1 + $0x1b0] sm:$0xf]
  %v74 = vld [vmem:[%s1 + $0x1b8] sm:$0xf]
  %v75 = vld [vmem:[%s2] sm:$0xff]
  %v76 = vld [vmem:[%s2 + $0x8] sm:$0xf]
  %78 = vset.pattern.permute.xlu0 0
  %79 = vperm.xlu0 %78, %v75
  %v80 = vpop.permute.xlu0 %79
  %83 = vset.pattern.permute.xlu0 0
  %84 = vperm.xlu0 %83, %v76
  %v85 = vpop.permute.xlu0 %84
  %vm87 = vcmask 883712
  %v89 = vsel %vm87, %v17, 0
  %v92 = vsel %vm87, %v18, 0
  %vm94 = vcmask 1043456
  %v96 = vsel %vm94, %v71, 0
  %v99 = vsel %vm94, %v72, 0
  %v102 = vsel %vm94, %v73, 0
  %v105 = vsel %vm94, %v74, 0
  %107 = vmatprep.subr.mxu0 0.0
  %108 = vmatpush1.msra.mxu0 0.0
  %109 = vmatprep.subr.mxu0 0.0
  %110 = vmatpush1.msra.mxu0 0.0
  %111 = vmatprep.subr.mxu0 %v99
  %112 = vmatpush1.msra.mxu0 %v96
  %113 = vmatprep.subr.mxu0 %v68
  %114 = vmatpush1.msra.mxu0 %v67
  %115 = vmatprep.subr.mxu0 %v64
  %116 = vmatpush1.msra.mxu0 %v63
  %117 = vmatprep.subr.mxu0 %v60
  %118 = vmatpush1.msra.mxu0 %v59
  %119 = vmatprep.subr.mxu0 %v56
  %120 = vmatpush1.msra.mxu0 %v55
  %121 = vmatprep.subr.mxu0 %v52
  %122 = vmatpush1.msra.mxu0 %v51
  %123 = vmatprep.subr.mxu0 %v48
  %124 = vmatpush1.msra.mxu0 %v47
  %125 = vmatprep.subr.mxu0 %v44
  %126 = vmatpush1.msra.mxu0 %v43
  %127 = vmatprep.subr.mxu0 %v40
  %128 = vmatpush1.msra.mxu0 %v39
  %129 = vmatprep.subr.mxu0 %v36
  %130 = vmatpush1.msra.mxu0 %v35
  %131 = vmatprep.subr.mxu0 %v32
  %132 = vmatpush1.msra.mxu0 %v31
  %133 = vmatprep.subr.mxu0 %v28
  %134 = vmatpush1.msra.mxu0 %v27
  %135 = vmatprep.subr.mxu0 %v24
  %136 = vmatpush1.msra.mxu0 %v23
  %137 = vmatprep.subr.mxu0 %v20
  %138 = vmatpush1.msra.mxu0 %v19
  %139 = vmatprep.subr.mxu0 0.0
  %140 = vmatpush2.msra.mxu0 0.0
  %141 = vmatprep.subr.mxu0 0.0
  %142 = vmatpush2.msra.mxu0 0.0
  %143 = vmatprep.subr.mxu0 0.0
  %144 = vmatpush2.msra.mxu0 0.0
  %145 = vmatprep.subr.mxu0 0.0
  %146 = vmatpush2.msra.mxu0 0.0
  %147 = vmatprep.subr.mxu0 0.0
  %148 = vmatpush2.msra.mxu0 0.0
  %149 = vmatprep.subr.mxu0 0.0
  %150 = vmatpush2.msra.mxu0 0.0
  %151 = vmatprep.subr.mxu0 0.0
  %152 = vmatpush2.msra.mxu0 0.0
  %153 = vmatprep.subr.mxu0 0.0
  %154 = vmatpush2.msra.mxu0 0.0
  %155 = vmatprep.subr.mxu0 0.0
  %156 = vmatpush2.msra.mxu0 0.0
  %157 = vmatprep.subr.mxu0 0.0
  %158 = vmatpush2.msra.mxu0 0.0
  %159 = vmatprep.subr.mxu0 0.0
  %160 = vmatpush2.msra.mxu0 0.0
  %161 = vmatprep.subr.mxu0 0.0
  %162 = vmatpush2.msra.mxu0 0.0
  %163 = vmatprep.subr.mxu0 0.0
  %164 = vmatpush2.msra.mxu0 0.0
  %165 = vmatprep.subr.mxu0 0.0
  %166 = vmatpush2.msra.mxu0 0.0
  %167 = vmatprep.subr.mxu0 0.0
  %168 = vmatpush2.msra.mxu0 0.0
  %169 = vmatprep.subr.mxu0 0.0
  %170 = vmatpush2.msra.mxu0 0.0
  %171 = vmatprep.mubr.f32.mxu0 0.0
  %172 = vmatmul.mubr.f32.gmra.mxu0 %v89
  %v173 = vpop.f32.mrf.mxu0
  %v174 = vadd.f32 %v80, %v173
  %v175 = vpop.f32.mrf.mxu0
  %v176 = vadd.f32 %v80, %v175
  %177 = vmatprep.mubr.f32.mxu0 0.0
  %178 = vmatmul.mubr.f32.gmra.mxu0 %v92
  %v179 = vpop.f32.mrf.mxu0
  %v180 = vadd.f32 %v85, %v179
  %v181 = vpop.f32.mrf.mxu0
  %v182 = vadd.f32 %v85, %v181
  %183 = vdwg.mxu0
  %184 = vmatprep.subr.mxu0 0.0
  %185 = vmatpush1.msra.mxu0 0.0
  %186 = vmatprep.subr.mxu0 0.0
  %187 = vmatpush1.msra.mxu0 0.0
  %188 = vmatprep.subr.mxu0 %v105
  %189 = vmatpush1.msra.mxu0 %v102
  %190 = vmatprep.subr.mxu0 %v70
  %191 = vmatpush1.msra.mxu0 %v69
  %192 = vmatprep.subr.mxu0 %v66
  %193 = vmatpush1.msra.mxu0 %v65
  %194 = vmatprep.subr.mxu0 %v62
  %195 = vmatpush1.msra.mxu0 %v61
  %196 = vmatprep.subr.mxu0 %v58
  %197 = vmatpush1.msra.mxu0 %v57
  %198 = vmatprep.subr.mxu0 %v54
  %199 = vmatpush1.msra.mxu0 %v53
  %200 = vmatprep.subr.mxu0 %v50
  %201 = vmatpush1.msra.mxu0 %v49
  %202 = vmatprep.subr.mxu0 %v46
  %203 = vmatpush1.msra.mxu0 %v45
  %204 = vmatprep.subr.mxu0 %v42
  %205 = vmatpush1.msra.mxu0 %v41
  %206 = vmatprep.subr.mxu0 %v38
  %207 = vmatpush1.msra.mxu0 %v37
  %208 = vmatprep.subr.mxu0 %v34
  %209 = vmatpush1.msra.mxu0 %v33
  %210 = vmatprep.subr.mxu0 %v30
  %211 = vmatpush1.msra.mxu0 %v29
  %212 = vmatprep.subr.mxu0 %v26
  %213 = vmatpush1.msra.mxu0 %v25
  %214 = vmatprep.subr.mxu0 %v22
  %215 = vmatpush1.msra.mxu0 %v21
  %216 = vmatprep.subr.mxu0 0.0
  %217 = vmatpush2.msra.mxu0 0.0
  %218 = vmatprep.subr.mxu0 0.0
  %219 = vmatpush2.msra.mxu0 0.0
  %220 = vmatprep.subr.mxu0 0.0
  %221 = vmatpush2.msra.mxu0 0.0
  %222 = vmatprep.subr.mxu0 0.0
  %223 = vmatpush2.msra.mxu0 0.0
  %224 = vmatprep.subr.mxu0 0.0
  %225 = vmatpush2.msra.mxu0 0.0
  %226 = vmatprep.subr.mxu0 0.0
  %227 = vmatpush2.msra.mxu0 0.0
  %228 = vmatprep.subr.mxu0 0.0
  %229 = vmatpush2.msra.mxu0 0.0
  %230 = vmatprep.subr.mxu0 0.0
  %231 = vmatpush2.msra.mxu0 0.0
  %232 = vmatprep.subr.mxu0 0.0
  %233 = vmatpush2.msra.mxu0 0.0
  %234 = vmatprep.subr.mxu0 0.0
  %235 = vmatpush2.msra.mxu0 0.0
  %236 = vmatprep.subr.mxu0 0.0
  %237 = vmatpush2.msra.mxu0 0.0
  %238 = vmatprep.subr.mxu0 0.0
  %239 = vmatpush2.msra.mxu0 0.0
  %240 = vmatprep.subr.mxu0 0.0
  %241 = vmatpush2.msra.mxu0 0.0
  %242 = vmatprep.subr.mxu0 0.0
  %243 = vmatpush2.msra.mxu0 0.0
  %244 = vmatprep.subr.mxu0 0.0
  %245 = vmatpush2.msra.mxu0 0.0
  %246 = vmatprep.subr.mxu0 0.0
  %247 = vmatpush2.msra.mxu0 0.0
  %248 = vmatprep.mubr.f32.mxu0 0.0
  %249 = vmatmul.mubr.f32.gmra.mxu0 %v89
  %v250 = vpop.f32.mrf.mxu0
  %v251 = vadd.f32 %v80, %v250
  %v252 = vpop.f32.mrf.mxu0
  %v253 = vadd.f32 %v80, %v252
  %254 = vmatprep.mubr.f32.mxu0 0.0
  %255 = vmatmul.mubr.f32.gmra.mxu0 %v92
  %v256 = vpop.f32.mrf.mxu0
  %v257 = vadd.f32 %v85, %v256
  %v258 = vpop.f32.mrf.mxu0
  %v259 = vadd.f32 %v85, %v258
  %260 = vdwg.mxu0
  %vm261 = vcmp.ge.f32.partialorder %v174, 0.0
  %vm262 = vcmp.ge.f32.partialorder %v176, 0.0
  %vm263 = vcmp.ge.f32.partialorder %v251, 0.0
  %vm264 = vcmp.ge.f32.partialorder %v253, 0.0
  %vm265 = vcmp.ge.f32.partialorder %v180, 0.0
  %vm266 = vcmp.ge.f32.partialorder %v182, 0.0
  %vm267 = vcmp.ge.f32.partialorder %v257, 0.0
  %vm268 = vcmp.ge.f32.partialorder %v259, 0.0
  %v269 = vld [vmem:[%s3] sm:$0xff]
  %v270 = vld [vmem:[%s3 + $0x8] sm:$0xf]
  %272 = vset.pattern.permute.xlu0 0
  %273 = vperm.xlu0 %272, %v269
  %v274 = vpop.permute.xlu0 %273
  %277 = vset.pattern.permute.xlu0 0
  %278 = vperm.xlu0 %277, %v270
  %v279 = vpop.permute.xlu0 %278
  %v281 = vmul.f32 %v274, %v174
  %v282 = vmul.f32 %v274, %v176
  %v283 = vmul.f32 %v274, %v251
  %v284 = vmul.f32 %v274, %v253
  %v285 = vmul.f32 %v279, %v180
  %v286 = vmul.f32 %v279, %v182
  %v287 = vmul.f32 %v279, %v257
  %v288 = vmul.f32 %v279, %v259
  %v289 = vsel %vm261, %v174, %v281
  %v290 = vsel %vm262, %v176, %v282
  %v291 = vsel %vm263, %v251, %v283
  %v292 = vsel %vm264, %v253, %v284
  %v293 = vsel %vm265, %v180, %v285
  %v294 = vsel %vm266, %v182, %v286
  %v295 = vsel %vm267, %v257, %v287
  %v296 = vsel %vm268, %v259, %v288
  %297 = vst [vmem:[%s4] sm:$0xff] %v289
  %298 = vst [vmem:[%s4 + $0x8] sm:$0xff] %v290
  %299 = vst [vmem:[%s4 + $0x10] sm:$0xff] %v291
  %300 = vst [vmem:[%s4 + $0x18] sm:$0xff] %v292
  %301 = vst [vmem:[%s4 + $0x20] sm:$0xf] %v293
  %302 = vst [vmem:[%s4 + $0x28] sm:$0xf] %v294
  %303 = vst [vmem:[%s4 + $0x30] sm:$0xf] %v295
  %304 = vst [vmem:[%s4 + $0x38] sm:$0xf] %v296
  // Predicated region
  $region18: #{fsrcnn_forward.10} parent=0 // pred_check
    _
  $region19: #{fsrcnn_forward.10} parent=0 // pred_check_branch
    %306 = sbr.rel (0) target = $region21
  $region20: #{fsrcnn_forward.10} parent=0 // pred_region
    _
  $region21: #{fsrcnn_forward.10} parent=0 // pred_fallthru
    _
  // Predicated region
  $region22: #{fsrcnn_forward.10} parent=0 // pred_check
    _
  $region23: #{fsrcnn_forward.10} parent=0 // pred_check_branch
    %308 = sbr.rel (0) target = $region25
  $region24: #{fsrcnn_forward.10} parent=0 // pred_region
    _
  $region25: #{fsrcnn_forward.10} parent=0 // pred_fallthru
    _

// kernel: fsrcnn_forward.14
$region0: #{fsrcnn_forward.14}
  #allocation0 [shape = 'u32[]', space=smem, size = 0x4, offset = 0x4, fixed_abs, tag = 'smem constant byte address 0x4 - core index']
  #allocation1 [shape = 'u32[144,128]{1,0:T(1,128)}', space=vmem, size = 0x12000, scoped, tag = 'internal scratch']
  %s0 = inlined_call_operand.vmem [shape: f32[56,12], index: 0, kind: input, shape index: {}]
  %s1 = inlined_call_operand.vmem [shape: f32[12,512], index: 1, kind: input, shape index: {}]
  %s2 = inlined_call_operand.vmem [shape: f32[56,1], index: 2, kind: input, shape index: {}]
  %s3 = inlined_call_operand.vmem [shape: f32[56,1], index: 3, kind: input, shape index: {}]
  %s4 = inlined_call_operand.vmem [shape: f32[56,512], index: 4, kind: output, shape index: {}]
  %s5 = sld [smem:[#allocation0]]
  $region26: #{fsrcnn_forward.14} parent=0
    _
  %s7 = ssub.s32 1, %s5
  %s8 = scalar_select 0, %s7, %s5
  // Predicated region
  $region2: #{fsrcnn_forward.14} parent=0 // pred_check
    _
  $region3: #{fsrcnn_forward.14} parent=0 // pred_check_branch
    %10 = sbr.rel (0) target = $region5
  $region4: #{fsrcnn_forward.14} parent=0 // pred_region
    _
  $region5: #{fsrcnn_forward.14} parent=0 // pred_fallthru
    _
  // Predicated region
  $region6: #{fsrcnn_forward.14} parent=0 // pred_check
    _
  $region7: #{fsrcnn_forward.14} parent=0 // pred_check_branch
    %12 = sbr.rel (0) target = $region9
  $region8: #{fsrcnn_forward.14} parent=0 // pred_region
    _
  $region9: #{fsrcnn_forward.14} parent=0 // pred_fallthru
    _
  // Predicated region
  $region10: #{fsrcnn_forward.14} parent=0 // pred_check
    _
  $region11: #{fsrcnn_forward.14} parent=0 // pred_check_branch
    %14 = sbr.rel (0) target = $region13
  $region12: #{fsrcnn_forward.14} parent=0 // pred_region
    _
  $region13: #{fsrcnn_forward.14} parent=0 // pred_fallthru
    _
  // Predicated region
  $region14: #{fsrcnn_forward.14} parent=0 // pred_check
    _
  $region15: #{fsrcnn_forward.14} parent=0 // pred_check_branch
    %16 = sbr.rel (0) target = $region17
  $region16: #{fsrcnn_forward.14} parent=0 // pred_region
    _
  $region17: #{fsrcnn_forward.14} parent=0 // pred_fallthru
    _
  %v17 = vld [vmem:[%s0] sm:$0xff]
  %v18 = vld [vmem:[%s0 + $0x8] sm:$0xff]
  %v19 = vld [vmem:[%s0 + $0x10] sm:$0xff]
  %v20 = vld [vmem:[%s0 + $0x18] sm:$0xff]
  %v21 = vld [vmem:[%s0 + $0x20] sm:$0xff]
  %v22 = vld [vmem:[%s0 + $0x28] sm:$0xff]
  %v23 = vld [vmem:[%s0 + $0x30] sm:$0xff]
  %v24 = vld [vmem:[%s1] sm:$0xff]
  %v25 = vld [vmem:[%s1 + $0x8] sm:$0xff]
  %v26 = vld [vmem:[%s1 + $0x10] sm:$0xff]
  %v27 = vld [vmem:[%s1 + $0x18] sm:$0xff]
  %v28 = vld [vmem:[%s1 + $0x20] sm:$0xf]
  %v29 = vld [vmem:[%s1 + $0x28] sm:$0xf]
  %v30 = vld [vmem:[%s1 + $0x30] sm:$0xf]
  %v31 = vld [vmem:[%s1 + $0x38] sm:$0xf]
  %v32 = vld [vmem:[%s2] sm:$0xff]
  %v33 = vld [vmem:[%s2 + $0x8] sm:$0xff]
  %v34 = vld [vmem:[%s2 + $0x10] sm:$0xff]
  %v35 = vld [vmem:[%s2 + $0x18] sm:$0xff]
  %v36 = vld [vmem:[%s2 + $0x20] sm:$0xff]
  %v37 = vld [vmem:[%s2 + $0x28] sm:$0xff]
  %v38 = vld [vmem:[%s2 + $0x30] sm:$0xff]
  %40 = vset.pattern.permute.xlu0 0
  %41 = vperm.xlu0 %40, %v32
  %v42 = vpop.permute.xlu0 %41
  %45 = vset.pattern.permute.xlu0 0
  %46 = vperm.xlu0 %45, %v33
  %v47 = vpop.permute.xlu0 %46
  %50 = vset.pattern.permute.xlu0 0
  %51 = vperm.xlu0 %50, %v34
  %v52 = vpop.permute.xlu0 %51
  %55 = vset.pattern.permute.xlu0 0
  %56 = vperm.xlu0 %55, %v35
  %v57 = vpop.permute.xlu0 %56
  %60 = vset.pattern.permute.xlu0 0
  %61 = vperm.xlu0 %60, %v36
  %v62 = vpop.permute.xlu0 %61
  %65 = vset.pattern.permute.xlu0 0
  %66 = vperm.xlu0 %65, %v37
  %v67 = vpop.permute.xlu0 %66
  %70 = vset.pattern.permute.xlu0 0
  %71 = vperm.xlu0 %70, %v38
  %v72 = vpop.permute.xlu0 %71
  %vm74 = vcmask 97280
  %v76 = vsel %vm74, %v17, 0
  %v79 = vsel %vm74, %v18, 0
  %v82 = vsel %vm74, %v19, 0
  %v85 = vsel %vm74, %v20, 0
  %v88 = vsel %vm74, %v21, 0
  %v91 = vsel %vm74, %v22, 0
  %v94 = vsel %vm74, %v23, 0
  %vm96 = vcmask 1043456
  %v98 = vsel %vm96, %v28, 0
  %v101 = vsel %vm96, %v29, 0
  %v104 = vsel %vm96, %v30, 0
  %v107 = vsel %vm96, %v31, 0
  %109 = vmatprep.subr.mxu0 0.0
  %110 = vmatpush1.msra.mxu0 0.0
  %111 = vmatprep.subr.mxu0 0.0
  %112 = vmatpush1.msra.mxu0 0.0
  %113 = vmatprep.subr.mxu0 0.0
  %114 = vmatpush1.msra.mxu0 0.0
  %115 = vmatprep.subr.mxu0 0.0
  %116 = vmatpush1.msra.mxu0 0.0
  %117 = vmatprep.subr.mxu0 0.0
  %118 = vmatpush1.msra.mxu0 0.0
  %119 = vmatprep.subr.mxu0 0.0
  %120 = vmatpush1.msra.mxu0 0.0
  %121 = vmatprep.subr.mxu0 0.0
  %122 = vmatpush1.msra.mxu0 0.0
  %123 = vmatprep.subr.mxu0 0.0
  %124 = vmatpush1.msra.mxu0 0.0
  %125 = vmatprep.subr.mxu0 0.0
  %126 = vmatpush1.msra.mxu0 0.0
  %127 = vmatprep.subr.mxu0 0.0
  %128 = vmatpush1.msra.mxu0 0.0
  %129 = vmatprep.subr.mxu0 0.0
  %130 = vmatpush1.msra.mxu0 0.0
  %131 = vmatprep.subr.mxu0 0.0
  %132 = vmatpush1.msra.mxu0 0.0
  %133 = vmatprep.subr.mxu0 0.0
  %134 = vmatpush1.msra.mxu0 0.0
  %135 = vmatprep.subr.mxu0 0.0
  %136 = vmatpush1.msra.mxu0 0.0
  %137 = vmatprep.subr.mxu0 %v101
  %138 = vmatpush1.msra.mxu0 %v98
  %139 = vmatprep.subr.mxu0 %v25
  %140 = vmatpush1.msra.mxu0 %v24
  %141 = vmatprep.subr.mxu0 0.0
  %142 = vmatpush2.msra.mxu0 0.0
  %143 = vmatprep.subr.mxu0 0.0
  %144 = vmatpush2.msra.mxu0 0.0
  %145 = vmatprep.subr.mxu0 0.0
  %146 = vmatpush2.msra.mxu0 0.0
  %147 = vmatprep.subr.mxu0 0.0
  %148 = vmatpush2.msra.mxu0 0.0
  %149 = vmatprep.subr.mxu0 0.0
  %150 = vmatpush2.msra.mxu0 0.0
  %151 = vmatprep.subr.mxu0 0.0
  %152 = vmatpush2.msra.mxu0 0.0
  %153 = vmatprep.subr.mxu0 0.0
  %154 = vmatpush2.msra.mxu0 0.0
  %155 = vmatprep.subr.mxu0 0.0
  %156 = vmatpush2.msra.mxu0 0.0
  %157 = vmatprep.subr.mxu0 0.0
  %158 = vmatpush2.msra.mxu0 0.0
  %159 = vmatprep.subr.mxu0 0.0
  %160 = vmatpush2.msra.mxu0 0.0
  %161 = vmatprep.subr.mxu0 0.0
  %162 = vmatpush2.msra.mxu0 0.0
  %163 = vmatprep.subr.mxu0 0.0
  %164 = vmatpush2.msra.mxu0 0.0
  %165 = vmatprep.subr.mxu0 0.0
  %166 = vmatpush2.msra.mxu0 0.0
  %167 = vmatprep.subr.mxu0 0.0
  %168 = vmatpush2.msra.mxu0 0.0
  %169 = vmatprep.subr.mxu0 0.0
  %170 = vmatpush2.msra.mxu0 0.0
  %171 = vmatprep.subr.mxu0 0.0
  %172 = vmatpush2.msra.mxu0 0.0
  %173 = vmatprep.mubr.f32.mxu0 0.0
  %174 = vmatmul.mubr.f32.gmra.mxu0 %v76
  %v175 = vpop.f32.mrf.mxu0
  %v176 = vadd.f32 %v42, %v175
  %v177 = vpop.f32.mrf.mxu0
  %v178 = vadd.f32 %v42, %v177
  %179 = vmatprep.mubr.f32.mxu0 0.0
  %180 = vmatmul.mubr.f32.gmra.mxu0 %v79
  %v181 = vpop.f32.mrf.mxu0
  %v182 = vadd.f32 %v47, %v181
  %v183 = vpop.f32.mrf.mxu0
  %v184 = vadd.f32 %v47, %v183
  %185 = vmatprep.mubr.f32.mxu0 0.0
  %186 = vmatmul.mubr.f32.gmra.mxu0 %v82
  %v187 = vpop.f32.mrf.mxu0
  %v188 = vadd.f32 %v52, %v187
  %v189 = vpop.f32.mrf.mxu0
  %v190 = vadd.f32 %v52, %v189
  %191 = vmatprep.mubr.f32.mxu0 0.0
  %192 = vmatmul.mubr.f32.gmra.mxu0 %v85
  %v193 = vpop.f32.mrf.mxu0
  %v194 = vadd.f32 %v57, %v193
  %v195 = vpop.f32.mrf.mxu0
  %v196 = vadd.f32 %v57, %v195
  %197 = vmatprep.mubr.f32.mxu0 0.0
  %198 = vmatmul.mubr.f32.gmra.mxu0 %v88
  %v199 = vpop.f32.mrf.mxu0
  %v200 = vadd.f32 %v62, %v199
  %v201 = vpop.f32.mrf.mxu0
  %v202 = vadd.f32 %v62, %v201
  %203 = vmatprep.mubr.f32.mxu0 0.0
  %204 = vmatmul.mubr.f32.gmra.mxu0 %v91
  %v205 = vpop.f32.mrf.mxu0
  %v206 = vadd.f32 %v67, %v205
  %v207 = vpop.f32.mrf.mxu0
  %v208 = vadd.f32 %v67, %v207
  %209 = vmatprep.mubr.f32.mxu0 0.0
  %210 = vmatmul.mubr.f32.gmra.mxu0 %v94
  %v211 = vpop.f32.mrf.mxu0
  %v212 = vadd.f32 %v72, %v211
  %v213 = vpop.f32.mrf.mxu0
  %v214 = vadd.f32 %v72, %v213
  %215 = vdwg.mxu0
  %216 = vmatprep.subr.mxu0 0.0
  %217 = vmatpush1.msra.mxu0 0.0
  %218 = vmatprep.subr.mxu0 0.0
  %219 = vmatpush1.msra.mxu0 0.0
  %220 = vmatprep.subr.mxu0 0.0
  %221 = vmatpush1.msra.mxu0 0.0
  %222 = vmatprep.subr.mxu0 0.0
  %223 = vmatpush1.msra.mxu0 0.0
  %224 = vmatprep.subr.mxu0 0.0
  %225 = vmatpush1.msra.mxu0 0.0
  %226 = vmatprep.subr.mxu0 0.0
  %227 = vmatpush1.msra.mxu0 0.0
  %228 = vmatprep.subr.mxu0 0.0
  %229 = vmatpush1.msra.mxu0 0.0
  %230 = vmatprep.subr.mxu0 0.0
  %231 = vmatpush1.msra.mxu0 0.0
  %232 = vmatprep.subr.mxu0 0.0
  %233 = vmatpush1.msra.mxu0 0.0
  %234 = vmatprep.subr.mxu0 0.0
  %235 = vmatpush1.msra.mxu0 0.0
  %236 = vmatprep.subr.mxu0 0.0
  %237 = vmatpush1.msra.mxu0 0.0
  %238 = vmatprep.subr.mxu0 0.0
  %239 = vmatpush1.msra.mxu0 0.0
  %240 = vmatprep.subr.mxu0 0.0
  %241 = vmatpush1.msra.mxu0 0.0
  %242 = vmatprep.subr.mxu0 0.0
  %243 = vmatpush1.msra.mxu0 0.0
  %244 = vmatprep.subr.mxu0 %v107
  %245 = vmatpush1.msra.mxu0 %v104
  %246 = vmatprep.subr.mxu0 %v27
  %247 = vmatpush1.msra.mxu0 %v26
  %248 = vmatprep.subr.mxu0 0.0
  %249 = vmatpush2.msra.mxu0 0.0
  %250 = vmatprep.subr.mxu0 0.0
  %251 = vmatpush2.msra.mxu0 0.0
  %252 = vmatprep.subr.mxu0 0.0
  %253 = vmatpush2.msra.mxu0 0.0
  %254 = vmatprep.subr.mxu0 0.0
  %255 = vmatpush2.msra.mxu0 0.0
  %256 = vmatprep.subr.mxu0 0.0
  %257 = vmatpush2.msra.mxu0 0.0
  %258 = vmatprep.subr.mxu0 0.0
  %259 = vmatpush2.msra.mxu0 0.0
  %260 = vmatprep.subr.mxu0 0.0
  %261 = vmatpush2.msra.mxu0 0.0
  %262 = vmatprep.subr.mxu0 0.0
  %263 = vmatpush2.msra.mxu0 0.0
  %264 = vmatprep.subr.mxu0 0.0
  %265 = vmatpush2.msra.mxu0 0.0
  %266 = vmatprep.subr.mxu0 0.0
  %267 = vmatpush2.msra.mxu0 0.0
  %268 = vmatprep.subr.mxu0 0.0
  %269 = vmatpush2.msra.mxu0 0.0
  %270 = vmatprep.subr.mxu0 0.0
  %271 = vmatpush2.msra.mxu0 0.0
  %272 = vmatprep.subr.mxu0 0.0
  %273 = vmatpush2.msra.mxu0 0.0
  %274 = vmatprep.subr.mxu0 0.0
  %275 = vmatpush2.msra.mxu0 0.0
  %276 = vmatprep.subr.mxu0 0.0
  %277 = vmatpush2.msra.mxu0 0.0
  %278 = vmatprep.subr.mxu0 0.0
  %279 = vmatpush2.msra.mxu0 0.0
  %280 = vmatprep.mubr.f32.mxu0 0.0
  %281 = vmatmul.mubr.f32.gmra.mxu0 %v76
  %v282 = vpop.f32.mrf.mxu0
  %v283 = vadd.f32 %v42, %v282
  %v284 = vpop.f32.mrf.mxu0
  %v285 = vadd.f32 %v42, %v284
  %286 = vmatprep.mubr.f32.mxu0 0.0
  %287 = vmatmul.mubr.f32.gmra.mxu0 %v79
  %v288 = vpop.f32.mrf.mxu0
  %v289 = vadd.f32 %v47, %v288
  %v290 = vpop.f32.mrf.mxu0
  %v291 = vadd.f32 %v47, %v290
  %292 = vmatprep.mubr.f32.mxu0 0.0
  %293 = vmatmul.mubr.f32.gmra.mxu0 %v82
  %v294 = vpop.f32.mrf.mxu0
  %v295 = vadd.f32 %v52, %v294
  %v296 = vpop.f32.mrf.mxu0
  %v297 = vadd.f32 %v52, %v296
  %298 = vmatprep.mubr.f32.mxu0 0.0
  %299 = vmatmul.mubr.f32.gmra.mxu0 %v85
  %v300 = vpop.f32.mrf.mxu0
  %v301 = vadd.f32 %v57, %v300
  %v302 = vpop.f32.mrf.mxu0
  %v303 = vadd.f32 %v57, %v302
  %304 = vmatprep.mubr.f32.mxu0 0.0
  %305 = vmatmul.mubr.f32.gmra.mxu0 %v88
  %v306 = vpop.f32.mrf.mxu0
  %v307 = vadd.f32 %v62, %v306
  %v308 = vpop.f32.mrf.mxu0
  %v309 = vadd.f32 %v62, %v308
  %310 = vmatprep.mubr.f32.mxu0 0.0
  %311 = vmatmul.mubr.f32.gmra.mxu0 %v91
  %v312 = vpop.f32.mrf.mxu0
  %v313 = vadd.f32 %v67, %v312
  %v314 = vpop.f32.mrf.mxu0
  %v315 = vadd.f32 %v67, %v314
  %316 = vmatprep.mubr.f32.mxu0 0.0
  %317 = vmatmul.mubr.f32.gmra.mxu0 %v94
  %v318 = vpop.f32.mrf.mxu0
  %v319 = vadd.f32 %v72, %v318
  %v320 = vpop.f32.mrf.mxu0
  %v321 = vadd.f32 %v72, %v320
  %322 = vdwg.mxu0
  %vm323 = vcmp.ge.f32.partialorder %v176, 0.0
  %vm324 = vcmp.ge.f32.partialorder %v178, 0.0
  %vm325 = vcmp.ge.f32.partialorder %v283, 0.0
  %vm326 = vcmp.ge.f32.partialorder %v285, 0.0
  %vm327 = vcmp.ge.f32.partialorder %v182, 0.0
  %vm328 = vcmp.ge.f32.partialorder %v184, 0.0
  %vm329 = vcmp.ge.f32.partialorder %v289, 0.0
  %vm330 = vcmp.ge.f32.partialorder %v291, 0.0
  %vm331 = vcmp.ge.f32.partialorder %v188, 0.0
  %vm332 = vcmp.ge.f32.partialorder %v190, 0.0
  %vm333 = vcmp.ge.f32.partialorder %v295, 0.0
  %vm334 = vcmp.ge.f32.partialorder %v297, 0.0
  %vm335 = vcmp.ge.f32.partialorder %v194, 0.0
  %vm336 = vcmp.ge.f32.partialorder %v196, 0.0
  %vm337 = vcmp.ge.f32.partialorder %v301, 0.0
  %vm338 = vcmp.ge.f32.partialorder %v303, 0.0
  %vm339 = vcmp.ge.f32.partialorder %v200, 0.0
  %vm340 = vcmp.ge.f32.partialorder %v202, 0.0
  %vm341 = vcmp.ge.f32.partialorder %v307, 0.0
  %vm342 = vcmp.ge.f32.partialorder %v309, 0.0
  %vm343 = vcmp.ge.f32.partialorder %v206, 0.0
  %vm344 = vcmp.ge.f32.partialorder %v208, 0.0
  %vm345 = vcmp.ge.f32.partialorder %v313, 0.0
  %vm346 = vcmp.ge.f32.partialorder %v315, 0.0
  %vm347 = vcmp.ge.f32.partialorder %v212, 0.0
  %vm348 = vcmp.ge.f32.partialorder %v214, 0.0
  %vm349 = vcmp.ge.f32.partialorder %v319, 0.0
  %vm350 = vcmp.ge.f32.partialorder %v321, 0.0
  %v351 = vld [vmem:[%s3] sm:$0xff]
  %v352 = vld [vmem:[%s3 + $0x8] sm:$0xff]
  %v353 = vld [vmem:[%s3 + $0x10] sm:$0xff]
  %v354 = vld [vmem:[%s3 + $0x18] sm:$0xff]
  %v355 = vld [vmem:[%s3 + $0x20] sm:$0xff]
  %v356 = vld [vmem:[%s3 + $0x28] sm:$0xff]
  %v357 = vld [vmem:[%s3 + $0x30] sm:$0xff]
  %359 = vset.pattern.permute.xlu0 0
  %360 = vperm.xlu0 %359, %v351
  %v361 = vpop.permute.xlu0 %360
  %364 = vset.pattern.permute.xlu0 0
  %365 = vperm.xlu0 %364, %v352
  %v366 = vpop.permute.xlu0 %365
  %369 = vset.pattern.permute.xlu0 0
  %370 = vperm.xlu0 %369, %v353
  %v371 = vpop.permute.xlu0 %370
  %374 = vset.pattern.permute.xlu0 0
  %375 = vperm.xlu0 %374, %v354
  %v376 = vpop.permute.xlu0 %375
  %379 = vset.pattern.permute.xlu0 0
  %380 = vperm.xlu0 %379, %v355
  %v381 = vpop.permute.xlu0 %380
  %384 = vset.pattern.permute.xlu0 0
  %385 = vperm.xlu0 %384, %v356
  %v386 = vpop.permute.xlu0 %385
  %389 = vset.pattern.permute.xlu0 0
  %390 = vperm.xlu0 %389, %v357
  %v391 = vpop.permute.xlu0 %390
  %v393 = vmul.f32 %v361, %v176
  %v394 = vmul.f32 %v361, %v178
  %v395 = vmul.f32 %v361, %v283
  %v396 = vmul.f32 %v361, %v285
  %v397 = vmul.f32 %v366, %v182
  %v398 = vmul.f32 %v366, %v184
  %v399 = vmul.f32 %v366, %v289
  %v400 = vmul.f32 %v366, %v291
  %v401 = vmul.f32 %v371, %v188
  %v402 = vmul.f32 %v371, %v190
  %v403 = vmul.f32 %v371, %v295
  %v404 = vmul.f32 %v371, %v297
  %v405 = vmul.f32 %v376, %v194
  %v406 = vmul.f32 %v376, %v196
  %v407 = vmul.f32 %v376, %v301
  %v408 = vmul.f32 %v376, %v303
  %v409 = vmul.f32 %v381, %v200
  %v410 = vmul.f32 %v381, %v202
  %v411 = vmul.f32 %v381, %v307
  %v412 = vmul.f32 %v381, %v309
  %v413 = vmul.f32 %v386, %v206
  %v414 = vmul.f32 %v386, %v208
  %v415 = vmul.f32 %v386, %v313
  %v416 = vmul.f32 %v386, %v315
  %v417 = vmul.f32 %v391, %v212
  %v418 = vmul.f32 %v391, %v214
  %v419 = vmul.f32 %v391, %v319
  %v420 = vmul.f32 %v391, %v321
  %v421 = vsel %vm323, %v176, %v393
  %v422 = vsel %vm324, %v178, %v394
  %v423 = vsel %vm325, %v283, %v395
  %v424 = vsel %vm326, %v285, %v396
  %v425 = vsel %vm327, %v182, %v397
  %v426 = vsel %vm328, %v184, %v398
  %v427 = vsel %vm329, %v289, %v399
  %v428 = vsel %vm330, %v291, %v400
  %v429 = vsel %vm331, %v188, %v401
  %v430 = vsel %vm332, %v190, %v402
  %v431 = vsel %vm333, %v295, %v403
  %v432 = vsel %vm334, %v297, %v404
  %v433 = vsel %vm335, %v194, %v405
  %v434 = vsel %vm336, %v196, %v406
  %v435 = vsel %vm337, %v301, %v407
  %v436 = vsel %vm338, %v303, %v408
  %v437 = vsel %vm339, %v200, %v409
  %v438 = vsel %vm340, %v202, %v410
  %v439 = vsel %vm341, %v307, %v411
  %v440 = vsel %vm342, %v309, %v412
  %v441 = vsel %vm343, %v206, %v413
  %v442 = vsel %vm344, %v208, %v414
  %v443 = vsel %vm345, %v313, %v415
  %v444 = vsel %vm346, %v315, %v416
  %v445 = vsel %vm347, %v212, %v417
  %v446 = vsel %vm348, %v214, %v418
  %v447 = vsel %vm349, %v319, %v419
  %v448 = vsel %vm350, %v321, %v420
  %449 = vst [vmem:[%s4] sm:$0xff] %v421
  %450 = vst [vmem:[%s4 + $0x8] sm:$0xff] %v422
  %451 = vst [vmem:[%s4 + $0x10] sm:$0xff] %v423
  %452 = vst [vmem:[%s4 + $0x18] sm:$0xff] %v424
  %453 = vst [vmem:[%s4 + $0x20] sm:$0xff] %v425
  %454 = vst [vmem:[%s4 + $0x28] sm:$0xff] %v426
  %455 = vst [vmem:[%s4 + $0x30] sm:$0xff] %v427
  %456 = vst [vmem:[%s4 + $0x38] sm:$0xff] %v428
  %457 = vst [vmem:[%s4 + $0x40] sm:$0xff] %v429
  %458 = vst [vmem:[%s4 + $0x48] sm:$0xff] %v430
  %459 = vst [vmem:[%s4 + $0x50] sm:$0xff] %v431
  %460 = vst [vmem:[%s4 + $0x58] sm:$0xff] %v432
  %461 = vst [vmem:[%s4 + $0x60] sm:$0xff] %v433
  %462 = vst [vmem:[%s4 + $0x68] sm:$0xff] %v434
  %463 = vst [vmem:[%s4 + $0x70] sm:$0xff] %v435
  %464 = vst [vmem:[%s4 + $0x78] sm:$0xff] %v436
  %465 = vst [vmem:[%s4 + $0x80] sm:$0xff] %v437
  %466 = vst [vmem:[%s4 + $0x88] sm:$0xff] %v438
  %467 = vst [vmem:[%s4 + $0x90] sm:$0xff] %v439
  %468 = vst [vmem:[%s4 + $0x98] sm:$0xff] %v440
  %469 = vst [vmem:[%s4 + $0xa0] sm:$0xff] %v441
  %470 = vst [vmem:[%s4 + $0xa8] sm:$0xff] %v442
  %471 = vst [vmem:[%s4 + $0xb0] sm:$0xff] %v443
  %472 = vst [vmem:[%s4 + $0xb8] sm:$0xff] %v444
  %473 = vst [vmem:[%s4 + $0xc0] sm:$0xff] %v445
  %474 = vst [vmem:[%s4 + $0xc8] sm:$0xff] %v446
  %475 = vst [vmem:[%s4 + $0xd0] sm:$0xff] %v447
  %476 = vst [vmem:[%s4 + $0xd8] sm:$0xff] %v448
  // Predicated region
  $region18: #{fsrcnn_forward.14} parent=0 // pred_check
    _
  $region19: #{fsrcnn_forward.14} parent=0 // pred_check_branch
    %478 = sbr.rel (0) target = $region21
  $region20: #{fsrcnn_forward.14} parent=0 // pred_region
    _
  $region21: #{fsrcnn_forward.14} parent=0 // pred_fallthru
    _
  // Predicated region
  $region22: #{fsrcnn_forward.14} parent=0 // pred_check
    _
  $region23: #{fsrcnn_forward.14} parent=0 // pred_check_branch
    %480 = sbr.rel (0) target = $region25
  $region24: #{fsrcnn_forward.14} parent=0 // pred_region
    _
  $region25: #{fsrcnn_forward.14} parent=0 // pred_fallthru
    _

// kernel: fsrcnn_forward.15
$region0: #{fsrcnn_forward.15}
  #allocation0 [shape = 'u32[]', space=smem, size = 0x4, offset = 0x4, fixed_abs, tag = 'smem constant byte address 0x4 - core index']
  #allocation1 [shape = 'u32[144,128]{1,0:T(1,128)}', space=vmem, size = 0x12000, scoped, tag = 'internal scratch']
  %s0 = inlined_call_operand.vmem [shape: f32[12,1400], index: 0, kind: input, shape index: {}]
  %s1 = inlined_call_operand.vmem [shape: f32[1400,512], index: 1, kind: input, shape index: {}]
  %s2 = inlined_call_operand.vmem [shape: f32[12,1], index: 2, kind: input, shape index: {}]
  %s3 = inlined_call_operand.vmem [shape: f32[12,512], index: 3, kind: output, shape index: {}]
  %s4 = sld [smem:[#allocation0]]
  $region22: #{fsrcnn_forward.15} parent=0
    _
  %s6 = ssub.s32 1, %s4
  %s7 = scalar_select 0, %s6, %s4
  // Predicated region
  $region2: #{fsrcnn_forward.15} parent=0 // pred_check
    _
  $region3: #{fsrcnn_forward.15} parent=0 // pred_check_branch
    %9 = sbr.rel (0) target = $region5
  $region4: #{fsrcnn_forward.15} parent=0 // pred_region
    _
  $region5: #{fsrcnn_forward.15} parent=0 // pred_fallthru
    _
  // Predicated region
  $region6: #{fsrcnn_forward.15} parent=0 // pred_check
    _
  $region7: #{fsrcnn_forward.15} parent=0 // pred_check_branch
    %11 = sbr.rel (0) target = $region9
  $region8: #{fsrcnn_forward.15} parent=0 // pred_region
    _
  $region9: #{fsrcnn_forward.15} parent=0 // pred_fallthru
    _
  // Predicated region
  $region10: #{fsrcnn_forward.15} parent=0 // pred_check
    _
  $region11: #{fsrcnn_forward.15} parent=0 // pred_check_branch
    %13 = sbr.rel (0) target = $region13
  $region12: #{fsrcnn_forward.15} parent=0 // pred_region
    _
  $region13: #{fsrcnn_forward.15} parent=0 // pred_fallthru
    _
  %v14 = vld [vmem:[%s0] sm:$0xff]
  %v15 = vld [vmem:[%s0 + $0x8] sm:$0xff]
  %v16 = vld [vmem:[%s0 + $0x10] sm:$0xff]
  %v17 = vld [vmem:[%s0 + $0x18] sm:$0xff]
  %v18 = vld [vmem:[%s0 + $0x20] sm:$0xff]
  %v19 = vld [vmem:[%s0 + $0x28] sm:$0xff]
  %v20 = vld [vmem:[%s0 + $0x30] sm:$0xff]
  %v21 = vld [vmem:[%s0 + $0x38] sm:$0xff]
  %v22 = vld [vmem:[%s0 + $0x40] sm:$0xff]
  %v23 = vld [vmem:[%s0 + $0x48] sm:$0xff]
  %v24 = vld [vmem:[%s0 + $0x50] sm:$0xff]
  %v25 = vld [vmem:[%s0 + $0x58] sm:$0xf]
  %v26 = vld [vmem:[%s0 + $0x60] sm:$0xf]
  %v27 = vld [vmem:[%s0 + $0x68] sm:$0xf]
  %v28 = vld [vmem:[%s0 + $0x70] sm:$0xf]
  %v29 = vld [vmem:[%s0 + $0x78] sm:$0xf]
  %v30 = vld [vmem:[%s0 + $0x80] sm:$0xf]
  %v31 = vld [vmem:[%s0 + $0x88] sm:$0xf]
  %v32 = vld [vmem:[%s0 + $0x90] sm:$0xf]
  %v33 = vld [vmem:[%s0 + $0x98] sm:$0xf]
  %v34 = vld [vmem:[%s0 + $0xa0] sm:$0xf]
  %v35 = vld [vmem:[%s0 + $0xa8] sm:$0xf]
  %v36 = vld [vmem:[%s1] sm:$0xff]
  %v37 = vld [vmem:[%s1 + $0x8] sm:$0xff]
  %v38 = vld [vmem:[%s1 + $0x10] sm:$0xff]
  %v39 = vld [vmem:[%s1 + $0x18] sm:$0xff]
  %v40 = vld [vmem:[%s1 + $0x20] sm:$0xff]
  %v41 = vld [vmem:[%s1 + $0x28] sm:$0xff]
  %v42 = vld [vmem:[%s1 + $0x30] sm:$0xff]
  %v43 = vld [vmem:[%s1 + $0x38] sm:$0xff]
  %v44 = vld [vmem:[%s1 + $0x40] sm:$0xff]
  %v45 = vld [vmem:[%s1 + $0x48] sm:$0xff]
  %v46 = vld [vmem:[%s1 + $0x50] sm:$0xff]
  %v47 = vld [vmem:[%s1 + $0x58] sm:$0xff]
  %v48 = vld [vmem:[%s1 + $0x60] sm:$0xff]
  %v49 = vld [vmem:[%s1 + $0x68] sm:$0xff]
  %v50 = vld [vmem:[%s1 + $0x70] sm:$0xff]
  %v51 = vld [vmem:[%s1 + $0x78] sm:$0xff]
  %v52 = vld [vmem:[%s1 + $0x80] sm:$0xff]
  %v53 = vld [vmem:[%s1 + $0x88] sm:$0xff]
  %v54 = vld [vmem:[%s1 + $0x90] sm:$0xff]
  %v55 = vld [vmem:[%s1 + $0x98] sm:$0xff]
  %v56 = vld [vmem:[%s1 + $0xa0] sm:$0xff]
  %v57 = vld [vmem:[%s1 + $0xa8] sm:$0xff]
  %v58 = vld [vmem:[%s1 + $0xb0] sm:$0xff]
  %v59 = vld [vmem:[%s1 + $0xb8] sm:$0xff]
  %v60 = vld [vmem:[%s1 + $0xc0] sm:$0xff]
  %v61 = vld [vmem:[%s1 + $0xc8] sm:$0xff]
  %v62 = vld [vmem:[%s1 + $0xd0] sm:$0xff]
  %v63 = vld [vmem:[%s1 + $0xd8] sm:$0xff]
  %v64 = vld [vmem:[%s1 + $0xe0] sm:$0xff]
  %v65 = vld [vmem:[%s1 + $0xe8] sm:$0xff]
  %v66 = vld [vmem:[%s1 + $0xf0] sm:$0xff]
  %v67 = vld [vmem:[%s1 + $0xf8] sm:$0xff]
  %v68 = vld [vmem:[%s1 + $0x100] sm:$0xff]
  %v69 = vld [vmem:[%s1 + $0x108] sm:$0xff]
  %v70 = vld [vmem:[%s1 + $0x110] sm:$0xff]
  %v71 = vld [vmem:[%s1 + $0x118] sm:$0xff]
  %v72 = vld [vmem:[%s1 + $0x120] sm:$0xff]
  %v73 = vld [vmem:[%s1 + $0x128] sm:$0xff]
  %v74 = vld [vmem:[%s1 + $0x130] sm:$0xff]
  %v75 = vld [vmem:[%s1 + $0x138] sm:$0xff]
  %v76 = vld [vmem:[%s1 + $0x140] sm:$0xff]
  %v77 = vld [vmem:[%s1 + $0x148] sm:$0xff]
  %v78 = vld [vmem:[%s1 + $0x150] sm:$0xff]
  %v79 = vld [vmem:[%s1 + $0x158] sm:$0xff]
  %v80 = vld [vmem:[%s1 + $0x160] sm:$0xff]
  %v81 = vld [vmem:[%s1 + $0x168] sm:$0xff]
  %v82 = vld [vmem:[%s1 + $0x170] sm:$0xff]
  %v83 = vld [vmem:[%s1 + $0x178] sm:$0xff]
  %v84 = vld [vmem:[%s1 + $0x180] sm:$0xff]
  %v85 = vld [vmem:[%s1 + $0x188] sm:$0xff]
  %v86 = vld [vmem:[%s1 + $0x190] sm:$0xff]
  %v87 = vld [vmem:[%s1 + $0x198] sm:$0xff]
  %v88 = vld [vmem:[%s1 + $0x1a0] sm:$0xff]
  %v89 = vld [vmem:[%s1 + $0x1a8] sm:$0xff]
  %v90 = vld [vmem:[%s1 + $0x1b0] sm:$0xff]
  %v91 = vld [vmem:[%s1 + $0x1b8] sm:$0xff]
  %v92 = vld [vmem:[%s1 + $0x1c0] sm:$0xff]
  %v93 = vld [vmem:[%s1 + $0x1c8] sm:$0xff]
  %v94 = vld [vmem:[%s1 + $0x1d0] sm:$0xff]
  %v95 = vld [vmem:[%s1 + $0x1d8] sm:$0xff]
  %v96 = vld [vmem:[%s1 + $0x1e0] sm:$0xff]
  %v97 = vld [vmem:[%s1 + $0x1e8] sm:$0xff]
  %v98 = vld [vmem:[%s1 + $0x1f0] sm:$0xff]
  %v99 = vld [vmem:[%s1 + $0x1f8] sm:$0xff]
  %v100 = vld [vmem:[%s1 + $0x200] sm:$0xff]
  %v101 = vld [vmem:[%s1 + $0x208] sm:$0xff]
  %v102 = vld [vmem:[%s1 + $0x210] sm:$0xff]
  %v103 = vld [vmem:[%s1 + $0x218] sm:$0xff]
  %v104 = vld [vmem:[%s1 + $0x220] sm:$0xff]
  %v105 = vld [vmem:[%s1 + $0x228] sm:$0xff]
  %v106 = vld [vmem:[%s1 + $0x230] sm:$0xff]
  %v107 = vld [vmem:[%s1 + $0x238] sm:$0xff]
  %v108 = vld [vmem:[%s1 + $0x240] sm:$0xff]
  %v109 = vld [vmem:[%s1 + $0x248] sm:$0xff]
  %v110 = vld [vmem:[%s1 + $0x250] sm:$0xff]
  %v111 = vld [vmem:[%s1 + $0x258] sm:$0xff]
  %v112 = vld [vmem:[%s1 + $0x260] sm:$0xff]
  %v113 = vld [vmem:[%s1 + $0x268] sm:$0xff]
  %v114 = vld [vmem:[%s1 + $0x270] sm:$0xff]
  %v115 = vld [vmem:[%s1 + $0x278] sm:$0xff]
  %v116 = vld [vmem:[%s1 + $0x280] sm:$0xff]
  %v117 = vld [vmem:[%s1 + $0x288] sm:$0xff]
  %v118 = vld [vmem:[%s1 + $0x290] sm:$0xff]
  %v119 = vld [vmem:[%s1 + $0x298] sm:$0xff]
  %v120 = vld [vmem:[%s1 + $0x2a0] sm:$0xff]
  %v121 = vld [vmem:[%s1 + $0x2a8] sm:$0xff]
  %v122 = vld [vmem:[%s1 + $0x2b0] sm:$0xff]
  %v123 = vld [vmem:[%s1 + $0x2b8] sm:$0xff]
  %v124 = vld [vmem:[%s1 + $0x2c0] sm:$0xff]
  %v125 = vld [vmem:[%s1 + $0x2c8] sm:$0xff]
  %v126 = vld [vmem:[%s1 + $0x2d0] sm:$0xff]
  %v127 = vld [vmem:[%s1 + $0x2d8] sm:$0xff]
  %v128 = vld [vmem:[%s1 + $0x2e0] sm:$0xff]
  %v129 = vld [vmem:[%s1 + $0x2e8] sm:$0xff]
  %v130 = vld [vmem:[%s1 + $0x2f0] sm:$0xff]
  %v131 = vld [vmem:[%s1 + $0x2f8] sm:$0xff]
  %v132 = vld [vmem:[%s1 + $0x300] sm:$0xff]
  %v133 = vld [vmem:[%s1 + $0x308] sm:$0xff]
  %v134 = vld [vmem:[%s1 + $0x310] sm:$0xff]
  %v135 = vld [vmem:[%s1 + $0x318] sm:$0xff]
  %v136 = vld [vmem:[%s1 + $0x320] sm:$0xff]
  %v137 = vld [vmem:[%s1 + $0x328] sm:$0xff]
  %v138 = vld [vmem:[%s1 + $0x330] sm:$0xff]
  %v139 = vld [vmem:[%s1 + $0x338] sm:$0xff]
  %v140 = vld [vmem:[%s1 + $0x340] sm:$0xff]
  %v141 = vld [vmem:[%s1 + $0x348] sm:$0xff]
  %v142 = vld [vmem:[%s1 + $0x350] sm:$0xff]
  %v143 = vld [vmem:[%s1 + $0x358] sm:$0xff]
  %v144 = vld [vmem:[%s1 + $0x360] sm:$0xff]
  %v145 = vld [vmem:[%s1 + $0x368] sm:$0xff]
  %v146 = vld [vmem:[%s1 + $0x370] sm:$0xff]
  %v147 = vld [vmem:[%s1 + $0x378] sm:$0xff]
  %v148 = vld [vmem:[%s1 + $0x380] sm:$0xff]
  %v149 = vld [vmem:[%s1 + $0x388] sm:$0xff]
  %v150 = vld [vmem:[%s1 + $0x390] sm:$0xff]
  %v151 = vld [vmem:[%s1 + $0x398] sm:$0xff]
  %v152 = vld [vmem:[%s1 + $0x3a0] sm:$0xff]
  %v153 = vld [vmem:[%s1 + $0x3a8] sm:$0xff]
  %v154 = vld [vmem:[%s1 + $0x3b0] sm:$0xff]
  %v155 = vld [vmem:[%s1 + $0x3b8] sm:$0xff]
  %v156 = vld [vmem:[%s1 + $0x3c0] sm:$0xff]
  %v157 = vld [vmem:[%s1 + $0x3c8] sm:$0xff]
  %v158 = vld [vmem:[%s1 + $0x3d0] sm:$0xff]
  %v159 = vld [vmem:[%s1 + $0x3d8] sm:$0xff]
  %v160 = vld [vmem:[%s1 + $0x3e0] sm:$0xff]
  %v161 = vld [vmem:[%s1 + $0x3e8] sm:$0xff]
  %v162 = vld [vmem:[%s1 + $0x3f0] sm:$0xff]
  %v163 = vld [vmem:[%s1 + $0x3f8] sm:$0xff]
  %v164 = vld [vmem:[%s1 + $0x400] sm:$0xff]
  %v165 = vld [vmem:[%s1 + $0x408] sm:$0xff]
  %v166 = vld [vmem:[%s1 + $0x410] sm:$0xff]
  %v167 = vld [vmem:[%s1 + $0x418] sm:$0xff]
  %v168 = vld [vmem:[%s1 + $0x420] sm:$0xff]
  %v169 = vld [vmem:[%s1 + $0x428] sm:$0xff]
  %v170 = vld [vmem:[%s1 + $0x430] sm:$0xff]
  %v171 = vld [vmem:[%s1 + $0x438] sm:$0xff]
  %v172 = vld [vmem:[%s1 + $0x440] sm:$0xff]
  %v173 = vld [vmem:[%s1 + $0x448] sm:$0xff]
  %v174 = vld [vmem:[%s1 + $0x450] sm:$0xff]
  %v175 = vld [vmem:[%s1 + $0x458] sm:$0xff]
  %v176 = vld [vmem:[%s1 + $0x460] sm:$0xff]
  %v177 = vld [vmem:[%s1 + $0x468] sm:$0xff]
  %v178 = vld [vmem:[%s1 + $0x470] sm:$0xff]
  %v179 = vld [vmem:[%s1 + $0x478] sm:$0xff]
  %v180 = vld [vmem:[%s1 + $0x480] sm:$0xff]
  %v181 = vld [vmem:[%s1 + $0x488] sm:$0xff]
  %v182 = vld [vmem:[%s1 + $0x490] sm:$0xff]
  %v183 = vld [vmem:[%s1 + $0x498] sm:$0xff]
  %v184 = vld [vmem:[%s1 + $0x4a0] sm:$0xff]
  %v185 = vld [vmem:[%s1 + $0x4a8] sm:$0xff]
  %v186 = vld [vmem:[%s1 + $0x4b0] sm:$0xff]
  %v187 = vld [vmem:[%s1 + $0x4b8] sm:$0xff]
  %v188 = vld [vmem:[%s1 + $0x4c0] sm:$0xff]
  %v189 = vld [vmem:[%s1 + $0x4c8] sm:$0xff]
  %v190 = vld [vmem:[%s1 + $0x4d0] sm:$0xff]
  %v191 = vld [vmem:[%s1 + $0x4d8] sm:$0xff]
  %v192 = vld [vmem:[%s1 + $0x4e0] sm:$0xff]
  %v193 = vld [vmem:[%s1 + $0x4e8] sm:$0xff]
  %v194 = vld [vmem:[%s1 + $0x4f0] sm:$0xff]
  %v195 = vld [vmem:[%s1 + $0x4f8] sm:$0xff]
  %v196 = vld [vmem:[%s1 + $0x500] sm:$0xff]
  %v197 = vld [vmem:[%s1 + $0x508] sm:$0xff]
  %v198 = vld [vmem:[%s1 + $0x510] sm:$0xff]
  %v199 = vld [vmem:[%s1 + $0x518] sm:$0xff]
  %v200 = vld [vmem:[%s1 + $0x520] sm:$0xff]
  %v201 = vld [vmem:[%s1 + $0x528] sm:$0xff]
  %v202 = vld [vmem:[%s1 + $0x530] sm:$0xff]
  %v203 = vld [vmem:[%s1 + $0x538] sm:$0xff]
  %v204 = vld [vmem:[%s1 + $0x540] sm:$0xff]
  %v205 = vld [vmem:[%s1 + $0x548] sm:$0xff]
  %v206 = vld [vmem:[%s1 + $0x550] sm:$0xff]
  %v207 = vld [vmem:[%s1 + $0x558] sm:$0xff]
  %v208 = vld [vmem:[%s1 + $0x560] sm:$0xff]
  %v209 = vld [vmem:[%s1 + $0x568] sm:$0xff]
  %v210 = vld [vmem:[%s1 + $0x570] sm:$0xff]
  %v211 = vld [vmem:[%s1 + $0x578] sm:$0xff]
  %v212 = vld [vmem:[%s1 + $0x580] sm:$0xff]
  %v213 = vld [vmem:[%s1 + $0x588] sm:$0xff]
  %v214 = vld [vmem:[%s1 + $0x590] sm:$0xff]
  %v215 = vld [vmem:[%s1 + $0x598] sm:$0xff]
  %v216 = vld [vmem:[%s1 + $0x5a0] sm:$0xff]
  %v217 = vld [vmem:[%s1 + $0x5a8] sm:$0xff]
  %v218 = vld [vmem:[%s1 + $0x5b0] sm:$0xff]
  %v219 = vld [vmem:[%s1 + $0x5b8] sm:$0xff]
  %v220 = vld [vmem:[%s1 + $0x5c0] sm:$0xff]
  %v221 = vld [vmem:[%s1 + $0x5c8] sm:$0xff]
  %v222 = vld [vmem:[%s1 + $0x5d0] sm:$0xff]
  %v223 = vld [vmem:[%s1 + $0x5d8] sm:$0xff]
  %v224 = vld [vmem:[%s1 + $0x5e0] sm:$0xff]
  %v225 = vld [vmem:[%s1 + $0x5e8] sm:$0xff]
  %v226 = vld [vmem:[%s1 + $0x5f0] sm:$0xff]
  %v227 = vld [vmem:[%s1 + $0x5f8] sm:$0xff]
  %v228 = vld [vmem:[%s1 + $0x600] sm:$0xff]
  %v229 = vld [vmem:[%s1 + $0x608] sm:$0xff]
  %v230 = vld [vmem:[%s1 + $0x610] sm:$0xff]
  %v231 = vld [vmem:[%s1 + $0x618] sm:$0xff]
  %v232 = vld [vmem:[%s1 + $0x620] sm:$0xff]
  %v233 = vld [vmem:[%s1 + $0x628] sm:$0xff]
  %v234 = vld [vmem:[%s1 + $0x630] sm:$0xff]
  %v235 = vld [vmem:[%s1 + $0x638] sm:$0xff]
  %v236 = vld [vmem:[%s1 + $0x640] sm:$0xff]
  %v237 = vld [vmem:[%s1 + $0x648] sm:$0xff]
  %v238 = vld [vmem:[%s1 + $0x650] sm:$0xff]
  %v239 = vld [vmem:[%s1 + $0x658] sm:$0xff]
  %v240 = vld [vmem:[%s1 + $0x660] sm:$0xff]
  %v241 = vld [vmem:[%s1 + $0x668] sm:$0xff]
  %v242 = vld [vmem:[%s1 + $0x670] sm:$0xff]
  %v243 = vld [vmem:[%s1 + $0x678] sm:$0xff]
  %v244 = vld [vmem:[%s1 + $0x680] sm:$0xff]
  %v245 = vld [vmem:[%s1 + $0x688] sm:$0xff]
  %v246 = vld [vmem:[%s1 + $0x690] sm:$0xff]
  %v247 = vld [vmem:[%s1 + $0x698] sm:$0xff]
  %v248 = vld [vmem:[%s1 + $0x6a0] sm:$0xff]
  %v249 = vld [vmem:[%s1 + $0x6a8] sm:$0xff]
  %v250 = vld [vmem:[%s1 + $0x6b0] sm:$0xff]
  %v251 = vld [vmem:[%s1 + $0x6b8] sm:$0xff]
  %v252 = vld [vmem:[%s1 + $0x6c0] sm:$0xff]
  %v253 = vld [vmem:[%s1 + $0x6c8] sm:$0xff]
  %v254 = vld [vmem:[%s1 + $0x6d0] sm:$0xff]
  %v255 = vld [vmem:[%s1 + $0x6d8] sm:$0xff]
  %v256 = vld [vmem:[%s1 + $0x6e0] sm:$0xff]
  %v257 = vld [vmem:[%s1 + $0x6e8] sm:$0xff]
  %v258 = vld [vmem:[%s1 + $0x6f0] sm:$0xff]
  %v259 = vld [vmem:[%s1 + $0x6f8] sm:$0xff]
  %v260 = vld [vmem:[%s1 + $0x700] sm:$0xff]
  %v261 = vld [vmem:[%s1 + $0x708] sm:$0xff]
  %v262 = vld [vmem:[%s1 + $0x710] sm:$0xff]
  %v263 = vld [vmem:[%s1 + $0x718] sm:$0xff]
  %v264 = vld [vmem:[%s1 + $0x720] sm:$0xff]
  %v265 = vld [vmem:[%s1 + $0x728] sm:$0xff]
  %v266 = vld [vmem:[%s1 + $0x730] sm:$0xff]
  %v267 = vld [vmem:[%s1 + $0x738] sm:$0xff]
  %v268 = vld [vmem:[%s1 + $0x740] sm:$0xff]
  %v269 = vld [vmem:[%s1 + $0x748] sm:$0xff]
  %v270 = vld [vmem:[%s1 + $0x750] sm:$0xff]
  %v271 = vld [vmem:[%s1 + $0x758] sm:$0xff]
  %v272 = vld [vmem:[%s1 + $0x760] sm:$0xff]
  %v273 = vld [vmem:[%s1 + $0x768] sm:$0xff]
  %v274 = vld [vmem:[%s1 + $0x770] sm:$0xff]
  %v275 = vld [vmem:[%s1 + $0x778] sm:$0xff]
  %v276 = vld [vmem:[%s1 + $0x780] sm:$0xff]
  %v277 = vld [vmem:[%s1 + $0x788] sm:$0xff]
  %v278 = vld [vmem:[%s1 + $0x790] sm:$0xff]
  %v279 = vld [vmem:[%s1 + $0x798] sm:$0xff]
  %v280 = vld [vmem:[%s1 + $0x7a0] sm:$0xff]
  %v281 = vld [vmem:[%s1 + $0x7a8] sm:$0xff]
  %v282 = vld [vmem:[%s1 + $0x7b0] sm:$0xff]
  %v283 = vld [vmem:[%s1 + $0x7b8] sm:$0xff]
  %v284 = vld [vmem:[%s1 + $0x7c0] sm:$0xff]
  %v285 = vld [vmem:[%s1 + $0x7c8] sm:$0xff]
  %v286 = vld [vmem:[%s1 + $0x7d0] sm:$0xff]
  %v287 = vld [vmem:[%s1 + $0x7d8] sm:$0xff]
  %v288 = vld [vmem:[%s1 + $0x7e0] sm:$0xff]
  %v289 = vld [vmem:[%s1 + $0x7e8] sm:$0xff]
  %v290 = vld [vmem:[%s1 + $0x7f0] sm:$0xff]
  %v291 = vld [vmem:[%s1 + $0x7f8] sm:$0xff]
  %v292 = vld [vmem:[%s1 + $0x800] sm:$0xff]
  %v293 = vld [vmem:[%s1 + $0x808] sm:$0xff]
  %v294 = vld [vmem:[%s1 + $0x810] sm:$0xff]
  %v295 = vld [vmem:[%s1 + $0x818] sm:$0xff]
  %v296 = vld [vmem:[%s1 + $0x820] sm:$0xff]
  %v297 = vld [vmem:[%s1 + $0x828] sm:$0xff]
  %v298 = vld [vmem:[%s1 + $0x830] sm:$0xff]
  %v299 = vld [vmem:[%s1 + $0x838] sm:$0xff]
  %v300 = vld [vmem:[%s1 + $0x840] sm:$0xff]
  %v301 = vld [vmem:[%s1 + $0x848] sm:$0xff]
  %v302 = vld [vmem:[%s1 + $0x850] sm:$0xff]
  %v303 = vld [vmem:[%s1 + $0x858] sm:$0xff]
  %v304 = vld [vmem:[%s1 + $0x860] sm:$0xff]
  %v305 = vld [vmem:[%s1 + $0x868] sm:$0xff]
  %v306 = vld [vmem:[%s1 + $0x870] sm:$0xff]
  %v307 = vld [vmem:[%s1 + $0x878] sm:$0xff]
  %v308 = vld [vmem:[%s1 + $0x880] sm:$0xff]
  %v309 = vld [vmem:[%s1 + $0x888] sm:$0xff]
  %v310 = vld [vmem:[%s1 + $0x890] sm:$0xff]
  %v311 = vld [vmem:[%s1 + $0x898] sm:$0xff]
  %v312 = vld [vmem:[%s1 + $0x8a0] sm:$0xff]
  %v313 = vld [vmem:[%s1 + $0x8a8] sm:$0xff]
  %v314 = vld [vmem:[%s1 + $0x8b0] sm:$0xff]
  %v315 = vld [vmem:[%s1 + $0x8b8] sm:$0xff]
  %v316 = vld [vmem:[%s1 + $0x8c0] sm:$0xff]
  %v317 = vld [vmem:[%s1 + $0x8c8] sm:$0xff]
  %v318 = vld [vmem:[%s1 + $0x8d0] sm:$0xff]
  %v319 = vld [vmem:[%s1 + $0x8d8] sm:$0xff]
  %v320 = vld [vmem:[%s1 + $0x8e0] sm:$0xff]
  %v321 = vld [vmem:[%s1 + $0x8e8] sm:$0xff]
  %v322 = vld [vmem:[%s1 + $0x8f0] sm:$0xff]
  %v323 = vld [vmem:[%s1 + $0x8f8] sm:$0xff]
  %v324 = vld [vmem:[%s1 + $0x900] sm:$0xff]
  %v325 = vld [vmem:[%s1 + $0x908] sm:$0xff]
  %v326 = vld [vmem:[%s1 + $0x910] sm:$0xff]
  %v327 = vld [vmem:[%s1 + $0x918] sm:$0xff]
  %v328 = vld [vmem:[%s1 + $0x920] sm:$0xff]
  %v329 = vld [vmem:[%s1 + $0x928] sm:$0xff]
  %v330 = vld [vmem:[%s1 + $0x930] sm:$0xff]
  %v331 = vld [vmem:[%s1 + $0x938] sm:$0xff]
  %v332 = vld [vmem:[%s1 + $0x940] sm:$0xff]
  %v333 = vld [vmem:[%s1 + $0x948] sm:$0xff]
  %v334 = vld [vmem:[%s1 + $0x950] sm:$0xff]
  %v335 = vld [vmem:[%s1 + $0x958] sm:$0xff]
  %v336 = vld [vmem:[%s1 + $0x960] sm:$0xff]
  %v337 = vld [vmem:[%s1 + $0x968] sm:$0xff]
  %v338 = vld [vmem:[%s1 + $0x970] sm:$0xff]
  %v339 = vld [vmem:[%s1 + $0x978] sm:$0xff]
  %v340 = vld [vmem:[%s1 + $0x980] sm:$0xff]
  %v341 = vld [vmem:[%s1 + $0x988] sm:$0xff]
  %v342 = vld [vmem:[%s1 + $0x990] sm:$0xff]
  %v343 = vld [vmem:[%s1 + $0x998] sm:$0xff]
  %v344 = vld [vmem:[%s1 + $0x9a0] sm:$0xff]
  %v345 = vld [vmem:[%s1 + $0x9a8] sm:$0xff]
  %v346 = vld [vmem:[%s1 + $0x9b0] sm:$0xff]
  %v347 = vld [vmem:[%s1 + $0x9b8] sm:$0xff]
  %v348 = vld [vmem:[%s1 + $0x9c0] sm:$0xff]
  %v349 = vld [vmem:[%s1 + $0x9c8] sm:$0xff]
  %v350 = vld [vmem:[%s1 + $0x9d0] sm:$0xff]
  %v351 = vld [vmem:[%s1 + $0x9d8] sm:$0xff]
  %v352 = vld [vmem:[%s1 + $0x9e0] sm:$0xff]
  %v353 = vld [vmem:[%s1 + $0x9e8] sm:$0xff]
  %v354 = vld [vmem:[%s1 + $0x9f0] sm:$0xff]
  %v355 = vld [vmem:[%s1 + $0x9f8] sm:$0xff]
  %v356 = vld [vmem:[%s1 + $0xa00] sm:$0xff]
  %v357 = vld [vmem:[%s1 + $0xa08] sm:$0xff]
  %v358 = vld [vmem:[%s1 + $0xa10] sm:$0xff]
  %v359 = vld [vmem:[%s1 + $0xa18] sm:$0xff]
  %v360 = vld [vmem:[%s1 + $0xa20] sm:$0xff]
  %v361 = vld [vmem:[%s1 + $0xa28] sm:$0xff]
  %v362 = vld [vmem:[%s1 + $0xa30] sm:$0xff]
  %v363 = vld [vmem:[%s1 + $0xa38] sm:$0xff]
  %v364 = vld [vmem:[%s1 + $0xa40] sm:$0xff]
  %v365 = vld [vmem:[%s1 + $0xa48] sm:$0xff]
  %v366 = vld [vmem:[%s1 + $0xa50] sm:$0xff]
  %v367 = vld [vmem:[%s1 + $0xa58] sm:$0xff]
  %v368 = vld [vmem:[%s1 + $0xa60] sm:$0xff]
  %v369 = vld [vmem:[%s1 + $0xa68] sm:$0xff]
  %v370 = vld [vmem:[%s1 + $0xa70] sm:$0xff]
  %v371 = vld [vmem:[%s1 + $0xa78] sm:$0xff]
  %v372 = vld [vmem:[%s1 + $0xa80] sm:$0xff]
  %v373 = vld [vmem:[%s1 + $0xa88] sm:$0xff]
  %v374 = vld [vmem:[%s1 + $0xa90] sm:$0xff]
  %v375 = vld [vmem:[%s1 + $0xa98] sm:$0xff]
  %v376 = vld [vmem:[%s1 + $0xaa0] sm:$0xff]
  %v377 = vld [vmem:[%s1 + $0xaa8] sm:$0xff]
  %v378 = vld [vmem:[%s1 + $0xab0] sm:$0xff]
  %v379 = vld [vmem:[%s1 + $0xab8] sm:$0xff]
  %v380 = vld [vmem:[%s1 + $0xac0] sm:$0xff]
  %v381 = vld [vmem:[%s1 + $0xac8] sm:$0xff]
  %v382 = vld [vmem:[%s1 + $0xad0] sm:$0xff]
  %v383 = vld [vmem:[%s1 + $0xad8] sm:$0xff]
  %v384 = vld [vmem:[%s1 + $0xae0] sm:$0xff]
  %v385 = vld [vmem:[%s1 + $0xae8] sm:$0xff]
  %v386 = vld [vmem:[%s1 + $0xaf0] sm:$0xff]
  %v387 = vld [vmem:[%s1 + $0xaf8] sm:$0xff]
  %v388 = vld [vmem:[%s1 + $0xb00] sm:$0xff]
  %v389 = vld [vmem:[%s1 + $0xb08] sm:$0xff]
  %v390 = vld [vmem:[%s1 + $0xb10] sm:$0xff]
  %v391 = vld [vmem:[%s1 + $0xb18] sm:$0xff]
  %v392 = vld [vmem:[%s1 + $0xb20] sm:$0xff]
  %v393 = vld [vmem:[%s1 + $0xb28] sm:$0xff]
  %v394 = vld [vmem:[%s1 + $0xb30] sm:$0xff]
  %v395 = vld [vmem:[%s1 + $0xb38] sm:$0xff]
  %v396 = vld [vmem:[%s1 + $0xb40] sm:$0xff]
  %v397 = vld [vmem:[%s1 + $0xb48] sm:$0xff]
  %v398 = vld [vmem:[%s1 + $0xb50] sm:$0xff]
  %v399 = vld [vmem:[%s1 + $0xb58] sm:$0xff]
  %v400 = vld [vmem:[%s1 + $0xb60] sm:$0xff]
  %v401 = vld [vmem:[%s1 + $0xb68] sm:$0xff]
  %v402 = vld [vmem:[%s1 + $0xb70] sm:$0xff]
  %v403 = vld [vmem:[%s1 + $0xb78] sm:$0xff]
  %v404 = vld [vmem:[%s1 + $0xb80] sm:$0xff]
  %v405 = vld [vmem:[%s1 + $0xb88] sm:$0xff]
  %v406 = vld [vmem:[%s1 + $0xb90] sm:$0xff]
  %v407 = vld [vmem:[%s1 + $0xb98] sm:$0xff]
  %v408 = vld [vmem:[%s1 + $0xba0] sm:$0xff]
  %v409 = vld [vmem:[%s1 + $0xba8] sm:$0xff]
  %v410 = vld [vmem:[%s1 + $0xbb0] sm:$0xff]
  %v411 = vld [vmem:[%s1 + $0xbb8] sm:$0xff]
  %v412 = vld [vmem:[%s1 + $0xbc0] sm:$0xff]
  %v413 = vld [vmem:[%s1 + $0xbc8] sm:$0xff]
  %v414 = vld [vmem:[%s1 + $0xbd0] sm:$0xff]
  %v415 = vld [vmem:[%s1 + $0xbd8] sm:$0xff]
  %v416 = vld [vmem:[%s1 + $0xbe0] sm:$0xff]
  %v417 = vld [vmem:[%s1 + $0xbe8] sm:$0xff]
  %v418 = vld [vmem:[%s1 + $0xbf0] sm:$0xff]
  %v419 = vld [vmem:[%s1 + $0xbf8] sm:$0xff]
  %v420 = vld [vmem:[%s1 + $0xc00] sm:$0xff]
  %v421 = vld [vmem:[%s1 + $0xc08] sm:$0xff]
  %v422 = vld [vmem:[%s1 + $0xc10] sm:$0xff]
  %v423 = vld [vmem:[%s1 + $0xc18] sm:$0xff]
  %v424 = vld [vmem:[%s1 + $0xc20] sm:$0xff]
  %v425 = vld [vmem:[%s1 + $0xc28] sm:$0xff]
  %v426 = vld [vmem:[%s1 + $0xc30] sm:$0xff]
  %v427 = vld [vmem:[%s1 + $0xc38] sm:$0xff]
  %v428 = vld [vmem:[%s1 + $0xc40] sm:$0xff]
  %v429 = vld [vmem:[%s1 + $0xc48] sm:$0xff]
  %v430 = vld [vmem:[%s1 + $0xc50] sm:$0xff]
  %v431 = vld [vmem:[%s1 + $0xc58] sm:$0xff]
  %v432 = vld [vmem:[%s1 + $0xc60] sm:$0xff]
  %v433 = vld [vmem:[%s1 + $0xc68] sm:$0xff]
  %v434 = vld [vmem:[%s1 + $0xc70] sm:$0xff]
  %v435 = vld [vmem:[%s1 + $0xc78] sm:$0xff]
  %v436 = vld [vmem:[%s1 + $0xc80] sm:$0xff]
  %v437 = vld [vmem:[%s1 + $0xc88] sm:$0xff]
  %v438 = vld [vmem:[%s1 + $0xc90] sm:$0xff]
  %v439 = vld [vmem:[%s1 + $0xc98] sm:$0xff]
  %v440 = vld [vmem:[%s1 + $0xca0] sm:$0xff]
  %v441 = vld [vmem:[%s1 + $0xca8] sm:$0xff]
  %v442 = vld [vmem:[%s1 + $0xcb0] sm:$0xff]
  %v443 = vld [vmem:[%s1 + $0xcb8] sm:$0xff]
  %v444 = vld [vmem:[%s1 + $0xcc0] sm:$0xff]
  %v445 = vld [vmem:[%s1 + $0xcc8] sm:$0xff]
  %v446 = vld [vmem:[%s1 + $0xcd0] sm:$0xff]
  %v447 = vld [vmem:[%s1 + $0xcd8] sm:$0xff]
  %v448 = vld [vmem:[%s1 + $0xce0] sm:$0xff]
  %v449 = vld [vmem:[%s1 + $0xce8] sm:$0xff]
  %v450 = vld [vmem:[%s1 + $0xcf0] sm:$0xff]
  %v451 = vld [vmem:[%s1 + $0xcf8] sm:$0xff]
  %v452 = vld [vmem:[%s1 + $0xd00] sm:$0xff]
  %v453 = vld [vmem:[%s1 + $0xd08] sm:$0xff]
  %v454 = vld [vmem:[%s1 + $0xd10] sm:$0xff]
  %v455 = vld [vmem:[%s1 + $0xd18] sm:$0xff]
  %v456 = vld [vmem:[%s1 + $0xd20] sm:$0xff]
  %v457 = vld [vmem:[%s1 + $0xd28] sm:$0xff]
  %v458 = vld [vmem:[%s1 + $0xd30] sm:$0xff]
  %v459 = vld [vmem:[%s1 + $0xd38] sm:$0xff]
  %v460 = vld [vmem:[%s1 + $0xd40] sm:$0xff]
  %v461 = vld [vmem:[%s1 + $0xd48] sm:$0xff]
  %v462 = vld [vmem:[%s1 + $0xd50] sm:$0xff]
  %v463 = vld [vmem:[%s1 + $0xd58] sm:$0xff]
  %v464 = vld [vmem:[%s1 + $0xd60] sm:$0xff]
  %v465 = vld [vmem:[%s1 + $0xd68] sm:$0xff]
  %v466 = vld [vmem:[%s1 + $0xd70] sm:$0xff]
  %v467 = vld [vmem:[%s1 + $0xd78] sm:$0xff]
  %v468 = vld [vmem:[%s1 + $0xd80] sm:$0xff]
  %v469 = vld [vmem:[%s1 + $0xd88] sm:$0xff]
  %v470 = vld [vmem:[%s1 + $0xd90] sm:$0xff]
  %v471 = vld [vmem:[%s1 + $0xd98] sm:$0xff]
  %v472 = vld [vmem:[%s1 + $0xda0] sm:$0xff]
  %v473 = vld [vmem:[%s1 + $0xda8] sm:$0xff]
  %v474 = vld [vmem:[%s1 + $0xdb0] sm:$0xff]
  %v475 = vld [vmem:[%s1 + $0xdb8] sm:$0xff]
  %v476 = vld [vmem:[%s1 + $0xdc0] sm:$0xff]
  %v477 = vld [vmem:[%s1 + $0xdc8] sm:$0xff]
  %v478 = vld [vmem:[%s1 + $0xdd0] sm:$0xff]
  %v479 = vld [vmem:[%s1 + $0xdd8] sm:$0xff]
  %v480 = vld [vmem:[%s1 + $0xde0] sm:$0xff]
  %v481 = vld [vmem:[%s1 + $0xde8] sm:$0xff]
  %v482 = vld [vmem:[%s1 + $0xdf0] sm:$0xff]
  %v483 = vld [vmem:[%s1 + $0xdf8] sm:$0xff]
  %v484 = vld [vmem:[%s1 + $0xe00] sm:$0xff]
  %v485 = vld [vmem:[%s1 + $0xe08] sm:$0xff]
  %v486 = vld [vmem:[%s1 + $0xe10] sm:$0xff]
  %v487 = vld [vmem:[%s1 + $0xe18] sm:$0xff]
  %v488 = vld [vmem:[%s1 + $0xe20] sm:$0xff]
  %v489 = vld [vmem:[%s1 + $0xe28] sm:$0xff]
  %v490 = vld [vmem:[%s1 + $0xe30] sm:$0xff]
  %v491 = vld [vmem:[%s1 + $0xe38] sm:$0xff]
  %v492 = vld [vmem:[%s1 + $0xe40] sm:$0xff]
  %v493 = vld [vmem:[%s1 + $0xe48] sm:$0xff]
  %v494 = vld [vmem:[%s1 + $0xe50] sm:$0xff]
  %v495 = vld [vmem:[%s1 + $0xe58] sm:$0xff]
  %v496 = vld [vmem:[%s1 + $0xe60] sm:$0xff]
  %v497 = vld [vmem:[%s1 + $0xe68] sm:$0xff]
  %v498 = vld [vmem:[%s1 + $0xe70] sm:$0xff]
  %v499 = vld [vmem:[%s1 + $0xe78] sm:$0xff]
  %v500 = vld [vmem:[%s1 + $0xe80] sm:$0xff]
  %v501 = vld [vmem:[%s1 + $0xe88] sm:$0xff]
  %v502 = vld [vmem:[%s1 + $0xe90] sm:$0xff]
  %v503 = vld [vmem:[%s1 + $0xe98] sm:$0xff]
  %v504 = vld [vmem:[%s1 + $0xea0] sm:$0xff]
  %v505 = vld [vmem:[%s1 + $0xea8] sm:$0xff]
  %v506 = vld [vmem:[%s1 + $0xeb0] sm:$0xff]
  %v507 = vld [vmem:[%s1 + $0xeb8] sm:$0xff]
  %v508 = vld [vmem:[%s1 + $0xec0] sm:$0xff]
  %v509 = vld [vmem:[%s1 + $0xec8] sm:$0xff]
  %v510 = vld [vmem:[%s1 + $0xed0] sm:$0xff]
  %v511 = vld [vmem:[%s1 + $0xed8] sm:$0xff]
  %v512 = vld [vmem:[%s1 + $0xee0] sm:$0xff]
  %v513 = vld [vmem:[%s1 + $0xee8] sm:$0xff]
  %v514 = vld [vmem:[%s1 + $0xef0] sm:$0xff]
  %v515 = vld [vmem:[%s1 + $0xef8] sm:$0xff]
  %v516 = vld [vmem:[%s1 + $0xf00] sm:$0xff]
  %v517 = vld [vmem:[%s1 + $0xf08] sm:$0xff]
  %v518 = vld [vmem:[%s1 + $0xf10] sm:$0xff]
  %v519 = vld [vmem:[%s1 + $0xf18] sm:$0xff]
  %v520 = vld [vmem:[%s1 + $0xf20] sm:$0xff]
  %v521 = vld [vmem:[%s1 + $0xf28] sm:$0xff]
  %v522 = vld [vmem:[%s1 + $0xf30] sm:$0xff]
  %v523 = vld [vmem:[%s1 + $0xf38] sm:$0xff]
  %v524 = vld [vmem:[%s1 + $0xf40] sm:$0xff]
  %v525 = vld [vmem:[%s1 + $0xf48] sm:$0xff]
  %v526 = vld [vmem:[%s1 + $0xf50] sm:$0xff]
  %v527 = vld [vmem:[%s1 + $0xf58] sm:$0xff]
  %v528 = vld [vmem:[%s1 + $0xf60] sm:$0xff]
  %v529 = vld [vmem:[%s1 + $0xf68] sm:$0xff]
  %v530 = vld [vmem:[%s1 + $0xf70] sm:$0xff]
  %v531 = vld [vmem:[%s1 + $0xf78] sm:$0xff]
  %v532 = vld [vmem:[%s1 + $0xf80] sm:$0xff]
  %v533 = vld [vmem:[%s1 + $0xf88] sm:$0xff]
  %v534 = vld [vmem:[%s1 + $0xf90] sm:$0xff]
  %v535 = vld [vmem:[%s1 + $0xf98] sm:$0xff]
  %v536 = vld [vmem:[%s1 + $0xfa0] sm:$0xff]
  %v537 = vld [vmem:[%s1 + $0xfa8] sm:$0xff]
  %v538 = vld [vmem:[%s1 + $0xfb0] sm:$0xff]
  %v539 = vld [vmem:[%s1 + $0xfb8] sm:$0xff]
  %v540 = vld [vmem:[%s1 + $0xfc0] sm:$0xff]
  %v541 = vld [vmem:[%s1 + $0xfc8] sm:$0xff]
  %v542 = vld [vmem:[%s1 + $0xfd0] sm:$0xff]
  %v543 = vld [vmem:[%s1 + $0xfd8] sm:$0xff]
  %v544 = vld [vmem:[%s1 + $0xfe0] sm:$0xff]
  %v545 = vld [vmem:[%s1 + $0xfe8] sm:$0xff]
  %v546 = vld [vmem:[%s1 + $0xff0] sm:$0xff]
  %v547 = vld [vmem:[%s1 + $0xff8] sm:$0xff]
  %v548 = vld [vmem:[%s1 + $0x1000] sm:$0xff]
  %v549 = vld [vmem:[%s1 + $0x1008] sm:$0xff]
  %v550 = vld [vmem:[%s1 + $0x1010] sm:$0xff]
  %v551 = vld [vmem:[%s1 + $0x1018] sm:$0xff]
  %v552 = vld [vmem:[%s1 + $0x1020] sm:$0xff]
  %v553 = vld [vmem:[%s1 + $0x1028] sm:$0xff]
  %v554 = vld [vmem:[%s1 + $0x1030] sm:$0xff]
  %v555 = vld [vmem:[%s1 + $0x1038] sm:$0xff]
  %v556 = vld [vmem:[%s1 + $0x1040] sm:$0xff]
  %v557 = vld [vmem:[%s1 + $0x1048] sm:$0xff]
  %v558 = vld [vmem:[%s1 + $0x1050] sm:$0xff]
  %v559 = vld [vmem:[%s1 + $0x1058] sm:$0xff]
  %v560 = vld [vmem:[%s1 + $0x1060] sm:$0xff]
  %v561 = vld [vmem:[%s1 + $0x1068] sm:$0xff]
  %v562 = vld [vmem:[%s1 + $0x1070] sm:$0xff]
  %v563 = vld [vmem:[%s1 + $0x1078] sm:$0xff]
  %v564 = vld [vmem:[%s1 + $0x1080] sm:$0xff]
  %v565 = vld [vmem:[%s1 + $0x1088] sm:$0xff]
  %v566 = vld [vmem:[%s1 + $0x1090] sm:$0xff]
  %v567 = vld [vmem:[%s1 + $0x1098] sm:$0xff]
  %v568 = vld [vmem:[%s1 + $0x10a0] sm:$0xff]
  %v569 = vld [vmem:[%s1 + $0x10a8] sm:$0xff]
  %v570 = vld [vmem:[%s1 + $0x10b0] sm:$0xff]
  %v571 = vld [vmem:[%s1 + $0x10b8] sm:$0xff]
  %v572 = vld [vmem:[%s1 + $0x10c0] sm:$0xff]
  %v573 = vld [vmem:[%s1 + $0x10c8] sm:$0xff]
  %v574 = vld [vmem:[%s1 + $0x10d0] sm:$0xff]
  %v575 = vld [vmem:[%s1 + $0x10d8] sm:$0xff]
  %v576 = vld [vmem:[%s1 + $0x10e0] sm:$0xff]
  %v577 = vld [vmem:[%s1 + $0x10e8] sm:$0xff]
  %v578 = vld [vmem:[%s1 + $0x10f0] sm:$0xff]
  %v579 = vld [vmem:[%s1 + $0x10f8] sm:$0xff]
  %v580 = vld [vmem:[%s1 + $0x1100] sm:$0xff]
  %v581 = vld [vmem:[%s1 + $0x1108] sm:$0xff]
  %v582 = vld [vmem:[%s1 + $0x1110] sm:$0xff]
  %v583 = vld [vmem:[%s1 + $0x1118] sm:$0xff]
  %v584 = vld [vmem:[%s1 + $0x1120] sm:$0xff]
  %v585 = vld [vmem:[%s1 + $0x1128] sm:$0xff]
  %v586 = vld [vmem:[%s1 + $0x1130] sm:$0xff]
  %v587 = vld [vmem:[%s1 + $0x1138] sm:$0xff]
  %v588 = vld [vmem:[%s1 + $0x1140] sm:$0xff]
  %v589 = vld [vmem:[%s1 + $0x1148] sm:$0xff]
  %v590 = vld [vmem:[%s1 + $0x1150] sm:$0xff]
  %v591 = vld [vmem:[%s1 + $0x1158] sm:$0xff]
  %v592 = vld [vmem:[%s1 + $0x1160] sm:$0xff]
  %v593 = vld [vmem:[%s1 + $0x1168] sm:$0xff]
  %v594 = vld [vmem:[%s1 + $0x1170] sm:$0xff]
  %v595 = vld [vmem:[%s1 + $0x1178] sm:$0xff]
  %v596 = vld [vmem:[%s1 + $0x1180] sm:$0xff]
  %v597 = vld [vmem:[%s1 + $0x1188] sm:$0xff]
  %v598 = vld [vmem:[%s1 + $0x1190] sm:$0xff]
  %v599 = vld [vmem:[%s1 + $0x1198] sm:$0xff]
  %v600 = vld [vmem:[%s1 + $0x11a0] sm:$0xff]
  %v601 = vld [vmem:[%s1 + $0x11a8] sm:$0xff]
  %v602 = vld [vmem:[%s1 + $0x11b0] sm:$0xff]
  %v603 = vld [vmem:[%s1 + $0x11b8] sm:$0xff]
  %v604 = vld [vmem:[%s1 + $0x11c0] sm:$0xff]
  %v605 = vld [vmem:[%s1 + $0x11c8] sm:$0xff]
  %v606 = vld [vmem:[%s1 + $0x11d0] sm:$0xff]
  %v607 = vld [vmem:[%s1 + $0x11d8] sm:$0xff]
  %v608 = vld [vmem:[%s1 + $0x11e0] sm:$0xff]
  %v609 = vld [vmem:[%s1 + $0x11e8] sm:$0xff]
  %v610 = vld [vmem:[%s1 + $0x11f0] sm:$0xff]
  %v611 = vld [vmem:[%s1 + $0x11f8] sm:$0xff]
  %v612 = vld [vmem:[%s1 + $0x1200] sm:$0xff]
  %v613 = vld [vmem:[%s1 + $0x1208] sm:$0xff]
  %v614 = vld [vmem:[%s1 + $0x1210] sm:$0xff]
  %v615 = vld [vmem:[%s1 + $0x1218] sm:$0xff]
  %v616 = vld [vmem:[%s1 + $0x1220] sm:$0xff]
  %v617 = vld [vmem:[%s1 + $0x1228] sm:$0xff]
  %v618 = vld [vmem:[%s1 + $0x1230] sm:$0xff]
  %v619 = vld [vmem:[%s1 + $0x1238] sm:$0xff]
  %v620 = vld [vmem:[%s1 + $0x1240] sm:$0xff]
  %v621 = vld [vmem:[%s1 + $0x1248] sm:$0xff]
  %v622 = vld [vmem:[%s1 + $0x1250] sm:$0xff]
  %v623 = vld [vmem:[%s1 + $0x1258] sm:$0xff]
  %v624 = vld [vmem:[%s1 + $0x1260] sm:$0xff]
  %v625 = vld [vmem:[%s1 + $0x1268] sm:$0xff]
  %v626 = vld [vmem:[%s1 + $0x1270] sm:$0xff]
  %v627 = vld [vmem:[%s1 + $0x1278] sm:$0xff]
  %v628 = vld [vmem:[%s1 + $0x1280] sm:$0xff]
  %v629 = vld [vmem:[%s1 + $0x1288] sm:$0xff]
  %v630 = vld [vmem:[%s1 + $0x1290] sm:$0xff]
  %v631 = vld [vmem:[%s1 + $0x1298] sm:$0xff]
  %v632 = vld [vmem:[%s1 + $0x12a0] sm:$0xff]
  %v633 = vld [vmem:[%s1 + $0x12a8] sm:$0xff]
  %v634 = vld [vmem:[%s1 + $0x12b0] sm:$0xff]
  %v635 = vld [vmem:[%s1 + $0x12b8] sm:$0xff]
  %v636 = vld [vmem:[%s1 + $0x12c0] sm:$0xff]
  %v637 = vld [vmem:[%s1 + $0x12c8] sm:$0xff]
  %v638 = vld [vmem:[%s1 + $0x12d0] sm:$0xff]
  %v639 = vld [vmem:[%s1 + $0x12d8] sm:$0xff]
  %v640 = vld [vmem:[%s1 + $0x12e0] sm:$0xff]
  %v641 = vld [vmem:[%s1 + $0x12e8] sm:$0xff]
  %v642 = vld [vmem:[%s1 + $0x12f0] sm:$0xff]
  %v643 = vld [vmem:[%s1 + $0x12f8] sm:$0xff]
  %v644 = vld [vmem:[%s1 + $0x1300] sm:$0xff]
  %v645 = vld [vmem:[%s1 + $0x1308] sm:$0xff]
  %v646 = vld [vmem:[%s1 + $0x1310] sm:$0xff]
  %v647 = vld [vmem:[%s1 + $0x1318] sm:$0xff]
  %v648 = vld [vmem:[%s1 + $0x1320] sm:$0xff]
  %v649 = vld [vmem:[%s1 + $0x1328] sm:$0xff]
  %v650 = vld [vmem:[%s1 + $0x1330] sm:$0xff]
  %v651 = vld [vmem:[%s1 + $0x1338] sm:$0xff]
  %v652 = vld [vmem:[%s1 + $0x1340] sm:$0xff]
  %v653 = vld [vmem:[%s1 + $0x1348] sm:$0xff]
  %v654 = vld [vmem:[%s1 + $0x1350] sm:$0xff]
  %v655 = vld [vmem:[%s1 + $0x1358] sm:$0xff]
  %v656 = vld [vmem:[%s1 + $0x1360] sm:$0xff]
  %v657 = vld [vmem:[%s1 + $0x1368] sm:$0xff]
  %v658 = vld [vmem:[%s1 + $0x1370] sm:$0xff]
  %v659 = vld [vmem:[%s1 + $0x1378] sm:$0xff]
  %v660 = vld [vmem:[%s1 + $0x1380] sm:$0xff]
  %v661 = vld [vmem:[%s1 + $0x1388] sm:$0xff]
  %v662 = vld [vmem:[%s1 + $0x1390] sm:$0xff]
  %v663 = vld [vmem:[%s1 + $0x1398] sm:$0xff]
  %v664 = vld [vmem:[%s1 + $0x13a0] sm:$0xff]
  %v665 = vld [vmem:[%s1 + $0x13a8] sm:$0xff]
  %v666 = vld [vmem:[%s1 + $0x13b0] sm:$0xff]
  %v667 = vld [vmem:[%s1 + $0x13b8] sm:$0xff]
  %v668 = vld [vmem:[%s1 + $0x13c0] sm:$0xff]
  %v669 = vld [vmem:[%s1 + $0x13c8] sm:$0xff]
  %v670 = vld [vmem:[%s1 + $0x13d0] sm:$0xff]
  %v671 = vld [vmem:[%s1 + $0x13d8] sm:$0xff]
  %v672 = vld [vmem:[%s1 + $0x13e0] sm:$0xff]
  %v673 = vld [vmem:[%s1 + $0x13e8] sm:$0xff]
  %v674 = vld [vmem:[%s1 + $0x13f0] sm:$0xff]
  %v675 = vld [vmem:[%s1 + $0x13f8] sm:$0xff]
  %v676 = vld [vmem:[%s1 + $0x1400] sm:$0xff]
  %v677 = vld [vmem:[%s1 + $0x1408] sm:$0xff]
  %v678 = vld [vmem:[%s1 + $0x1410] sm:$0xff]
  %v679 = vld [vmem:[%s1 + $0x1418] sm:$0xff]
  %v680 = vld [vmem:[%s1 + $0x1420] sm:$0xff]
  %v681 = vld [vmem:[%s1 + $0x1428] sm:$0xff]
  %v682 = vld [vmem:[%s1 + $0x1430] sm:$0xff]
  %v683 = vld [vmem:[%s1 + $0x1438] sm:$0xff]
  %v684 = vld [vmem:[%s1 + $0x1440] sm:$0xff]
  %v685 = vld [vmem:[%s1 + $0x1448] sm:$0xff]
  %v686 = vld [vmem:[%s1 + $0x1450] sm:$0xff]
  %v687 = vld [vmem:[%s1 + $0x1458] sm:$0xff]
  %v688 = vld [vmem:[%s1 + $0x1460] sm:$0xff]
  %v689 = vld [vmem:[%s1 + $0x1468] sm:$0xff]
  %v690 = vld [vmem:[%s1 + $0x1470] sm:$0xff]
  %v691 = vld [vmem:[%s1 + $0x1478] sm:$0xff]
  %v692 = vld [vmem:[%s1 + $0x1480] sm:$0xff]
  %v693 = vld [vmem:[%s1 + $0x1488] sm:$0xff]
  %v694 = vld [vmem:[%s1 + $0x1490] sm:$0xff]
  %v695 = vld [vmem:[%s1 + $0x1498] sm:$0xff]
  %v696 = vld [vmem:[%s1 + $0x14a0] sm:$0xff]
  %v697 = vld [vmem:[%s1 + $0x14a8] sm:$0xff]
  %v698 = vld [vmem:[%s1 + $0x14b0] sm:$0xff]
  %v699 = vld [vmem:[%s1 + $0x14b8] sm:$0xff]
  %v700 = vld [vmem:[%s1 + $0x14c0] sm:$0xff]
  %v701 = vld [vmem:[%s1 + $0x14c8] sm:$0xff]
  %v702 = vld [vmem:[%s1 + $0x14d0] sm:$0xff]
  %v703 = vld [vmem:[%s1 + $0x14d8] sm:$0xff]
  %v704 = vld [vmem:[%s1 + $0x14e0] sm:$0xff]
  %v705 = vld [vmem:[%s1 + $0x14e8] sm:$0xff]
  %v706 = vld [vmem:[%s1 + $0x14f0] sm:$0xff]
  %v707 = vld [vmem:[%s1 + $0x14f8] sm:$0xff]
  %v708 = vld [vmem:[%s1 + $0x1500] sm:$0xff]
  %v709 = vld [vmem:[%s1 + $0x1508] sm:$0xff]
  %v710 = vld [vmem:[%s1 + $0x1510] sm:$0xff]
  %v711 = vld [vmem:[%s1 + $0x1518] sm:$0xff]
  %v712 = vld [vmem:[%s1 + $0x1520] sm:$0xff]
  %v713 = vld [vmem:[%s1 + $0x1528] sm:$0xff]
  %v714 = vld [vmem:[%s1 + $0x1530] sm:$0xff]
  %v715 = vld [vmem:[%s1 + $0x1538] sm:$0xff]
  %v716 = vld [vmem:[%s1 + $0x1540] sm:$0xff]
  %v717 = vld [vmem:[%s1 + $0x1548] sm:$0xff]
  %v718 = vld [vmem:[%s1 + $0x1550] sm:$0xff]
  %v719 = vld [vmem:[%s1 + $0x1558] sm:$0xff]
  %v720 = vld [vmem:[%s1 + $0x1560] sm:$0xff]
  %v721 = vld [vmem:[%s1 + $0x1568] sm:$0xff]
  %v722 = vld [vmem:[%s1 + $0x1570] sm:$0xff]
  %v723 = vld [vmem:[%s1 + $0x1578] sm:$0xff]
  %v724 = vld [vmem:[%s1 + $0x1580] sm:$0xff]
  %v725 = vld [vmem:[%s1 + $0x1588] sm:$0xff]
  %v726 = vld [vmem:[%s1 + $0x1590] sm:$0xff]
  %v727 = vld [vmem:[%s1 + $0x1598] sm:$0xff]
  %v728 = vld [vmem:[%s1 + $0x15a0] sm:$0xff]
  %v729 = vld [vmem:[%s1 + $0x15a8] sm:$0xff]
  %v730 = vld [vmem:[%s1 + $0x15b0] sm:$0xff]
  %v731 = vld [vmem:[%s1 + $0x15b8] sm:$0xff]
  %v732 = vld [vmem:[%s1 + $0x15c0] sm:$0xff]
  %v733 = vld [vmem:[%s1 + $0x15c8] sm:$0xff]
  %v734 = vld [vmem:[%s1 + $0x15d0] sm:$0xff]
  %v735 = vld [vmem:[%s1 + $0x15d8] sm:$0xff]
  %v736 = vld [vmem:[%s2] sm:$0xff]
  %v737 = vld [vmem:[%s2 + $0x8] sm:$0xf]
  %739 = vset.pattern.permute.xlu0 0
  %740 = vperm.xlu0 %739, %v736
  %v741 = vpop.permute.xlu0 %740
  %744 = vset.pattern.permute.xlu0 0
  %745 = vperm.xlu0 %744, %v737
  %v746 = vpop.permute.xlu0 %745
  %vm748 = vcmask 982016
  %v750 = vsel %vm748, %v24, 0
  %v753 = vsel %vm748, %v35, 0
  %755 = vmatprep.subr.mxu0 %v97
  %756 = vmatpush1.msra.mxu0 %v96
  %757 = vmatprep.subr.mxu0 %v93
  %758 = vmatpush1.msra.mxu0 %v92
  %759 = vmatprep.subr.mxu0 %v89
  %760 = vmatpush1.msra.mxu0 %v88
  %761 = vmatprep.subr.mxu0 %v85
  %762 = vmatpush1.msra.mxu0 %v84
  %763 = vmatprep.subr.mxu0 %v81
  %764 = vmatpush1.msra.mxu0 %v80
  %765 = vmatprep.subr.mxu0 %v77
  %766 = vmatpush1.msra.mxu0 %v76
  %767 = vmatprep.subr.mxu0 %v73
  %768 = vmatpush1.msra.mxu0 %v72
  %769 = vmatprep.subr.mxu0 %v69
  %770 = vmatpush1.msra.mxu0 %v68
  %771 = vmatprep.subr.mxu0 %v65
  %772 = vmatpush1.msra.mxu0 %v64
  %773 = vmatprep.subr.mxu0 %v61
  %774 = vmatpush1.msra.mxu0 %v60
  %775 = vmatprep.subr.mxu0 %v57
  %776 = vmatpush1.msra.mxu0 %v56
  %777 = vmatprep.subr.mxu0 %v53
  %778 = vmatpush1.msra.mxu0 %v52
  %779 = vmatprep.subr.mxu0 %v49
  %780 = vmatpush1.msra.mxu0 %v48
  %781 = vmatprep.subr.mxu0 %v45
  %782 = vmatpush1.msra.mxu0 %v44
  %783 = vmatprep.subr.mxu0 %v41
  %784 = vmatpush1.msra.mxu0 %v40
  %785 = vmatprep.subr.mxu0 %v37
  %786 = vmatpush1.msra.mxu0 %v36
  %787 = vmatprep.subr.mxu0 %v161
  %788 = vmatpush2.msra.mxu0 %v160
  %789 = vmatprep.subr.mxu0 %v157
  %790 = vmatpush2.msra.mxu0 %v156
  %791 = vmatprep.subr.mxu0 %v153
  %792 = vmatpush2.msra.mxu0 %v152
  %793 = vmatprep.subr.mxu0 %v149
  %794 = vmatpush2.msra.mxu0 %v148
  %795 = vmatprep.subr.mxu0 %v145
  %796 = vmatpush2.msra.mxu0 %v144
  %797 = vmatprep.subr.mxu0 %v141
  %798 = vmatpush2.msra.mxu0 %v140
  %799 = vmatprep.subr.mxu0 %v137
  %800 = vmatpush2.msra.mxu0 %v136
  %801 = vmatprep.subr.mxu0 %v133
  %802 = vmatpush2.msra.mxu0 %v132
  %803 = vmatprep.subr.mxu0 %v129
  %804 = vmatpush2.msra.mxu0 %v128
  %805 = vmatprep.subr.mxu0 %v125
  %806 = vmatpush2.msra.mxu0 %v124
  %807 = vmatprep.subr.mxu0 %v121
  %808 = vmatpush2.msra.mxu0 %v120
  %809 = vmatprep.subr.mxu0 %v117
  %810 = vmatpush2.msra.mxu0 %v116
  %811 = vmatprep.subr.mxu0 %v113
  %812 = vmatpush2.msra.mxu0 %v112
  %813 = vmatprep.subr.mxu0 %v109
  %814 = vmatpush2.msra.mxu0 %v108
  %815 = vmatprep.subr.mxu0 %v105
  %816 = vmatpush2.msra.mxu0 %v104
  %817 = vmatprep.subr.mxu0 %v101
  %818 = vmatpush2.msra.mxu0 %v100
  %819 = vmatprep.mubr.f32.mxu0 %v15
  %820 = vmatmul.mubr.f32.gmra.mxu0 %v14
  %v821 = vpop.f32.mrf.mxu0
  %v822 = vadd.f32 %v741, %v821
  %v823 = vpop.f32.mrf.mxu0
  %v824 = vadd.f32 %v741, %v823
  %825 = vmatprep.mubr.f32.mxu0 %v26
  %826 = vmatmul.mubr.f32.gmra.mxu0 %v25
  %v827 = vpop.f32.mrf.mxu0
  %v828 = vadd.f32 %v746, %v827
  %v829 = vpop.f32.mrf.mxu0
  %v830 = vadd.f32 %v746, %v829
  %831 = vdwg.mxu0
  %832 = vmatprep.subr.mxu0 %v225
  %833 = vmatpush1.msra.mxu0 %v224
  %834 = vmatprep.subr.mxu0 %v221
  %835 = vmatpush1.msra.mxu0 %v220
  %836 = vmatprep.subr.mxu0 %v217
  %837 = vmatpush1.msra.mxu0 %v216
  %838 = vmatprep.subr.mxu0 %v213
  %839 = vmatpush1.msra.mxu0 %v212
  %840 = vmatprep.subr.mxu0 %v209
  %841 = vmatpush1.msra.mxu0 %v208
  %842 = vmatprep.subr.mxu0 %v205
  %843 = vmatpush1.msra.mxu0 %v204
  %844 = vmatprep.subr.mxu0 %v201
  %845 = vmatpush1.msra.mxu0 %v200
  %846 = vmatprep.subr.mxu0 %v197
  %847 = vmatpush1.msra.mxu0 %v196
  %848 = vmatprep.subr.mxu0 %v193
  %849 = vmatpush1.msra.mxu0 %v192
  %850 = vmatprep.subr.mxu0 %v189
  %851 = vmatpush1.msra.mxu0 %v188
  %852 = vmatprep.subr.mxu0 %v185
  %853 = vmatpush1.msra.mxu0 %v184
  %854 = vmatprep.subr.mxu0 %v181
  %855 = vmatpush1.msra.mxu0 %v180
  %856 = vmatprep.subr.mxu0 %v177
  %857 = vmatpush1.msra.mxu0 %v176
  %858 = vmatprep.subr.mxu0 %v173
  %859 = vmatpush1.msra.mxu0 %v172
  %860 = vmatprep.subr.mxu0 %v169
  %861 = vmatpush1.msra.mxu0 %v168
  %862 = vmatprep.subr.mxu0 %v165
  %863 = vmatpush1.msra.mxu0 %v164
  %864 = vmatprep.subr.mxu0 %v289
  %865 = vmatpush2.msra.mxu0 %v288
  %866 = vmatprep.subr.mxu0 %v285
  %867 = vmatpush2.msra.mxu0 %v284
  %868 = vmatprep.subr.mxu0 %v281
  %869 = vmatpush2.msra.mxu0 %v280
  %870 = vmatprep.subr.mxu0 %v277
  %871 = vmatpush2.msra.mxu0 %v276
  %872 = vmatprep.subr.mxu0 %v273
  %873 = vmatpush2.msra.mxu0 %v272
  %874 = vmatprep.subr.mxu0 %v269
  %875 = vmatpush2.msra.mxu0 %v268
  %876 = vmatprep.subr.mxu0 %v265
  %877 = vmatpush2.msra.mxu0 %v264
  %878 = vmatprep.subr.mxu0 %v261
  %879 = vmatpush2.msra.mxu0 %v260
  %880 = vmatprep.subr.mxu0 %v257
  %881 = vmatpush2.msra.mxu0 %v256
  %882 = vmatprep.subr.mxu0 %v253
  %883 = vmatpush2.msra.mxu0 %v252
  %884 = vmatprep.subr.mxu0 %v249
  %885 = vmatpush2.msra.mxu0 %v248
  %886 = vmatprep.subr.mxu0 %v245
  %887 = vmatpush2.msra.mxu0 %v244
  %888 = vmatprep.subr.mxu0 %v241
  %889 = vmatpush2.msra.mxu0 %v240
  %890 = vmatprep.subr.mxu0 %v237
  %891 = vmatpush2.msra.mxu0 %v236
  %892 = vmatprep.subr.mxu0 %v233
  %893 = vmatpush2.msra.mxu0 %v232
  %894 = vmatprep.subr.mxu0 %v229
  %895 = vmatpush2.msra.mxu0 %v228
  %896 = vmatprep.mubr.f32.mxu0 %v17
  %897 = vmatmul.mubr.f32.gmra.mxu0 %v16
  %v898 = vpop.f32.mrf.mxu0
  %v899 = vadd.f32 %v822, %v898
  %v900 = vpop.f32.mrf.mxu0
  %v901 = vadd.f32 %v824, %v900
  %902 = vmatprep.mubr.f32.mxu0 %v28
  %903 = vmatmul.mubr.f32.gmra.mxu0 %v27
  %v904 = vpop.f32.mrf.mxu0
  %v905 = vadd.f32 %v828, %v904
  %v906 = vpop.f32.mrf.mxu0
  %v907 = vadd.f32 %v830, %v906
  %908 = vdwg.mxu0
  %909 = vmatprep.subr.mxu0 %v353
  %910 = vmatpush1.msra.mxu0 %v352
  %911 = vmatprep.subr.mxu0 %v349
  %912 = vmatpush1.msra.mxu0 %v348
  %913 = vmatprep.subr.mxu0 %v345
  %914 = vmatpush1.msra.mxu0 %v344
  %915 = vmatprep.subr.mxu0 %v341
  %916 = vmatpush1.msra.mxu0 %v340
  %917 = vmatprep.subr.mxu0 %v337
  %918 = vmatpush1.msra.mxu0 %v336
  %919 = vmatprep.subr.mxu0 %v333
  %920 = vmatpush1.msra.mxu0 %v332
  %921 = vmatprep.subr.mxu0 %v329
  %922 = vmatpush1.msra.mxu0 %v328
  %923 = vmatprep.subr.mxu0 %v325
  %924 = vmatpush1.msra.mxu0 %v324
  %925 = vmatprep.subr.mxu0 %v321
  %926 = vmatpush1.msra.mxu0 %v320
  %927 = vmatprep.subr.mxu0 %v317
  %928 = vmatpush1.msra.mxu0 %v316
  %929 = vmatprep.subr.mxu0 %v313
  %930 = vmatpush1.msra.mxu0 %v312
  %931 = vmatprep.subr.mxu0 %v309
  %932 = vmatpush1.msra.mxu0 %v308
  %933 = vmatprep.subr.mxu0 %v305
  %934 = vmatpush1.msra.mxu0 %v304
  %935 = vmatprep.subr.mxu0 %v301
  %936 = vmatpush1.msra.mxu0 %v300
  %937 = vmatprep.subr.mxu0 %v297
  %938 = vmatpush1.msra.mxu0 %v296
  %939 = vmatprep.subr.mxu0 %v293
  %940 = vmatpush1.msra.mxu0 %v292
  %941 = vmatprep.subr.mxu0 %v417
  %942 = vmatpush2.msra.mxu0 %v416
  %943 = vmatprep.subr.mxu0 %v413
  %944 = vmatpush2.msra.mxu0 %v412
  %945 = vmatprep.subr.mxu0 %v409
  %946 = vmatpush2.msra.mxu0 %v408
  %947 = vmatprep.subr.mxu0 %v405
  %948 = vmatpush2.msra.mxu0 %v404
  %949 = vmatprep.subr.mxu0 %v401
  %950 = vmatpush2.msra.mxu0 %v400
  %951 = vmatprep.subr.mxu0 %v397
  %952 = vmatpush2.msra.mxu0 %v396
  %953 = vmatprep.subr.mxu0 %v393
  %954 = vmatpush2.msra.mxu0 %v392
  %955 = vmatprep.subr.mxu0 %v389
  %956 = vmatpush2.msra.mxu0 %v388
  %957 = vmatprep.subr.mxu0 %v385
  %958 = vmatpush2.msra.mxu0 %v384
  %959 = vmatprep.subr.mxu0 %v381
  %960 = vmatpush2.msra.mxu0 %v380
  %961 = vmatprep.subr.mxu0 %v377
  %962 = vmatpush2.msra.mxu0 %v376
  %963 = vmatprep.subr.mxu0 %v373
  %964 = vmatpush2.msra.mxu0 %v372
  %965 = vmatprep.subr.mxu0 %v369
  %966 = vmatpush2.msra.mxu0 %v368
  %967 = vmatprep.subr.mxu0 %v365
  %968 = vmatpush2.msra.mxu0 %v364
  %969 = vmatprep.subr.mxu0 %v361
  %970 = vmatpush2.msra.mxu0 %v360
  %971 = vmatprep.subr.mxu0 %v357
  %972 = vmatpush2.msra.mxu0 %v356
  %973 = vmatprep.mubr.f32.mxu0 %v19
  %974 = vmatmul.mubr.f32.gmra.mxu0 %v18
  %v975 = vpop.f32.mrf.mxu0
  %v976 = vadd.f32 %v899, %v975
  %v977 = vpop.f32.mrf.mxu0
  %v978 = vadd.f32 %v901, %v977
  %979 = vmatprep.mubr.f32.mxu0 %v30
  %980 = vmatmul.mubr.f32.gmra.mxu0 %v29
  %v981 = vpop.f32.mrf.mxu0
  %v982 = vadd.f32 %v905, %v981
  %v983 = vpop.f32.mrf.mxu0
  %v984 = vadd.f32 %v907, %v983
  %985 = vdwg.mxu0
  %986 = vmatprep.subr.mxu0 %v481
  %987 = vmatpush1.msra.mxu0 %v480
  %988 = vmatprep.subr.mxu0 %v477
  %989 = vmatpush1.msra.mxu0 %v476
  %990 = vmatprep.subr.mxu0 %v473
  %991 = vmatpush1.msra.mxu0 %v472
  %992 = vmatprep.subr.mxu0 %v469
  %993 = vmatpush1.msra.mxu0 %v468
  %994 = vmatprep.subr.mxu0 %v465
  %995 = vmatpush1.msra.mxu0 %v464
  %996 = vmatprep.subr.mxu0 %v461
  %997 = vmatpush1.msra.mxu0 %v460
  %998 = vmatprep.subr.mxu0 %v457
  %999 = vmatpush1.msra.mxu0 %v456
  %1000 = vmatprep.subr.mxu0 %v453
  %1001 = vmatpush1.msra.mxu0 %v452
  %1002 = vmatprep.subr.mxu0 %v449
  %1003 = vmatpush1.msra.mxu0 %v448
  %1004 = vmatprep.subr.mxu0 %v445
  %1005 = vmatpush1.msra.mxu0 %v444
  %1006 = vmatprep.subr.mxu0 %v441
  %1007 = vmatpush1.msra.mxu0 %v440
  %1008 = vmatprep.subr.mxu0 %v437
  %1009 = vmatpush1.msra.mxu0 %v436
  %1010 = vmatprep.subr.mxu0 %v433
  %1011 = vmatpush1.msra.mxu0 %v432
  %1012 = vmatprep.subr.mxu0 %v429
  %1013 = vmatpush1.msra.mxu0 %v428
  %1014 = vmatprep.subr.mxu0 %v425
  %1015 = vmatpush1.msra.mxu0 %v424
  %1016 = vmatprep.subr.mxu0 %v421
  %1017 = vmatpush1.msra.mxu0 %v420
  %1018 = vmatprep.subr.mxu0 %v545
  %1019 = vmatpush2.msra.mxu0 %v544
  %1020 = vmatprep.subr.mxu0 %v541
  %1021 = vmatpush2.msra.mxu0 %v540
  %1022 = vmatprep.subr.mxu0 %v537
  %1023 = vmatpush2.msra.mxu0 %v536
  %1024 = vmatprep.subr.mxu0 %v533
  %1025 = vmatpush2.msra.mxu0 %v532
  %1026 = vmatprep.subr.mxu0 %v529
  %1027 = vmatpush2.msra.mxu0 %v528
  %1028 = vmatprep.subr.mxu0 %v525
  %1029 = vmatpush2.msra.mxu0 %v524
  %1030 = vmatprep.subr.mxu0 %v521
  %1031 = vmatpush2.msra.mxu0 %v520
  %1032 = vmatprep.subr.mxu0 %v517
  %1033 = vmatpush2.msra.mxu0 %v516
  %1034 = vmatprep.subr.mxu0 %v513
  %1035 = vmatpush2.msra.mxu0 %v512
  %1036 = vmatprep.subr.mxu0 %v509
  %1037 = vmatpush2.msra.mxu0 %v508
  %1038 = vmatprep.subr.mxu0 %v505
  %1039 = vmatpush2.msra.mxu0 %v504
  %1040 = vmatprep.subr.mxu0 %v501
  %1041 = vmatpush2.msra.mxu0 %v500
  %1042 = vmatprep.subr.mxu0 %v497
  %1043 = vmatpush2.msra.mxu0 %v496
  %1044 = vmatprep.subr.mxu0 %v493
  %1045 = vmatpush2.msra.mxu0 %v492
  %1046 = vmatprep.subr.mxu0 %v489
  %1047 = vmatpush2.msra.mxu0 %v488
  %1048 = vmatprep.subr.mxu0 %v485
  %1049 = vmatpush2.msra.mxu0 %v484
  %1050 = vmatprep.mubr.f32.mxu0 %v21
  %1051 = vmatmul.mubr.f32.gmra.mxu0 %v20
  %v1052 = vpop.f32.mrf.mxu0
  %v1053 = vadd.f32 %v976, %v1052
  %v1054 = vpop.f32.mrf.mxu0
  %v1055 = vadd.f32 %v978, %v1054
  %1056 = vmatprep.mubr.f32.mxu0 %v32
  %1057 = vmatmul.mubr.f32.gmra.mxu0 %v31
  %v1058 = vpop.f32.mrf.mxu0
  %v1059 = vadd.f32 %v982, %v1058
  %v1060 = vpop.f32.mrf.mxu0
  %v1061 = vadd.f32 %v984, %v1060
  %1062 = vdwg.mxu0
  %1063 = vmatprep.subr.mxu0 %v609
  %1064 = vmatpush1.msra.mxu0 %v608
  %1065 = vmatprep.subr.mxu0 %v605
  %1066 = vmatpush1.msra.mxu0 %v604
  %1067 = vmatprep.subr.mxu0 %v601
  %1068 = vmatpush1.msra.mxu0 %v600
  %1069 = vmatprep.subr.mxu0 %v597
  %1070 = vmatpush1.msra.mxu0 %v596
  %1071 = vmatprep.subr.mxu0 %v593
  %1072 = vmatpush1.msra.mxu0 %v592
  %1073 = vmatprep.subr.mxu0 %v589
  %1074 = vmatpush1.msra.mxu0 %v588
  %1075 = vmatprep.subr.mxu0 %v585
  %1076 = vmatpush1.msra.mxu0 %v584
  %1077 = vmatprep.subr.mxu0 %v581
  %1078 = vmatpush1.msra.mxu0 %v580
  %1079 = vmatprep.subr.mxu0 %v577
  %1080 = vmatpush1.msra.mxu0 %v576
  %1081 = vmatprep.subr.mxu0 %v573
  %1082 = vmatpush1.msra.mxu0 %v572
  %1083 = vmatprep.subr.mxu0 %v569
  %1084 = vmatpush1.msra.mxu0 %v568
  %1085 = vmatprep.subr.mxu0 %v565
  %1086 = vmatpush1.msra.mxu0 %v564
  %1087 = vmatprep.subr.mxu0 %v561
  %1088 = vmatpush1.msra.mxu0 %v560
  %1089 = vmatprep.subr.mxu0 %v557
  %1090 = vmatpush1.msra.mxu0 %v556
  %1091 = vmatprep.subr.mxu0 %v553
  %1092 = vmatpush1.msra.mxu0 %v552
  %1093 = vmatprep.subr.mxu0 %v549
  %1094 = vmatpush1.msra.mxu0 %v548
  %1095 = vmatprep.subr.mxu0 %v673
  %1096 = vmatpush2.msra.mxu0 %v672
  %1097 = vmatprep.subr.mxu0 %v669
  %1098 = vmatpush2.msra.mxu0 %v668
  %1099 = vmatprep.subr.mxu0 %v665
  %1100 = vmatpush2.msra.mxu0 %v664
  %1101 = vmatprep.subr.mxu0 %v661
  %1102 = vmatpush2.msra.mxu0 %v660
  %1103 = vmatprep.subr.mxu0 %v657
  %1104 = vmatpush2.msra.mxu0 %v656
  %1105 = vmatprep.subr.mxu0 %v653
  %1106 = vmatpush2.msra.mxu0 %v652
  %1107 = vmatprep.subr.mxu0 %v649
  %1108 = vmatpush2.msra.mxu0 %v648
  %1109 = vmatprep.subr.mxu0 %v645
  %1110 = vmatpush2.msra.mxu0 %v644
  %1111 = vmatprep.subr.mxu0 %v641
  %1112 = vmatpush2.msra.mxu0 %v640
  %1113 = vmatprep.subr.mxu0 %v637
  %1114 = vmatpush2.msra.mxu0 %v636
  %1115 = vmatprep.subr.mxu0 %v633
  %1116 = vmatpush2.msra.mxu0 %v632
  %1117 = vmatprep.subr.mxu0 %v629
  %1118 = vmatpush2.msra.mxu0 %v628
  %1119 = vmatprep.subr.mxu0 %v625
  %1120 = vmatpush2.msra.mxu0 %v624
  %1121 = vmatprep.subr.mxu0 %v621
  %1122 = vmatpush2.msra.mxu0 %v620
  %1123 = vmatprep.subr.mxu0 %v617
  %1124 = vmatpush2.msra.mxu0 %v616
  %1125 = vmatprep.subr.mxu0 %v613
  %1126 = vmatpush2.msra.mxu0 %v612
  %1127 = vmatprep.mubr.f32.mxu0 %v23
  %1128 = vmatmul.mubr.f32.gmra.mxu0 %v22
  %v1129 = vpop.f32.mrf.mxu0
  %v1130 = vadd.f32 %v1053, %v1129
  %v1131 = vpop.f32.mrf.mxu0
  %v1132 = vadd.f32 %v1055, %v1131
  %1133 = vmatprep.mubr.f32.mxu0 %v34
  %1134 = vmatmul.mubr.f32.gmra.mxu0 %v33
  %v1135 = vpop.f32.mrf.mxu0
  %v1136 = vadd.f32 %v1059, %v1135
  %v1137 = vpop.f32.mrf.mxu0
  %v1138 = vadd.f32 %v1061, %v1137
  %1139 = vdwg.mxu0
  %1140 = vmatprep.subr.mxu0 0.0
  %1141 = vmatpush1.msra.mxu0 0.0
  %1142 = vmatprep.subr.mxu0 %v733
  %1143 = vmatpush1.msra.mxu0 %v732
  %1144 = vmatprep.subr.mxu0 %v729
  %1145 = vmatpush1.msra.mxu0 %v728
  %1146 = vmatprep.subr.mxu0 %v725
  %1147 = vmatpush1.msra.mxu0 %v724
  %1148 = vmatprep.subr.mxu0 %v721
  %1149 = vmatpush1.msra.mxu0 %v720
  %1150 = vmatprep.subr.mxu0 %v717
  %1151 = vmatpush1.msra.mxu0 %v716
  %1152 = vmatprep.subr.mxu0 %v713
  %1153 = vmatpush1.msra.mxu0 %v712
  %1154 = vmatprep.subr.mxu0 %v709
  %1155 = vmatpush1.msra.mxu0 %v708
  %1156 = vmatprep.subr.mxu0 %v705
  %1157 = vmatpush1.msra.mxu0 %v704
  %1158 = vmatprep.subr.mxu0 %v701
  %1159 = vmatpush1.msra.mxu0 %v700
  %1160 = vmatprep.subr.mxu0 %v697
  %1161 = vmatpush1.msra.mxu0 %v696
  %1162 = vmatprep.subr.mxu0 %v693
  %1163 = vmatpush1.msra.mxu0 %v692
  %1164 = vmatprep.subr.mxu0 %v689
  %1165 = vmatpush1.msra.mxu0 %v688
  %1166 = vmatprep.subr.mxu0 %v685
  %1167 = vmatpush1.msra.mxu0 %v684
  %1168 = vmatprep.subr.mxu0 %v681
  %1169 = vmatpush1.msra.mxu0 %v680
  %1170 = vmatprep.subr.mxu0 %v677
  %1171 = vmatpush1.msra.mxu0 %v676
  %1172 = vmatprep.subr.mxu0 0.0
  %1173 = vmatpush2.msra.mxu0 0.0
  %1174 = vmatprep.subr.mxu0 0.0
  %1175 = vmatpush2.msra.mxu0 0.0
  %1176 = vmatprep.subr.mxu0 0.0
  %1177 = vmatpush2.msra.mxu0 0.0
  %1178 = vmatprep.subr.mxu0 0.0
  %1179 = vmatpush2.msra.mxu0 0.0
  %1180 = vmatprep.subr.mxu0 0.0
  %1181 = vmatpush2.msra.mxu0 0.0
  %1182 = vmatprep.subr.mxu0 0.0
  %1183 = vmatpush2.msra.mxu0 0.0
  %1184 = vmatprep.subr.mxu0 0.0
  %1185 = vmatpush2.msra.mxu0 0.0
  %1186 = vmatprep.subr.mxu0 0.0
  %1187 = vmatpush2.msra.mxu0 0.0
  %1188 = vmatprep.subr.mxu0 0.0
  %1189 = vmatpush2.msra.mxu0 0.0
  %1190 = vmatprep.subr.mxu0 0.0
  %1191 = vmatpush2.msra.mxu0 0.0
  %1192 = vmatprep.subr.mxu0 0.0
  %1193 = vmatpush2.msra.mxu0 0.0
  %1194 = vmatprep.subr.mxu0 0.0
  %1195 = vmatpush2.msra.mxu0 0.0
  %1196 = vmatprep.subr.mxu0 0.0
  %1197 = vmatpush2.msra.mxu0 0.0
  %1198 = vmatprep.subr.mxu0 0.0
  %1199 = vmatpush2.msra.mxu0 0.0
  %1200 = vmatprep.subr.mxu0 0.0
  %1201 = vmatpush2.msra.mxu0 0.0
  %1202 = vmatprep.subr.mxu0 0.0
  %1203 = vmatpush2.msra.mxu0 0.0
  %1204 = vmatprep.mubr.f32.mxu0 0.0
  %1205 = vmatmul.mubr.f32.gmra.mxu0 %v750
  %v1206 = vpop.f32.mrf.mxu0
  %v1207 = vadd.f32 %v1130, %v1206
  %v1208 = vpop.f32.mrf.mxu0
  %v1209 = vadd.f32 %v1132, %v1208
  %1210 = vmatprep.mubr.f32.mxu0 0.0
  %1211 = vmatmul.mubr.f32.gmra.mxu0 %v753
  %v1212 = vpop.f32.mrf.mxu0
  %v1213 = vadd.f32 %v1136, %v1212
  %v1214 = vpop.f32.mrf.mxu0
  %v1215 = vadd.f32 %v1138, %v1214
  %1216 = vdwg.mxu0
  %1217 = vmatprep.subr.mxu0 %v99
  %1218 = vmatpush1.msra.mxu0 %v98
  %1219 = vmatprep.subr.mxu0 %v95
  %1220 = vmatpush1.msra.mxu0 %v94
  %1221 = vmatprep.subr.mxu0 %v91
  %1222 = vmatpush1.msra.mxu0 %v90
  %1223 = vmatprep.subr.mxu0 %v87
  %1224 = vmatpush1.msra.mxu0 %v86
  %1225 = vmatprep.subr.mxu0 %v83
  %1226 = vmatpush1.msra.mxu0 %v82
  %1227 = vmatprep.subr.mxu0 %v79
  %1228 = vmatpush1.msra.mxu0 %v78
  %1229 = vmatprep.subr.mxu0 %v75
  %1230 = vmatpush1.msra.mxu0 %v74
  %1231 = vmatprep.subr.mxu0 %v71
  %1232 = vmatpush1.msra.mxu0 %v70
  %1233 = vmatprep.subr.mxu0 %v67
  %1234 = vmatpush1.msra.mxu0 %v66
  %1235 = vmatprep.subr.mxu0 %v63
  %1236 = vmatpush1.msra.mxu0 %v62
  %1237 = vmatprep.subr.mxu0 %v59
  %1238 = vmatpush1.msra.mxu0 %v58
  %1239 = vmatprep.subr.mxu0 %v55
  %1240 = vmatpush1.msra.mxu0 %v54
  %1241 = vmatprep.subr.mxu0 %v51
  %1242 = vmatpush1.msra.mxu0 %v50
  %1243 = vmatprep.subr.mxu0 %v47
  %1244 = vmatpush1.msra.mxu0 %v46
  %1245 = vmatprep.subr.mxu0 %v43
  %1246 = vmatpush1.msra.mxu0 %v42
  %1247 = vmatprep.subr.mxu0 %v39
  %1248 = vmatpush1.msra.mxu0 %v38
  %1249 = vmatprep.subr.mxu0 %v163
  %1250 = vmatpush2.msra.mxu0 %v162
  %1251 = vmatprep.subr.mxu0 %v159
  %1252 = vmatpush2.msra.mxu0 %v158
  %1253 = vmatprep.subr.mxu0 %v155
  %1254 = vmatpush2.msra.mxu0 %v154
  %1255 = vmatprep.subr.mxu0 %v151
  %1256 = vmatpush2.msra.mxu0 %v150
  %1257 = vmatprep.subr.mxu0 %v147
  %1258 = vmatpush2.msra.mxu0 %v146
  %1259 = vmatprep.subr.mxu0 %v143
  %1260 = vmatpush2.msra.mxu0 %v142
  %1261 = vmatprep.subr.mxu0 %v139
  %1262 = vmatpush2.msra.mxu0 %v138
  %1263 = vmatprep.subr.mxu0 %v135
  %1264 = vmatpush2.msra.mxu0 %v134
  %1265 = vmatprep.subr.mxu0 %v131
  %1266 = vmatpush2.msra.mxu0 %v130
  %1267 = vmatprep.subr.mxu0 %v127
  %1268 = vmatpush2.msra.mxu0 %v126
  %1269 = vmatprep.subr.mxu0 %v123
  %1270 = vmatpush2.msra.mxu0 %v122
  %1271 = vmatprep.subr.mxu0 %v119
  %1272 = vmatpush2.msra.mxu0 %v118
  %1273 = vmatprep.subr.mxu0 %v115
  %1274 = vmatpush2.msra.mxu0 %v114
  %1275 = vmatprep.subr.mxu0 %v111
  %1276 = vmatpush2.msra.mxu0 %v110
  %1277 = vmatprep.subr.mxu0 %v107
  %1278 = vmatpush2.msra.mxu0 %v106
  %1279 = vmatprep.subr.mxu0 %v103
  %1280 = vmatpush2.msra.mxu0 %v102
  %1281 = vmatprep.mubr.f32.mxu0 %v15
  %1282 = vmatmul.mubr.f32.gmra.mxu0 %v14
  %v1283 = vpop.f32.mrf.mxu0
  %v1284 = vadd.f32 %v741, %v1283
  %v1285 = vpop.f32.mrf.mxu0
  %v1286 = vadd.f32 %v741, %v1285
  %1287 = vmatprep.mubr.f32.mxu0 %v26
  %1288 = vmatmul.mubr.f32.gmra.mxu0 %v25
  %v1289 = vpop.f32.mrf.mxu0
  %v1290 = vadd.f32 %v746, %v1289
  %v1291 = vpop.f32.mrf.mxu0
  %v1292 = vadd.f32 %v746, %v1291
  %1293 = vdwg.mxu0
  %1294 = vmatprep.subr.mxu0 %v227
  %1295 = vmatpush1.msra.mxu0 %v226
  %1296 = vmatprep.subr.mxu0 %v223
  %1297 = vmatpush1.msra.mxu0 %v222
  %1298 = vmatprep.subr.mxu0 %v219
  %1299 = vmatpush1.msra.mxu0 %v218
  %1300 = vmatprep.subr.mxu0 %v215
  %1301 = vmatpush1.msra.mxu0 %v214
  %1302 = vmatprep.subr.mxu0 %v211
  %1303 = vmatpush1.msra.mxu0 %v210
  %1304 = vmatprep.subr.mxu0 %v207
  %1305 = vmatpush1.msra.mxu0 %v206
  %1306 = vmatprep.subr.mxu0 %v203
  %1307 = vmatpush1.msra.mxu0 %v202
  %1308 = vmatprep.subr.mxu0 %v199
  %1309 = vmatpush1.msra.mxu0 %v198
  %1310 = vmatprep.subr.mxu0 %v195
  %1311 = vmatpush1.msra.mxu0 %v194
  %1312 = vmatprep.subr.mxu0 %v191
  %1313 = vmatpush1.msra.mxu0 %v190
  %1314 = vmatprep.subr.mxu0 %v187
  %1315 = vmatpush1.msra.mxu0 %v186
  %1316 = vmatprep.subr.mxu0 %v183
  %1317 = vmatpush1.msra.mxu0 %v182
  %1318 = vmatprep.subr.mxu0 %v179
  %1319 = vmatpush1.msra.mxu0 %v178
  %1320 = vmatprep.subr.mxu0 %v175
  %1321 = vmatpush1.msra.mxu0 %v174
  %1322 = vmatprep.subr.mxu0 %v171
  %1323 = vmatpush1.msra.mxu0 %v170
  %1324 = vmatprep.subr.mxu0 %v167
  %1325 = vmatpush1.msra.mxu0 %v166
  %1326 = vmatprep.subr.mxu0 %v291
  %1327 = vmatpush2.msra.mxu0 %v290
  %1328 = vmatprep.subr.mxu0 %v287
  %1329 = vmatpush2.msra.mxu0 %v286
  %1330 = vmatprep.subr.mxu0 %v283
  %1331 = vmatpush2.msra.mxu0 %v282
  %1332 = vmatprep.subr.mxu0 %v279
  %1333 = vmatpush2.msra.mxu0 %v278
  %1334 = vmatprep.subr.mxu0 %v275
  %1335 = vmatpush2.msra.mxu0 %v274
  %1336 = vmatprep.subr.mxu0 %v271
  %1337 = vmatpush2.msra.mxu0 %v270
  %1338 = vmatprep.subr.mxu0 %v267
  %1339 = vmatpush2.msra.mxu0 %v266
  %1340 = vmatprep.subr.mxu0 %v263
  %1341 = vmatpush2.msra.mxu0 %v262
  %1342 = vmatprep.subr.mxu0 %v259
  %1343 = vmatpush2.msra.mxu0 %v258
  %1344 = vmatprep.subr.mxu0 %v255
  %1345 = vmatpush2.msra.mxu0 %v254
  %1346 = vmatprep.subr.mxu0 %v251
  %1347 = vmatpush2.msra.mxu0 %v250
  %1348 = vmatprep.subr.mxu0 %v247
  %1349 = vmatpush2.msra.mxu0 %v246
  %1350 = vmatprep.subr.mxu0 %v243
  %1351 = vmatpush2.msra.mxu0 %v242
  %1352 = vmatprep.subr.mxu0 %v239
  %1353 = vmatpush2.msra.mxu0 %v238
  %1354 = vmatprep.subr.mxu0 %v235
  %1355 = vmatpush2.msra.mxu0 %v234
  %1356 = vmatprep.subr.mxu0 %v231
  %1357 = vmatpush2.msra.mxu0 %v230
  %1358 = vmatprep.mubr.f32.mxu0 %v17
  %1359 = vmatmul.mubr.f32.gmra.mxu0 %v16
  %v1360 = vpop.f32.mrf.mxu0
  %v1361 = vadd.f32 %v1284, %v1360
  %v1362 = vpop.f32.mrf.mxu0
  %v1363 = vadd.f32 %v1286, %v1362
  %1364 = vmatprep.mubr.f32.mxu0 %v28
  %1365 = vmatmul.mubr.f32.gmra.mxu0 %v27
  %v1366 = vpop.f32.mrf.mxu0
  %v1367 = vadd.f32 %v1290, %v1366
  %v1368 = vpop.f32.mrf.mxu0
  %v1369 = vadd.f32 %v1292, %v1368
  %1370 = vdwg.mxu0
  %1371 = vmatprep.subr.mxu0 %v355
  %1372 = vmatpush1.msra.mxu0 %v354
  %1373 = vmatprep.subr.mxu0 %v351
  %1374 = vmatpush1.msra.mxu0 %v350
  %1375 = vmatprep.subr.mxu0 %v347
  %1376 = vmatpush1.msra.mxu0 %v346
  %1377 = vmatprep.subr.mxu0 %v343
  %1378 = vmatpush1.msra.mxu0 %v342
  %1379 = vmatprep.subr.mxu0 %v339
  %1380 = vmatpush1.msra.mxu0 %v338
  %1381 = vmatprep.subr.mxu0 %v335
  %1382 = vmatpush1.msra.mxu0 %v334
  %1383 = vmatprep.subr.mxu0 %v331
  %1384 = vmatpush1.msra.mxu0 %v330
  %1385 = vmatprep.subr.mxu0 %v327
  %1386 = vmatpush1.msra.mxu0 %v326
  %1387 = vmatprep.subr.mxu0 %v323
  %1388 = vmatpush1.msra.mxu0 %v322
  %1389 = vmatprep.subr.mxu0 %v319
  %1390 = vmatpush1.msra.mxu0 %v318
  %1391 = vmatprep.subr.mxu0 %v315
  %1392 = vmatpush1.msra.mxu0 %v314
  %1393 = vmatprep.subr.mxu0 %v311
  %1394 = vmatpush1.msra.mxu0 %v310
  %1395 = vmatprep.subr.mxu0 %v307
  %1396 = vmatpush1.msra.mxu0 %v306
  %1397 = vmatprep.subr.mxu0 %v303
  %1398 = vmatpush1.msra.mxu0 %v302
  %1399 = vmatprep.subr.mxu0 %v299
  %1400 = vmatpush1.msra.mxu0 %v298
  %1401 = vmatprep.subr.mxu0 %v295
  %1402 = vmatpush1.msra.mxu0 %v294
  %1403 = vmatprep.subr.mxu0 %v419
  %1404 = vmatpush2.msra.mxu0 %v418
  %1405 = vmatprep.subr.mxu0 %v415
  %1406 = vmatpush2.msra.mxu0 %v414
  %1407 = vmatprep.subr.mxu0 %v411
  %1408 = vmatpush2.msra.mxu0 %v410
  %1409 = vmatprep.subr.mxu0 %v407
  %1410 = vmatpush2.msra.mxu0 %v406
  %1411 = vmatprep.subr.mxu0 %v403
  %1412 = vmatpush2.msra.mxu0 %v402
  %1413 = vmatprep.subr.mxu0 %v399
  %1414 = vmatpush2.msra.mxu0 %v398
  %1415 = vmatprep.subr.mxu0 %v395
  %1416 = vmatpush2.msra.mxu0 %v394
  %1417 = vmatprep.subr.mxu0 %v391
  %1418 = vmatpush2.msra.mxu0 %v390
  %1419 = vmatprep.subr.mxu0 %v387
  %1420 = vmatpush2.msra.mxu0 %v386
  %1421 = vmatprep.subr.mxu0 %v383
  %1422 = vmatpush2.msra.mxu0 %v382
  %1423 = vmatprep.subr.mxu0 %v379
  %1424 = vmatpush2.msra.mxu0 %v378
  %1425 = vmatprep.subr.mxu0 %v375
  %1426 = vmatpush2.msra.mxu0 %v374
  %1427 = vmatprep.subr.mxu0 %v371
  %1428 = vmatpush2.msra.mxu0 %v370
  %1429 = vmatprep.subr.mxu0 %v367
  %1430 = vmatpush2.msra.mxu0 %v366
  %1431 = vmatprep.subr.mxu0 %v363
  %1432 = vmatpush2.msra.mxu0 %v362
  %1433 = vmatprep.subr.mxu0 %v359
  %1434 = vmatpush2.msra.mxu0 %v358
  %1435 = vmatprep.mubr.f32.mxu0 %v19
  %1436 = vmatmul.mubr.f32.gmra.mxu0 %v18
  %v1437 = vpop.f32.mrf.mxu0
  %v1438 = vadd.f32 %v1361, %v1437
  %v1439 = vpop.f32.mrf.mxu0
  %v1440 = vadd.f32 %v1363, %v1439
  %1441 = vmatprep.mubr.f32.mxu0 %v30
  %1442 = vmatmul.mubr.f32.gmra.mxu0 %v29
  %v1443 = vpop.f32.mrf.mxu0
  %v1444 = vadd.f32 %v1367, %v1443
  %v1445 = vpop.f32.mrf.mxu0
  %v1446 = vadd.f32 %v1369, %v1445
  %1447 = vdwg.mxu0
  %1448 = vmatprep.subr.mxu0 %v483
  %1449 = vmatpush1.msra.mxu0 %v482
  %1450 = vmatprep.subr.mxu0 %v479
  %1451 = vmatpush1.msra.mxu0 %v478
  %1452 = vmatprep.subr.mxu0 %v475
  %1453 = vmatpush1.msra.mxu0 %v474
  %1454 = vmatprep.subr.mxu0 %v471
  %1455 = vmatpush1.msra.mxu0 %v470
  %1456 = vmatprep.subr.mxu0 %v467
  %1457 = vmatpush1.msra.mxu0 %v466
  %1458 = vmatprep.subr.mxu0 %v463
  %1459 = vmatpush1.msra.mxu0 %v462
  %1460 = vmatprep.subr.mxu0 %v459
  %1461 = vmatpush1.msra.mxu0 %v458
  %1462 = vmatprep.subr.mxu0 %v455
  %1463 = vmatpush1.msra.mxu0 %v454
  %1464 = vmatprep.subr.mxu0 %v451
  %1465 = vmatpush1.msra.mxu0 %v450
  %1466 = vmatprep.subr.mxu0 %v447
  %1467 = vmatpush1.msra.mxu0 %v446
  %1468 = vmatprep.subr.mxu0 %v443
  %1469 = vmatpush1.msra.mxu0 %v442
  %1470 = vmatprep.subr.mxu0 %v439
  %1471 = vmatpush1.msra.mxu0 %v438
  %1472 = vmatprep.subr.mxu0 %v435
  %1473 = vmatpush1.msra.mxu0 %v434
  %1474 = vmatprep.subr.mxu0 %v431
  %1475 = vmatpush1.msra.mxu0 %v430
  %1476 = vmatprep.subr.mxu0 %v427
  %1477 = vmatpush1.msra.mxu0 %v426
  %1478 = vmatprep.subr.mxu0 %v423
  %1479 = vmatpush1.msra.mxu0 %v422
  %1480 = vmatprep.subr.mxu0 %v547
  %1481 = vmatpush2.msra.mxu0 %v546
  %1482 = vmatprep.subr.mxu0 %v543
  %1483 = vmatpush2.msra.mxu0 %v542
  %1484 = vmatprep.subr.mxu0 %v539
  %1485 = vmatpush2.msra.mxu0 %v538
  %1486 = vmatprep.subr.mxu0 %v535
  %1487 = vmatpush2.msra.mxu0 %v534
  %1488 = vmatprep.subr.mxu0 %v531
  %1489 = vmatpush2.msra.mxu0 %v530
  %1490 = vmatprep.subr.mxu0 %v527
  %1491 = vmatpush2.msra.mxu0 %v526
  %1492 = vmatprep.subr.mxu0 %v523
  %1493 = vmatpush2.msra.mxu0 %v522
  %1494 = vmatprep.subr.mxu0 %v519
  %1495 = vmatpush2.msra.mxu0 %v518
  %1496 = vmatprep.subr.mxu0 %v515
  %1497 = vmatpush2.msra.mxu0 %v514
  %1498 = vmatprep.subr.mxu0 %v511
  %1499 = vmatpush2.msra.mxu0 %v510
  %1500 = vmatprep.subr.mxu0 %v507
  %1501 = vmatpush2.msra.mxu0 %v506
  %1502 = vmatprep.subr.mxu0 %v503
  %1503 = vmatpush2.msra.mxu0 %v502
  %1504 = vmatprep.subr.mxu0 %v499
  %1505 = vmatpush2.msra.mxu0 %v498
  %1506 = vmatprep.subr.mxu0 %v495
  %1507 = vmatpush2.msra.mxu0 %v494
  %1508 = vmatprep.subr.mxu0 %v491
  %1509 = vmatpush2.msra.mxu0 %v490
  %1510 = vmatprep.subr.mxu0 %v487
  %1511 = vmatpush2.msra.mxu0 %v486
  %1512 = vmatprep.mubr.f32.mxu0 %v21
  %1513 = vmatmul.mubr.f32.gmra.mxu0 %v20
  %v1514 = vpop.f32.mrf.mxu0
  %v1515 = vadd.f32 %v1438, %v1514
  %v1516 = vpop.f32.mrf.mxu0
  %v1517 = vadd.f32 %v1440, %v1516
  %1518 = vmatprep.mubr.f32.mxu0 %v32
  %1519 = vmatmul.mubr.f32.gmra.mxu0 %v31
  %v1520 = vpop.f32.mrf.mxu0
  %v1521 = vadd.f32 %v1444, %v1520
  %v1522 = vpop.f32.mrf.mxu0
  %v1523 = vadd.f32 %v1446, %v1522
  %1524 = vdwg.mxu0
  %1525 = vmatprep.subr.mxu0 %v611
  %1526 = vmatpush1.msra.mxu0 %v610
  %1527 = vmatprep.subr.mxu0 %v607
  %1528 = vmatpush1.msra.mxu0 %v606
  %1529 = vmatprep.subr.mxu0 %v603
  %1530 = vmatpush1.msra.mxu0 %v602
  %1531 = vmatprep.subr.mxu0 %v599
  %1532 = vmatpush1.msra.mxu0 %v598
  %1533 = vmatprep.subr.mxu0 %v595
  %1534 = vmatpush1.msra.mxu0 %v594
  %1535 = vmatprep.subr.mxu0 %v591
  %1536 = vmatpush1.msra.mxu0 %v590
  %1537 = vmatprep.subr.mxu0 %v587
  %1538 = vmatpush1.msra.mxu0 %v586
  %1539 = vmatprep.subr.mxu0 %v583
  %1540 = vmatpush1.msra.mxu0 %v582
  %1541 = vmatprep.subr.mxu0 %v579
  %1542 = vmatpush1.msra.mxu0 %v578
  %1543 = vmatprep.subr.mxu0 %v575
  %1544 = vmatpush1.msra.mxu0 %v574
  %1545 = vmatprep.subr.mxu0 %v571
  %1546 = vmatpush1.msra.mxu0 %v570
  %1547 = vmatprep.subr.mxu0 %v567
  %1548 = vmatpush1.msra.mxu0 %v566
  %1549 = vmatprep.subr.mxu0 %v563
  %1550 = vmatpush1.msra.mxu0 %v562
  %1551 = vmatprep.subr.mxu0 %v559
  %1552 = vmatpush1.msra.mxu0 %v558
  %1553 = vmatprep.subr.mxu0 %v555
  %1554 = vmatpush1.msra.mxu0 %v554
  %1555 = vmatprep.subr.mxu0 %v551
  %1556 = vmatpush1.msra.mxu0 %v550
  %1557 = vmatprep.subr.mxu0 %v675
  %1558 = vmatpush2.msra.mxu0 %v674
  %1559 = vmatprep.subr.mxu0 %v671
  %1560 = vmatpush2.msra.mxu0 %v670
  %1561 = vmatprep.subr.mxu0 %v667
  %1562 = vmatpush2.msra.mxu0 %v666
  %1563 = vmatprep.subr.mxu0 %v663
  %1564 = vmatpush2.msra.mxu0 %v662
  %1565 = vmatprep.subr.mxu0 %v659
  %1566 = vmatpush2.msra.mxu0 %v658
  %1567 = vmatprep.subr.mxu0 %v655
  %1568 = vmatpush2.msra.mxu0 %v654
  %1569 = vmatprep.subr.mxu0 %v651
  %1570 = vmatpush2.msra.mxu0 %v650
  %1571 = vmatprep.subr.mxu0 %v647
  %1572 = vmatpush2.msra.mxu0 %v646
  %1573 = vmatprep.subr.mxu0 %v643
  %1574 = vmatpush2.msra.mxu0 %v642
  %1575 = vmatprep.subr.mxu0 %v639
  %1576 = vmatpush2.msra.mxu0 %v638
  %1577 = vmatprep.subr.mxu0 %v635
  %1578 = vmatpush2.msra.mxu0 %v634
  %1579 = vmatprep.subr.mxu0 %v631
  %1580 = vmatpush2.msra.mxu0 %v630
  %1581 = vmatprep.subr.mxu0 %v627
  %1582 = vmatpush2.msra.mxu0 %v626
  %1583 = vmatprep.subr.mxu0 %v623
  %1584 = vmatpush2.msra.mxu0 %v622
  %1585 = vmatprep.subr.mxu0 %v619
  %1586 = vmatpush2.msra.mxu0 %v618
  %1587 = vmatprep.subr.mxu0 %v615
  %1588 = vmatpush2.msra.mxu0 %v614
  %1589 = vmatprep.mubr.f32.mxu0 %v23
  %1590 = vmatmul.mubr.f32.gmra.mxu0 %v22
  %v1591 = vpop.f32.mrf.mxu0
  %v1592 = vadd.f32 %v1515, %v1591
  %v1593 = vpop.f32.mrf.mxu0
  %v1594 = vadd.f32 %v1517, %v1593
  %1595 = vmatprep.mubr.f32.mxu0 %v34
  %1596 = vmatmul.mubr.f32.gmra.mxu0 %v33
  %v1597 = vpop.f32.mrf.mxu0
  %v1598 = vadd.f32 %v1521, %v1597
  %v1599 = vpop.f32.mrf.mxu0
  %v1600 = vadd.f32 %v1523, %v1599
  %1601 = vdwg.mxu0
  %1602 = vmatprep.subr.mxu0 0.0
  %1603 = vmatpush1.msra.mxu0 0.0
  %1604 = vmatprep.subr.mxu0 %v735
  %1605 = vmatpush1.msra.mxu0 %v734
  %1606 = vmatprep.subr.mxu0 %v731
  %1607 = vmatpush1.msra.mxu0 %v730
  %1608 = vmatprep.subr.mxu0 %v727
  %1609 = vmatpush1.msra.mxu0 %v726
  %1610 = vmatprep.subr.mxu0 %v723
  %1611 = vmatpush1.msra.mxu0 %v722
  %1612 = vmatprep.subr.mxu0 %v719
  %1613 = vmatpush1.msra.mxu0 %v718
  %1614 = vmatprep.subr.mxu0 %v715
  %1615 = vmatpush1.msra.mxu0 %v714
  %1616 = vmatprep.subr.mxu0 %v711
  %1617 = vmatpush1.msra.mxu0 %v710
  %1618 = vmatprep.subr.mxu0 %v707
  %1619 = vmatpush1.msra.mxu0 %v706
  %1620 = vmatprep.subr.mxu0 %v703
  %1621 = vmatpush1.msra.mxu0 %v702
  %1622 = vmatprep.subr.mxu0 %v699
  %1623 = vmatpush1.msra.mxu0 %v698
  %1624 = vmatprep.subr.mxu0 %v695
  %1625 = vmatpush1.msra.mxu0 %v694
  %1626 = vmatprep.subr.mxu0 %v691
  %1627 = vmatpush1.msra.mxu0 %v690
  %1628 = vmatprep.subr.mxu0 %v687
  %1629 = vmatpush1.msra.mxu0 %v686
  %1630 = vmatprep.subr.mxu0 %v683
  %1631 = vmatpush1.msra.mxu0 %v682
  %1632 = vmatprep.subr.mxu0 %v679
  %1633 = vmatpush1.msra.mxu0 %v678
  %1634 = vmatprep.subr.mxu0 0.0
  %1635 = vmatpush2.msra.mxu0 0.0
  %1636 = vmatprep.subr.mxu0 0.0
  %1637 = vmatpush2.msra.mxu0 0.0
  %1638 = vmatprep.subr.mxu0 0.0
  %1639 = vmatpush2.msra.mxu0 0.0
  %1640 = vmatprep.subr.mxu0 0.0
  %1641 = vmatpush2.msra.mxu0 0.0
  %1642 = vmatprep.subr.mxu0 0.0
  %1643 = vmatpush2.msra.mxu0 0.0
  %1644 = vmatprep.subr.mxu0 0.0
  %1645 = vmatpush2.msra.mxu0 0.0
  %1646 = vmatprep.subr.mxu0 0.0
  %1647 = vmatpush2.msra.mxu0 0.0
  %1648 = vmatprep.subr.mxu0 0.0
  %1649 = vmatpush2.msra.mxu0 0.0
  %1650 = vmatprep.subr.mxu0 0.0
  %1651 = vmatpush2.msra.mxu0 0.0
  %1652 = vmatprep.subr.mxu0 0.0
  %1653 = vmatpush2.msra.mxu0 0.0
  %1654 = vmatprep.subr.mxu0 0.0
  %1655 = vmatpush2.msra.mxu0 0.0
  %1656 = vmatprep.subr.mxu0 0.0
  %1657 = vmatpush2.msra.mxu0 0.0
  %1658 = vmatprep.subr.mxu0 0.0
  %1659 = vmatpush2.msra.mxu0 0.0
  %1660 = vmatprep.subr.mxu0 0.0
  %1661 = vmatpush2.msra.mxu0 0.0
  %1662 = vmatprep.subr.mxu0 0.0
  %1663 = vmatpush2.msra.mxu0 0.0
  %1664 = vmatprep.subr.mxu0 0.0
  %1665 = vmatpush2.msra.mxu0 0.0
  %1666 = vmatprep.mubr.f32.mxu0 0.0
  %1667 = vmatmul.mubr.f32.gmra.mxu0 %v750
  %v1668 = vpop.f32.mrf.mxu0
  %v1669 = vadd.f32 %v1592, %v1668
  %v1670 = vpop.f32.mrf.mxu0
  %v1671 = vadd.f32 %v1594, %v1670
  %1672 = vmatprep.mubr.f32.mxu0 0.0
  %1673 = vmatmul.mubr.f32.gmra.mxu0 %v753
  %v1674 = vpop.f32.mrf.mxu0
  %v1675 = vadd.f32 %v1598, %v1674
  %v1676 = vpop.f32.mrf.mxu0
  %v1677 = vadd.f32 %v1600, %v1676
  %1678 = vdwg.mxu0
  %v1679 = vsub.f32 0.0, %v1207
  %v1680 = vsub.f32 0.0, %v1209
  %v1681 = vsub.f32 0.0, %v1669
  %v1682 = vsub.f32 0.0, %v1671
  %v1683 = vsub.f32 0.0, %v1213
  %v1684 = vsub.f32 0.0, %v1215
  %v1685 = vsub.f32 0.0, %v1675
  %v1686 = vsub.f32 0.0, %v1677
  %v1687 = vmul.f32 %v1679, 1.442695
  %v1688 = vpow.pop %v1687
  %v1689 = vmul.f32 %v1680, 1.442695
  %v1690 = vpow.pop %v1689
  %v1691 = vmul.f32 %v1681, 1.442695
  %v1692 = vpow.pop %v1691
  %v1693 = vmul.f32 %v1682, 1.442695
  %v1694 = vpow.pop %v1693
  %v1695 = vmul.f32 %v1683, 1.442695
  %v1696 = vpow.pop %v1695
  %v1697 = vmul.f32 %v1684, 1.442695
  %v1698 = vpow.pop %v1697
  %v1699 = vmul.f32 %v1685, 1.442695
  %v1700 = vpow.pop %v1699
  %v1701 = vmul.f32 %v1686, 1.442695
  %v1702 = vpow.pop %v1701
  %v1703 = vadd.f32 %v1688, 1.0
  %v1704 = vadd.f32 %v1690, 1.0
  %v1705 = vadd.f32 %v1692, 1.0
  %v1706 = vadd.f32 %v1694, 1.0
  %v1707 = vadd.f32 %v1696, 1.0
  %v1708 = vadd.f32 %v1698, 1.0
  %v1709 = vadd.f32 %v1700, 1.0
  %v1710 = vadd.f32 %v1702, 1.0
  %v1711 = vrcp.pop %v1703
  %v1712 = vrcp.pop %v1704
  %v1713 = vrcp.pop %v1705
  %v1714 = vrcp.pop %v1706
  %v1715 = vrcp.pop %v1707
  %v1716 = vrcp.pop %v1708
  %v1717 = vrcp.pop %v1709
  %v1718 = vrcp.pop %v1710
  %1719 = vst [vmem:[%s3] sm:$0xff] %v1711
  %1720 = vst [vmem:[%s3 + $0x8] sm:$0xff] %v1712
  %1721 = vst [vmem:[%s3 + $0x10] sm:$0xff] %v1713
  %1722 = vst [vmem:[%s3 + $0x18] sm:$0xff] %v1714
  %1723 = vst [vmem:[%s3 + $0x20] sm:$0xf] %v1715
  %1724 = vst [vmem:[%s3 + $0x28] sm:$0xf] %v1716
  %1725 = vst [vmem:[%s3 + $0x30] sm:$0xf] %v1717
  %1726 = vst [vmem:[%s3 + $0x38] sm:$0xf] %v1718
  // Predicated region
  $region14: #{fsrcnn_forward.15} parent=0 // pred_check
    _
  $region15: #{fsrcnn_forward.15} parent=0 // pred_check_branch
    %1728 = sbr.rel (0) target = $region17
  $region16: #{fsrcnn_forward.15} parent=0 // pred_region
    _
  $region17: #{fsrcnn_forward.15} parent=0 // pred_fallthru
    _
  // Predicated region
  $region18: #{fsrcnn_forward.15} parent=0 // pred_check
    _
  $region19: #{fsrcnn_forward.15} parent=0 // pred_check_branch
    %1730 = sbr.rel (0) target = $region21
  $region20: #{fsrcnn_forward.15} parent=0 // pred_region
    _
  $region21: #{fsrcnn_forward.15} parent=0 // pred_fallthru
    _

</llo_original>
